<compile_context>
chip_gen: v5e
topology: v5e:2x2
jax: 0.10.0
libtpu: 0.0.40
codegen_flags: <defaults>
</compile_context>

<pallas_src>
import functools

import jax
import jax.numpy as jnp
from jax.experimental import pallas as pl
from jax.experimental.pallas import tpu as pltpu

# Layer sizes of the autoencoder.
ENC_DIMS = [28 * 28, 128, 64, 12, 3]
DEC_DIMS = [3, 12, 64, 128, 28 * 28]
DEC_OUT = DEC_DIMS[-1]        # 784


def _autoencode_kernel(x_ref,
                       # encoder params
                       we1, be1, we2, be2, we3, be3, we4, be4,
                       # decoder params
                       wd1, bd1, wd2, bd2, wd3, bd3, wd4, bd4,
                       # outputs
                       enc_ref, dec_ref):
    """Fused forward pass of the MLP autoencoder for one batch tile."""

    def linear_f32(h, w_ref, b_ref):
        return (jnp.dot(h, w_ref[...], preferred_element_type=jnp.float32)
                + b_ref[...])  # b is (1, out) -> broadcasts over batch

    # ---- encoder: Linear -> Tanh (x3) -> Linear ----
    # First layer is the big (784x128) matmul: bf16 MXU operands, f32 accumulation,
    # bias-add / tanh stay in f32.
    x = x_ref[...]
    h = jnp.dot(x.astype(jnp.bfloat16), we1[...],
                preferred_element_type=jnp.float32) + be1[...]
    h = jnp.tanh(h)
    h = jnp.tanh(linear_f32(h, we2, be2))
    h = jnp.tanh(linear_f32(h, we3, be3))
    encode = linear_f32(h, we4, be4)               # (B, 3), no activation

    # ---- decoder: Linear -> Tanh (x3) -> Linear -> Sigmoid ----
    h = jnp.tanh(linear_f32(encode, wd1, bd1))
    h = jnp.tanh(linear_f32(h, wd2, bd2))
    h = jnp.tanh(linear_f32(h, wd3, bd3))
    # Last layer is the big (128 x 784) matmul: bf16 operands, f32 acc.
    z = jnp.dot(h.astype(jnp.bfloat16), wd4[...],
                preferred_element_type=jnp.float32) + bd4[...]
    # sigmoid(z) = 0.5 * (1 + tanh(z/2)): a single EUP push per element.
    decode = 0.5 * (1.0 + jnp.tanh(0.5 * z))

    enc_ref[...] = encode.astype(enc_ref.dtype)
    dec_ref[...] = decode.astype(dec_ref.dtype)


def _full_spec(shape):
    # Parameters: same full-array block at every grid step (resident across steps).
    return pl.BlockSpec(shape, lambda i, _n=len(shape): (0,) * _n)


def _round_up(n, m):
    return ((n + m - 1) // m) * m


@functools.partial(jax.jit, static_argnames=("batch_tile",))
def autoencode_forward(x, params, batch_tile=1024):
    """x: (B, 784) float32. params: flat list [W,b,W,b,...] (8 layers, f32).

    Returns (encode (B, 3), decode (B, 784)), matching torch forward().
    """
    B, D = x.shape
    assert D == ENC_DIMS[0]

    # ---- batch tile selection ----
    # As large as possible (amortizes ~0.35us/grid-step overhead), but keep at least
    # two grid steps when the batch allows so both v7x TensorCores get sharded work.
    bt = _round_up(min(batch_tile, _round_up(B, 8)), 8)
    b_pad = _round_up(B, bt)
    if (b_pad // bt) < 2 and B > 8:
        bt = max(8, _round_up(pl.cdiv(b_pad, 2), 8))
        b_pad = _round_up(B, bt)

    # Pad the batch so the grid tiles evenly; padded rows are sliced off below.
    if b_pad != B:
        x = jnp.pad(x, ((0, b_pad - B), (0, 0)))

    # Kernel-side params: the two 784-wide weight matrices are cast to bf16 (MXU-native);
    # everything else stays f32. No column padding -- Mosaic pads N in vregs.
    kparams = list(params)
    kparams[0] = kparams[0].astype(jnp.bfloat16)       # we1 (784, 128)
    kparams[14] = kparams[14].astype(jnp.bfloat16)     # wd4 (128, 784)

    in_specs = [pl.BlockSpec((bt, D), lambda i: (i, 0))]
    for p in kparams:
        in_specs.append(_full_spec(p.shape))

    out_specs = [
        pl.BlockSpec((bt, ENC_DIMS[-1]), lambda i: (i, 0)),
        pl.BlockSpec((bt, DEC_OUT), lambda i: (i, 0)),
    ]
    out_shape = [
        jax.ShapeDtypeStruct((b_pad, ENC_DIMS[-1]), jnp.float32),
        jax.ShapeDtypeStruct((b_pad, DEC_OUT), jnp.float32),
    ]

    grid_spec = pltpu.PrefetchScalarGridSpec(
        num_scalar_prefetch=0,
        grid=(b_pad // bt,),
        in_specs=in_specs,
        out_specs=out_specs,
    )

    # ---- VMEM budget: double-buffered batch blocks + resident params + temps ----
    param_bytes = sum(int(p.size) * p.dtype.itemsize for p in kparams)
    blk_bytes = bt * (D + ENC_DIMS[-1] + DEC_OUT) * 4          # x + enc + dec blocks (f32)
    tmp_bytes = bt * (2 * D + 4 * (2 * DEC_OUT + 128))          # bf16 x, f32 z/decode/h temps
    vmem_limit = 2 * blk_bytes + 2 * param_bytes + tmp_bytes + (6 << 20)
    vmem_limit = int(min(max(vmem_limit, 16 << 20), 64 << 20))

    # Advisory cost estimate for XLA's scheduler.
    layer_dims = (list(zip(ENC_DIMS[:-1], ENC_DIMS[1:]))
                  + list(zip(DEC_DIMS[:-1], DEC_DIMS[1:])))
    flops = 2 * sum(m * n for m, n in layer_dims) * b_pad
    transcendentals = (sum(ENC_DIMS[1:-1]) + sum(DEC_DIMS[1:-1]) + DEC_OUT) * b_pad
    bytes_accessed = (4 * b_pad * (D + ENC_DIMS[-1] + DEC_OUT) + param_bytes)

    encode, decode = pl.pallas_call(
        _autoencode_kernel,
        grid_spec=grid_spec,
        out_shape=out_shape,
        compiler_params=pltpu.CompilerParams(
            dimension_semantics=("parallel",),
            vmem_limit_bytes=vmem_limit,
        ),
        cost_estimate=pl.CostEstimate(
            flops=flops,
            transcendentals=transcendentals,
            bytes_accessed=bytes_accessed),
    )(x, *kparams)

    # Only the (possibly padded) batch rows are sliced off; no column slice.
    return encode[:B], decode[:B]


def init_params(key):
    """Deterministic init mimicking nn.Linear's uniform(-1/sqrt(in), 1/sqrt(in)).

    Weights stored as (in_features, out_features)."""
    params = []
    dims = list(zip(ENC_DIMS[:-1], ENC_DIMS[1:])) + list(zip(DEC_DIMS[:-1], DEC_DIMS[1:]))
    for (fan_in, fan_out) in dims:
        key, kw, kb = jax.random.split(key, 3)
        bound = 1.0 / jnp.sqrt(jnp.float32(fan_in))
        w = jax.random.uniform(kw, (fan_in, fan_out), jnp.float32, -bound, bound)
        b = jax.random.uniform(kb, (1, fan_out), jnp.float32, -bound, bound)
        params += [w, b]
    return params


def reference_forward(x, params):
    """Pure-JAX f32 reference of the same forward pass."""
    ws = params[0::2]
    bs = params[1::2]
    h = x
    for i in range(3):
        h = jnp.tanh(h @ ws[i] + bs[i])
    encode = h @ ws[3] + bs[3]
    h = encode
    for i in range(4, 7):
        h = jnp.tanh(h @ ws[i] + bs[i])
    decode = jax.nn.sigmoid(h @ ws[7] + bs[7])
    return encode, decode


if __name__ == "__main__":
    key = jax.random.PRNGKey(0)
    kx, kp = jax.random.split(key)

    B = 512  # with bt auto-capped to 256 -> 2 grid steps (keeps both v7x TCs busy)
    x = jax.random.normal(kx, (B, 28 * 28), jnp.float32)
    params = init_params(kp)

    encode, decode = autoencode_forward(x, params)
    jax.block_until_ready((encode, decode))

    enc_ref, dec_ref = reference_forward(x, params)
    assert encode.shape == (B, 3) and decode.shape == (B, 28 * 28)
    # bf16 MXU operands on the two 784-wide layers -> relaxed tol.
    assert jnp.allclose(encode, enc_ref, atol=2e-2, rtol=2e-2)
    assert jnp.allclose(decode, dec_ref, atol=2e-2, rtol=2e-2)

    print("KERNEL_OK")
</pallas_src>

<mosaic_0001>
module attributes {stable_mosaic.version = 11 : i64} {
  func.func @_autoencode_kernel(%arg0: i32, %arg1: memref<256x784xf32, #tpu.memory_space<vmem>>, %arg2: memref<784x128xbf16, #tpu.memory_space<vmem>>, %arg3: memref<1x128xf32, #tpu.memory_space<vmem>>, %arg4: memref<128x64xf32, #tpu.memory_space<vmem>>, %arg5: memref<1x64xf32, #tpu.memory_space<vmem>>, %arg6: memref<64x12xf32, #tpu.memory_space<vmem>>, %arg7: memref<1x12xf32, #tpu.memory_space<vmem>>, %arg8: memref<12x3xf32, #tpu.memory_space<vmem>>, %arg9: memref<1x3xf32, #tpu.memory_space<vmem>>, %arg10: memref<3x12xf32, #tpu.memory_space<vmem>>, %arg11: memref<1x12xf32, #tpu.memory_space<vmem>>, %arg12: memref<12x64xf32, #tpu.memory_space<vmem>>, %arg13: memref<1x64xf32, #tpu.memory_space<vmem>>, %arg14: memref<64x128xf32, #tpu.memory_space<vmem>>, %arg15: memref<1x128xf32, #tpu.memory_space<vmem>>, %arg16: memref<128x784xbf16, #tpu.memory_space<vmem>>, %arg17: memref<1x784xf32, #tpu.memory_space<vmem>>, %arg18: memref<256x3xf32, #tpu.memory_space<vmem>>, %arg19: memref<256x784xf32, #tpu.memory_space<vmem>>) attributes {dimension_semantics = [#tpu.dimension_semantics<parallel>], iteration_bounds = array<i64: 2>, scalar_prefetch = 0 : i64, scratch_operands = 0 : i64, tpu.core_type = #tpu.core_type<tc>, window_params = [{transform_indices = @transform_0, window_bounds = array<i64: 256, 784>}, {pipeline_mode = #tpu.pipeline_mode<synchronous>, transform_indices = @transform_1, window_bounds = array<i64: 784, 128>}, {pipeline_mode = #tpu.pipeline_mode<synchronous>, transform_indices = @transform_2, window_bounds = array<i64: 1, 128>}, {pipeline_mode = #tpu.pipeline_mode<synchronous>, transform_indices = @transform_3, window_bounds = array<i64: 128, 64>}, {pipeline_mode = #tpu.pipeline_mode<synchronous>, transform_indices = @transform_4, window_bounds = array<i64: 1, 64>}, {pipeline_mode = #tpu.pipeline_mode<synchronous>, transform_indices = @transform_5, window_bounds = array<i64: 64, 12>}, {pipeline_mode = #tpu.pipeline_mode<synchronous>, transform_indices = @transform_6, window_bounds = array<i64: 1, 12>}, {pipeline_mode = #tpu.pipeline_mode<synchronous>, transform_indices = @transform_7, window_bounds = array<i64: 12, 3>}, {pipeline_mode = #tpu.pipeline_mode<synchronous>, transform_indices = @transform_8, window_bounds = array<i64: 1, 3>}, {pipeline_mode = #tpu.pipeline_mode<synchronous>, transform_indices = @transform_9, window_bounds = array<i64: 3, 12>}, {pipeline_mode = #tpu.pipeline_mode<synchronous>, transform_indices = @transform_10, window_bounds = array<i64: 1, 12>}, {pipeline_mode = #tpu.pipeline_mode<synchronous>, transform_indices = @transform_11, window_bounds = array<i64: 12, 64>}, {pipeline_mode = #tpu.pipeline_mode<synchronous>, transform_indices = @transform_12, window_bounds = array<i64: 1, 64>}, {pipeline_mode = #tpu.pipeline_mode<synchronous>, transform_indices = @transform_13, window_bounds = array<i64: 64, 128>}, {pipeline_mode = #tpu.pipeline_mode<synchronous>, transform_indices = @transform_14, window_bounds = array<i64: 1, 128>}, {pipeline_mode = #tpu.pipeline_mode<synchronous>, transform_indices = @transform_15, window_bounds = array<i64: 128, 784>}, {pipeline_mode = #tpu.pipeline_mode<synchronous>, transform_indices = @transform_16, window_bounds = array<i64: 1, 784>}, {transform_indices = @transform_17, window_bounds = array<i64: 256, 3>}, {transform_indices = @transform_18, window_bounds = array<i64: 256, 784>}]} {
    %c0 = arith.constant 0 : index
    %c0_0 = arith.constant 0 : index
    %0 = vector.load %arg1[%c0, %c0_0] : memref<256x784xf32, #tpu.memory_space<vmem>>, vector<256x784xf32>
    %1 = arith.truncf %0 : vector<256x784xf32> to vector<256x784xbf16>
    %c0_1 = arith.constant 0 : index
    %c0_2 = arith.constant 0 : index
    %2 = vector.load %arg2[%c0_1, %c0_2] : memref<784x128xbf16, #tpu.memory_space<vmem>>, vector<784x128xbf16>
    %cst = arith.constant dense<0.000000e+00> : vector<256x128xf32>
    %3 = tpu.matmul %1, %2, %cst {dimension_numbers = #tpu.dot_dimension_numbers<[1], [0], [0], [1], [0, 0, 1, 1], [], []>} : vector<256x784xbf16>, vector<784x128xbf16>, vector<256x128xf32> -> vector<256x128xf32>
    %c0_3 = arith.constant 0 : index
    %c0_4 = arith.constant 0 : index
    %4 = vector.load %arg3[%c0_3, %c0_4] : memref<1x128xf32, #tpu.memory_space<vmem>>, vector<1x128xf32>
    %5 = vector.broadcast %4 : vector<1x128xf32> to vector<256x128xf32>
    %6 = arith.addf %3, %5 : vector<256x128xf32>
    %7 = math.tanh %6 : vector<256x128xf32>
    %c0_5 = arith.constant 0 : index
    %c0_6 = arith.constant 0 : index
    %8 = vector.load %arg4[%c0_5, %c0_6] : memref<128x64xf32, #tpu.memory_space<vmem>>, vector<128x64xf32>
    %cst_7 = arith.constant dense<0.000000e+00> : vector<256x64xf32>
    %9 = tpu.matmul %7, %8, %cst_7 {dimension_numbers = #tpu.dot_dimension_numbers<[1], [0], [0], [1], [0, 0, 1, 1], [], []>} : vector<256x128xf32>, vector<128x64xf32>, vector<256x64xf32> -> vector<256x64xf32>
    %c0_8 = arith.constant 0 : index
    %c0_9 = arith.constant 0 : index
    %10 = vector.load %arg5[%c0_8, %c0_9] : memref<1x64xf32, #tpu.memory_space<vmem>>, vector<1x64xf32>
    %11 = vector.broadcast %10 : vector<1x64xf32> to vector<256x64xf32>
    %12 = arith.addf %9, %11 : vector<256x64xf32>
    %13 = math.tanh %12 : vector<256x64xf32>
    %c0_10 = arith.constant 0 : index
    %c0_11 = arith.constant 0 : index
    %14 = vector.load %arg6[%c0_10, %c0_11] : memref<64x12xf32, #tpu.memory_space<vmem>>, vector<64x12xf32>
    %cst_12 = arith.constant dense<0.000000e+00> : vector<256x12xf32>
    %15 = tpu.matmul %13, %14, %cst_12 {dimension_numbers = #tpu.dot_dimension_numbers<[1], [0], [0], [1], [0, 0, 1, 1], [], []>} : vector<256x64xf32>, vector<64x12xf32>, vector<256x12xf32> -> vector<256x12xf32>
    %c0_13 = arith.constant 0 : index
    %c0_14 = arith.constant 0 : index
    %16 = vector.load %arg7[%c0_13, %c0_14] : memref<1x12xf32, #tpu.memory_space<vmem>>, vector<1x12xf32>
    %17 = vector.broadcast %16 : vector<1x12xf32> to vector<256x12xf32>
    %18 = arith.addf %15, %17 : vector<256x12xf32>
    %19 = math.tanh %18 : vector<256x12xf32>
    %c0_15 = arith.constant 0 : index
    %c0_16 = arith.constant 0 : index
    %20 = vector.load %arg8[%c0_15, %c0_16] : memref<12x3xf32, #tpu.memory_space<vmem>>, vector<12x3xf32>
    %cst_17 = arith.constant dense<0.000000e+00> : vector<256x3xf32>
    %21 = tpu.matmul %19, %20, %cst_17 {dimension_numbers = #tpu.dot_dimension_numbers<[1], [0], [0], [1], [0, 0, 1, 1], [], []>} : vector<256x12xf32>, vector<12x3xf32>, vector<256x3xf32> -> vector<256x3xf32>
    %c0_18 = arith.constant 0 : index
    %c0_19 = arith.constant 0 : index
    %22 = vector.load %arg9[%c0_18, %c0_19] : memref<1x3xf32, #tpu.memory_space<vmem>>, vector<1x3xf32>
    %23 = vector.broadcast %22 : vector<1x3xf32> to vector<256x3xf32>
    %24 = arith.addf %21, %23 : vector<256x3xf32>
    %c0_20 = arith.constant 0 : index
    %c0_21 = arith.constant 0 : index
    %25 = vector.load %arg10[%c0_20, %c0_21] : memref<3x12xf32, #tpu.memory_space<vmem>>, vector<3x12xf32>
    %cst_22 = arith.constant dense<0.000000e+00> : vector<256x12xf32>
    %26 = tpu.matmul %24, %25, %cst_22 {dimension_numbers = #tpu.dot_dimension_numbers<[1], [0], [0], [1], [0, 0, 1, 1], [], []>} : vector<256x3xf32>, vector<3x12xf32>, vector<256x12xf32> -> vector<256x12xf32>
    %c0_23 = arith.constant 0 : index
    %c0_24 = arith.constant 0 : index
    %27 = vector.load %arg11[%c0_23, %c0_24] : memref<1x12xf32, #tpu.memory_space<vmem>>, vector<1x12xf32>
    %28 = vector.broadcast %27 : vector<1x12xf32> to vector<256x12xf32>
    %29 = arith.addf %26, %28 : vector<256x12xf32>
    %30 = math.tanh %29 : vector<256x12xf32>
    %c0_25 = arith.constant 0 : index
    %c0_26 = arith.constant 0 : index
    %31 = vector.load %arg12[%c0_25, %c0_26] : memref<12x64xf32, #tpu.memory_space<vmem>>, vector<12x64xf32>
    %cst_27 = arith.constant dense<0.000000e+00> : vector<256x64xf32>
    %32 = tpu.matmul %30, %31, %cst_27 {dimension_numbers = #tpu.dot_dimension_numbers<[1], [0], [0], [1], [0, 0, 1, 1], [], []>} : vector<256x12xf32>, vector<12x64xf32>, vector<256x64xf32> -> vector<256x64xf32>
    %c0_28 = arith.constant 0 : index
    %c0_29 = arith.constant 0 : index
    %33 = vector.load %arg13[%c0_28, %c0_29] : memref<1x64xf32, #tpu.memory_space<vmem>>, vector<1x64xf32>
    %34 = vector.broadcast %33 : vector<1x64xf32> to vector<256x64xf32>
    %35 = arith.addf %32, %34 : vector<256x64xf32>
    %36 = math.tanh %35 : vector<256x64xf32>
    %c0_30 = arith.constant 0 : index
    %c0_31 = arith.constant 0 : index
    %37 = vector.load %arg14[%c0_30, %c0_31] : memref<64x128xf32, #tpu.memory_space<vmem>>, vector<64x128xf32>
    %cst_32 = arith.constant dense<0.000000e+00> : vector<256x128xf32>
    %38 = tpu.matmul %36, %37, %cst_32 {dimension_numbers = #tpu.dot_dimension_numbers<[1], [0], [0], [1], [0, 0, 1, 1], [], []>} : vector<256x64xf32>, vector<64x128xf32>, vector<256x128xf32> -> vector<256x128xf32>
    %c0_33 = arith.constant 0 : index
    %c0_34 = arith.constant 0 : index
    %39 = vector.load %arg15[%c0_33, %c0_34] : memref<1x128xf32, #tpu.memory_space<vmem>>, vector<1x128xf32>
    %40 = vector.broadcast %39 : vector<1x128xf32> to vector<256x128xf32>
    %41 = arith.addf %38, %40 : vector<256x128xf32>
    %42 = math.tanh %41 : vector<256x128xf32>
    %43 = arith.truncf %42 : vector<256x128xf32> to vector<256x128xbf16>
    %c0_35 = arith.constant 0 : index
    %c0_36 = arith.constant 0 : index
    %44 = vector.load %arg16[%c0_35, %c0_36] : memref<128x784xbf16, #tpu.memory_space<vmem>>, vector<128x784xbf16>
    %cst_37 = arith.constant dense<0.000000e+00> : vector<256x784xf32>
    %45 = tpu.matmul %43, %44, %cst_37 {dimension_numbers = #tpu.dot_dimension_numbers<[1], [0], [0], [1], [0, 0, 1, 1], [], []>} : vector<256x128xbf16>, vector<128x784xbf16>, vector<256x784xf32> -> vector<256x784xf32>
    %c0_38 = arith.constant 0 : index
    %c0_39 = arith.constant 0 : index
    %46 = vector.load %arg17[%c0_38, %c0_39] : memref<1x784xf32, #tpu.memory_space<vmem>>, vector<1x784xf32>
    %47 = vector.broadcast %46 : vector<1x784xf32> to vector<256x784xf32>
    %48 = arith.addf %45, %47 : vector<256x784xf32>
    %cst_40 = arith.constant 5.000000e-01 : f32
    %49 = vector.broadcast %cst_40 : f32 to vector<256x784xf32>
    %50 = arith.mulf %49, %48 : vector<256x784xf32>
    %51 = math.tanh %50 : vector<256x784xf32>
    %cst_41 = arith.constant 1.000000e+00 : f32
    %52 = vector.broadcast %cst_41 : f32 to vector<256x784xf32>
    %53 = arith.addf %52, %51 : vector<256x784xf32>
    %cst_42 = arith.constant 5.000000e-01 : f32
    %54 = vector.broadcast %cst_42 : f32 to vector<256x784xf32>
    %55 = arith.mulf %54, %53 : vector<256x784xf32>
    %c0_43 = arith.constant 0 : index
    %c0_44 = arith.constant 0 : index
    %56 = vector.load %arg18[%c0_43, %c0_44] : memref<256x3xf32, #tpu.memory_space<vmem>>, vector<256x3xf32>
    tpu.vector_store %arg18[%c0_43, %c0_44], %24 {strides = array<i32>} : memref<256x3xf32, #tpu.memory_space<vmem>>, vector<256x3xf32>,
    %c0_45 = arith.constant 0 : index
    %c0_46 = arith.constant 0 : index
    %57 = vector.load %arg19[%c0_45, %c0_46] : memref<256x784xf32, #tpu.memory_space<vmem>>, vector<256x784xf32>
    tpu.vector_store %arg19[%c0_45, %c0_46], %55 {strides = array<i32>} : memref<256x784xf32, #tpu.memory_space<vmem>>, vector<256x784xf32>,
    return
  }
  func.func @transform_0(%arg0: i32) -> (i32, i32) {
    %c0_i32 = arith.constant 0 : i32
    %c0_i32_0 = arith.constant 0 : i32
    return %arg0, %c0_i32 : i32, i32
  }
  func.func @transform_1(%arg0: i32) -> (i32, i32) {
    %c0_i32 = arith.constant 0 : i32
    %c0_i32_0 = arith.constant 0 : i32
    %c0_i32_1 = arith.constant 0 : i32
    return %c0_i32, %c0_i32_0 : i32, i32
  }
  func.func @transform_2(%arg0: i32) -> (i32, i32) {
    %c0_i32 = arith.constant 0 : i32
    %c0_i32_0 = arith.constant 0 : i32
    %c0_i32_1 = arith.constant 0 : i32
    return %c0_i32, %c0_i32_0 : i32, i32
  }
  func.func @transform_3(%arg0: i32) -> (i32, i32) {
    %c0_i32 = arith.constant 0 : i32
    %c0_i32_0 = arith.constant 0 : i32
    %c0_i32_1 = arith.constant 0 : i32
    return %c0_i32, %c0_i32_0 : i32, i32
  }
  func.func @transform_4(%arg0: i32) -> (i32, i32) {
    %c0_i32 = arith.constant 0 : i32
    %c0_i32_0 = arith.constant 0 : i32
    %c0_i32_1 = arith.constant 0 : i32
    return %c0_i32, %c0_i32_0 : i32, i32
  }
  func.func @transform_5(%arg0: i32) -> (i32, i32) {
    %c0_i32 = arith.constant 0 : i32
    %c0_i32_0 = arith.constant 0 : i32
    %c0_i32_1 = arith.constant 0 : i32
    return %c0_i32, %c0_i32_0 : i32, i32
  }
  func.func @transform_6(%arg0: i32) -> (i32, i32) {
    %c0_i32 = arith.constant 0 : i32
    %c0_i32_0 = arith.constant 0 : i32
    %c0_i32_1 = arith.constant 0 : i32
    return %c0_i32, %c0_i32_0 : i32, i32
  }
  func.func @transform_7(%arg0: i32) -> (i32, i32) {
    %c0_i32 = arith.constant 0 : i32
    %c0_i32_0 = arith.constant 0 : i32
    %c0_i32_1 = arith.constant 0 : i32
    return %c0_i32, %c0_i32_0 : i32, i32
  }
  func.func @transform_8(%arg0: i32) -> (i32, i32) {
    %c0_i32 = arith.constant 0 : i32
    %c0_i32_0 = arith.constant 0 : i32
    %c0_i32_1 = arith.constant 0 : i32
    return %c0_i32, %c0_i32_0 : i32, i32
  }
  func.func @transform_9(%arg0: i32) -> (i32, i32) {
    %c0_i32 = arith.constant 0 : i32
    %c0_i32_0 = arith.constant 0 : i32
    %c0_i32_1 = arith.constant 0 : i32
    return %c0_i32, %c0_i32_0 : i32, i32
  }
  func.func @transform_10(%arg0: i32) -> (i32, i32) {
    %c0_i32 = arith.constant 0 : i32
    %c0_i32_0 = arith.constant 0 : i32
    %c0_i32_1 = arith.constant 0 : i32
    return %c0_i32, %c0_i32_0 : i32, i32
  }
  func.func @transform_11(%arg0: i32) -> (i32, i32) {
    %c0_i32 = arith.constant 0 : i32
    %c0_i32_0 = arith.constant 0 : i32
    %c0_i32_1 = arith.constant 0 : i32
    return %c0_i32, %c0_i32_0 : i32, i32
  }
  func.func @transform_12(%arg0: i32) -> (i32, i32) {
    %c0_i32 = arith.constant 0 : i32
    %c0_i32_0 = arith.constant 0 : i32
    %c0_i32_1 = arith.constant 0 : i32
    return %c0_i32, %c0_i32_0 : i32, i32
  }
  func.func @transform_13(%arg0: i32) -> (i32, i32) {
    %c0_i32 = arith.constant 0 : i32
    %c0_i32_0 = arith.constant 0 : i32
    %c0_i32_1 = arith.constant 0 : i32
    return %c0_i32, %c0_i32_0 : i32, i32
  }
  func.func @transform_14(%arg0: i32) -> (i32, i32) {
    %c0_i32 = arith.constant 0 : i32
    %c0_i32_0 = arith.constant 0 : i32
    %c0_i32_1 = arith.constant 0 : i32
    return %c0_i32, %c0_i32_0 : i32, i32
  }
  func.func @transform_15(%arg0: i32) -> (i32, i32) {
    %c0_i32 = arith.constant 0 : i32
    %c0_i32_0 = arith.constant 0 : i32
    %c0_i32_1 = arith.constant 0 : i32
    return %c0_i32, %c0_i32_0 : i32, i32
  }
  func.func @transform_16(%arg0: i32) -> (i32, i32) {
    %c0_i32 = arith.constant 0 : i32
    %c0_i32_0 = arith.constant 0 : i32
    %c0_i32_1 = arith.constant 0 : i32
    return %c0_i32, %c0_i32_0 : i32, i32
  }
  func.func @transform_17(%arg0: i32) -> (i32, i32) {
    %c0_i32 = arith.constant 0 : i32
    %c0_i32_0 = arith.constant 0 : i32
    return %arg0, %c0_i32 : i32, i32
  }
  func.func @transform_18(%arg0: i32) -> (i32, i32) {
    %c0_i32 = arith.constant 0 : i32
    %c0_i32_0 = arith.constant 0 : i32
    return %arg0, %c0_i32 : i32, i32
  }
}

</mosaic_0001>

<llo_original>
// kernel: autoencode_forward.1
$region0: #{autoencode_forward.1}
  #allocation0 [shape = 'u32[]', space=smem, size = 0x4, offset = 0x4, fixed_abs, tag = 'smem constant byte address 0x4 - core index']
  #allocation1 [shape = 'u32[72,128]{1,0:T(1,128)}', space=vmem, size = 0x9000, scoped, tag = 'internal scratch']
  %s0 = inlined_call_operand.vmem [shape: f32[512,784], index: 0, kind: input, shape index: {}]
  %s1 = inlined_call_operand.vmem [shape: bf16[784,128], index: 1, kind: input, shape index: {}]
  %s2 = inlined_call_operand.vmem [shape: f32[1,128], index: 2, kind: input, shape index: {}]
  %s3 = inlined_call_operand.vmem [shape: f32[128,64], index: 3, kind: input, shape index: {}]
  %s4 = inlined_call_operand.vmem [shape: f32[1,64], index: 4, kind: input, shape index: {}]
  %s5 = inlined_call_operand.vmem [shape: f32[64,12], index: 5, kind: input, shape index: {}]
  %s6 = inlined_call_operand.vmem [shape: f32[1,12], index: 6, kind: input, shape index: {}]
  %s7 = inlined_call_operand.vmem [shape: f32[12,3], index: 7, kind: input, shape index: {}]
  %s8 = inlined_call_operand.vmem [shape: f32[1,3], index: 8, kind: input, shape index: {}]
  %s9 = inlined_call_operand.vmem [shape: f32[3,12], index: 9, kind: input, shape index: {}]
  %s10 = inlined_call_operand.vmem [shape: f32[1,12], index: 10, kind: input, shape index: {}]
  %s11 = inlined_call_operand.vmem [shape: f32[12,64], index: 11, kind: input, shape index: {}]
  %s12 = inlined_call_operand.vmem [shape: f32[1,64], index: 12, kind: input, shape index: {}]
  %s13 = inlined_call_operand.vmem [shape: f32[64,128], index: 13, kind: input, shape index: {}]
  %s14 = inlined_call_operand.vmem [shape: f32[1,128], index: 14, kind: input, shape index: {}]
  %s15 = inlined_call_operand.vmem [shape: bf16[128,784], index: 15, kind: input, shape index: {}]
  %s16 = inlined_call_operand.vmem [shape: f32[1,784], index: 16, kind: input, shape index: {}]
  %s17 = inlined_call_operand.vmem [shape: f32[512,3], index: 17, kind: output, shape index: {0}]
  %s18 = inlined_call_operand.vmem [shape: f32[512,784], index: 18, kind: output, shape index: {1}]
  %19 = xla_tuple %s17, %s18
  %s20 = sld [smem:[#allocation0]]
  $region109: #{autoencode_forward.1} parent=0
    _
  %s22 = ssub.s32 1, %s20
  %s23 = scalar_select 0, %s22, %s20
  loop: start=0, step=1, limit=4
  $region2: #{autoencode_forward.1} parent=0 // loop_pre_header
    _
  $region3: #{autoencode_forward.1} parent=0 // loop_header
    %s25 = sphi 0, %s29
    %p26 = scmp.ge.s32.totalorder %s25, 4
    %s35 = sphi 0, %s37
    %s38 = sphi 0, %s35
    %s39 = sphi 0, %s38
    %s55 = sphi 0, %s39
    %s59 = sphi 0, %s59
    %s61 = sphi 0, %s59
    %s62 = sphi 0, %s61
    %s76 = sphi 0, %s62
    %s80 = sphi 0, %s80
    %s82 = sphi 0, %s80
    %s83 = sphi 0, %s82
    %s97 = sphi 0, %s83
    %s101 = sphi 0, %s101
    %s103 = sphi 0, %s101
    %s104 = sphi 0, %s103
    %s118 = sphi 0, %s104
    %s122 = sphi 0, %s122
    %s124 = sphi 0, %s122
    %s125 = sphi 0, %s124
    %s139 = sphi 0, %s125
    %s143 = sphi 0, %s143
    %s145 = sphi 0, %s143
    %s146 = sphi 0, %s145
    %s160 = sphi 0, %s146
    %s164 = sphi 0, %s164
    %s166 = sphi 0, %s164
    %s167 = sphi 0, %s166
    %s181 = sphi 0, %s167
    %s185 = sphi 0, %s185
    %s187 = sphi 0, %s185
    %s188 = sphi 0, %s187
    %s202 = sphi 0, %s188
    %s206 = sphi 0, %s206
    %s208 = sphi 0, %s206
    %s209 = sphi 0, %s208
    %s223 = sphi 0, %s209
    %s227 = sphi 0, %s227
    %s229 = sphi 0, %s227
    %s230 = sphi 0, %s229
    %s244 = sphi 0, %s230
    %s248 = sphi 0, %s248
    %s250 = sphi 0, %s248
    %s251 = sphi 0, %s250
    %s265 = sphi 0, %s251
    %s269 = sphi 0, %s269
    %s271 = sphi 0, %s269
    %s272 = sphi 0, %s271
    %s286 = sphi 0, %s272
    %s290 = sphi 0, %s290
    %s292 = sphi 0, %s290
    %s293 = sphi 0, %s292
    %s307 = sphi 0, %s293
    %s311 = sphi 0, %s311
    %s313 = sphi 0, %s311
    %s314 = sphi 0, %s313
    %s328 = sphi 0, %s314
    %s332 = sphi 0, %s332
    %s334 = sphi 0, %s332
    %s335 = sphi 0, %s334
    %s349 = sphi 0, %s335
    %s353 = sphi 0, %s353
    %s355 = sphi 0, %s353
    %s356 = sphi 0, %s355
    %s370 = sphi 0, %s356
    %s374 = sphi 0, %s374
    %s376 = sphi 0, %s374
    %s377 = sphi 0, %s376
    %s391 = sphi 0, %s377
    %s397 = sphi 0, %s399
    %s400 = sphi 0, %s397
    %s401 = sphi 0, %s400
    %s417 = sphi 0, %s401
    %s423 = sphi 0, %s425
    %s426 = sphi 0, %s423
    %s427 = sphi 0, %s426
    %s443 = sphi 0, %s427
  $region4: #{autoencode_forward.1} parent=0 // loop_header_branch
    %28 = sbr.rel (%p26) target = $region8
  $region5: #{autoencode_forward.1} parent=0 // loop_body
    %s30 = ssub.s32 %s25, 1
    %s31 = ssub.s32 %s25, 2
    %s32 = sadd.s32 %s25, 1
    %s33 = ssub.s32 %s25, %s32
    %p34 = scmp.eq.s32.totalorder %s33, 0
    %s36 = sadd.s32 %s35, 1
    %s37 = scalar_select %p34, %s35, %s36
    %p40 = pneg %p34
    %p41 = scmp.eq.s32.totalorder %s25, 1
    %p42 = por %p40, %p41
    %p43 = scmp.ne.s32.totalorder %s35, %s38
    %p44 = scmp.eq.s32.totalorder %s25, 0
    %p45 = por %p43, %p44
    %p46 = scmp.ne.s32.totalorder %s35, %s38
    %p47 = scmp.eq.s32.totalorder %s30, 1
    %p48 = por %p46, %p47
    %p49 = scmp.ne.s32.totalorder %s38, %s39
    %p50 = scmp.eq.s32.totalorder %s30, 0
    %p51 = por %p49, %p50
    %p52 = scmp.ne.s32.totalorder %s38, %s39
    %p53 = scmp.eq.s32.totalorder %s31, 1
    %p54 = por %p52, %p53
    %p56 = scmp.ne.s32.totalorder %s39, %s55
    %p57 = scmp.eq.s32.totalorder %s31, 0
    %p58 = por %p56, %p57
    %s60 = sadd.s32 %s59, 1
    %p63 = scmp.eq.s32.totalorder %s25, 1
    %p64 = scmp.ne.s32.totalorder %s59, %s61
    %p65 = scmp.eq.s32.totalorder %s25, 0
    %p66 = por %p64, %p65
    %p67 = scmp.ne.s32.totalorder %s59, %s61
    %p68 = scmp.eq.s32.totalorder %s30, 1
    %p69 = por %p67, %p68
    %p70 = scmp.ne.s32.totalorder %s61, %s62
    %p71 = scmp.eq.s32.totalorder %s30, 0
    %p72 = por %p70, %p71
    %p73 = scmp.ne.s32.totalorder %s61, %s62
    %p74 = scmp.eq.s32.totalorder %s31, 1
    %p75 = por %p73, %p74
    %p77 = scmp.ne.s32.totalorder %s62, %s76
    %p78 = scmp.eq.s32.totalorder %s31, 0
    %p79 = por %p77, %p78
    %s81 = sadd.s32 %s80, 1
    %p84 = scmp.eq.s32.totalorder %s25, 1
    %p85 = scmp.ne.s32.totalorder %s80, %s82
    %p86 = scmp.eq.s32.totalorder %s25, 0
    %p87 = por %p85, %p86
    %p88 = scmp.ne.s32.totalorder %s80, %s82
    %p89 = scmp.eq.s32.totalorder %s30, 1
    %p90 = por %p88, %p89
    %p91 = scmp.ne.s32.totalorder %s82, %s83
    %p92 = scmp.eq.s32.totalorder %s30, 0
    %p93 = por %p91, %p92
    %p94 = scmp.ne.s32.totalorder %s82, %s83
    %p95 = scmp.eq.s32.totalorder %s31, 1
    %p96 = por %p94, %p95
    %p98 = scmp.ne.s32.totalorder %s83, %s97
    %p99 = scmp.eq.s32.totalorder %s31, 0
    %p100 = por %p98, %p99
    %s102 = sadd.s32 %s101, 1
    %p105 = scmp.eq.s32.totalorder %s25, 1
    %p106 = scmp.ne.s32.totalorder %s101, %s103
    %p107 = scmp.eq.s32.totalorder %s25, 0
    %p108 = por %p106, %p107
    %p109 = scmp.ne.s32.totalorder %s101, %s103
    %p110 = scmp.eq.s32.totalorder %s30, 1
    %p111 = por %p109, %p110
    %p112 = scmp.ne.s32.totalorder %s103, %s104
    %p113 = scmp.eq.s32.totalorder %s30, 0
    %p114 = por %p112, %p113
    %p115 = scmp.ne.s32.totalorder %s103, %s104
    %p116 = scmp.eq.s32.totalorder %s31, 1
    %p117 = por %p115, %p116
    %p119 = scmp.ne.s32.totalorder %s104, %s118
    %p120 = scmp.eq.s32.totalorder %s31, 0
    %p121 = por %p119, %p120
    %s123 = sadd.s32 %s122, 1
    %p126 = scmp.eq.s32.totalorder %s25, 1
    %p127 = scmp.ne.s32.totalorder %s122, %s124
    %p128 = scmp.eq.s32.totalorder %s25, 0
    %p129 = por %p127, %p128
    %p130 = scmp.ne.s32.totalorder %s122, %s124
    %p131 = scmp.eq.s32.totalorder %s30, 1
    %p132 = por %p130, %p131
    %p133 = scmp.ne.s32.totalorder %s124, %s125
    %p134 = scmp.eq.s32.totalorder %s30, 0
    %p135 = por %p133, %p134
    %p136 = scmp.ne.s32.totalorder %s124, %s125
    %p137 = scmp.eq.s32.totalorder %s31, 1
    %p138 = por %p136, %p137
    %p140 = scmp.ne.s32.totalorder %s125, %s139
    %p141 = scmp.eq.s32.totalorder %s31, 0
    %p142 = por %p140, %p141
    %s144 = sadd.s32 %s143, 1
    %p147 = scmp.eq.s32.totalorder %s25, 1
    %p148 = scmp.ne.s32.totalorder %s143, %s145
    %p149 = scmp.eq.s32.totalorder %s25, 0
    %p150 = por %p148, %p149
    %p151 = scmp.ne.s32.totalorder %s143, %s145
    %p152 = scmp.eq.s32.totalorder %s30, 1
    %p153 = por %p151, %p152
    %p154 = scmp.ne.s32.totalorder %s145, %s146
    %p155 = scmp.eq.s32.totalorder %s30, 0
    %p156 = por %p154, %p155
    %p157 = scmp.ne.s32.totalorder %s145, %s146
    %p158 = scmp.eq.s32.totalorder %s31, 1
    %p159 = por %p157, %p158
    %p161 = scmp.ne.s32.totalorder %s146, %s160
    %p162 = scmp.eq.s32.totalorder %s31, 0
    %p163 = por %p161, %p162
    %s165 = sadd.s32 %s164, 1
    %p168 = scmp.eq.s32.totalorder %s25, 1
    %p169 = scmp.ne.s32.totalorder %s164, %s166
    %p170 = scmp.eq.s32.totalorder %s25, 0
    %p171 = por %p169, %p170
    %p172 = scmp.ne.s32.totalorder %s164, %s166
    %p173 = scmp.eq.s32.totalorder %s30, 1
    %p174 = por %p172, %p173
    %p175 = scmp.ne.s32.totalorder %s166, %s167
    %p176 = scmp.eq.s32.totalorder %s30, 0
    %p177 = por %p175, %p176
    %p178 = scmp.ne.s32.totalorder %s166, %s167
    %p179 = scmp.eq.s32.totalorder %s31, 1
    %p180 = por %p178, %p179
    %p182 = scmp.ne.s32.totalorder %s167, %s181
    %p183 = scmp.eq.s32.totalorder %s31, 0
    %p184 = por %p182, %p183
    %s186 = sadd.s32 %s185, 1
    %p189 = scmp.eq.s32.totalorder %s25, 1
    %p190 = scmp.ne.s32.totalorder %s185, %s187
    %p191 = scmp.eq.s32.totalorder %s25, 0
    %p192 = por %p190, %p191
    %p193 = scmp.ne.s32.totalorder %s185, %s187
    %p194 = scmp.eq.s32.totalorder %s30, 1
    %p195 = por %p193, %p194
    %p196 = scmp.ne.s32.totalorder %s187, %s188
    %p197 = scmp.eq.s32.totalorder %s30, 0
    %p198 = por %p196, %p197
    %p199 = scmp.ne.s32.totalorder %s187, %s188
    %p200 = scmp.eq.s32.totalorder %s31, 1
    %p201 = por %p199, %p200
    %p203 = scmp.ne.s32.totalorder %s188, %s202
    %p204 = scmp.eq.s32.totalorder %s31, 0
    %p205 = por %p203, %p204
    %s207 = sadd.s32 %s206, 1
    %p210 = scmp.eq.s32.totalorder %s25, 1
    %p211 = scmp.ne.s32.totalorder %s206, %s208
    %p212 = scmp.eq.s32.totalorder %s25, 0
    %p213 = por %p211, %p212
    %p214 = scmp.ne.s32.totalorder %s206, %s208
    %p215 = scmp.eq.s32.totalorder %s30, 1
    %p216 = por %p214, %p215
    %p217 = scmp.ne.s32.totalorder %s208, %s209
    %p218 = scmp.eq.s32.totalorder %s30, 0
    %p219 = por %p217, %p218
    %p220 = scmp.ne.s32.totalorder %s208, %s209
    %p221 = scmp.eq.s32.totalorder %s31, 1
    %p222 = por %p220, %p221
    %p224 = scmp.ne.s32.totalorder %s209, %s223
    %p225 = scmp.eq.s32.totalorder %s31, 0
    %p226 = por %p224, %p225
    %s228 = sadd.s32 %s227, 1
    %p231 = scmp.eq.s32.totalorder %s25, 1
    %p232 = scmp.ne.s32.totalorder %s227, %s229
    %p233 = scmp.eq.s32.totalorder %s25, 0
    %p234 = por %p232, %p233
    %p235 = scmp.ne.s32.totalorder %s227, %s229
    %p236 = scmp.eq.s32.totalorder %s30, 1
    %p237 = por %p235, %p236
    %p238 = scmp.ne.s32.totalorder %s229, %s230
    %p239 = scmp.eq.s32.totalorder %s30, 0
    %p240 = por %p238, %p239
    %p241 = scmp.ne.s32.totalorder %s229, %s230
    %p242 = scmp.eq.s32.totalorder %s31, 1
    %p243 = por %p241, %p242
    %p245 = scmp.ne.s32.totalorder %s230, %s244
    %p246 = scmp.eq.s32.totalorder %s31, 0
    %p247 = por %p245, %p246
    %s249 = sadd.s32 %s248, 1
    %p252 = scmp.eq.s32.totalorder %s25, 1
    %p253 = scmp.ne.s32.totalorder %s248, %s250
    %p254 = scmp.eq.s32.totalorder %s25, 0
    %p255 = por %p253, %p254
    %p256 = scmp.ne.s32.totalorder %s248, %s250
    %p257 = scmp.eq.s32.totalorder %s30, 1
    %p258 = por %p256, %p257
    %p259 = scmp.ne.s32.totalorder %s250, %s251
    %p260 = scmp.eq.s32.totalorder %s30, 0
    %p261 = por %p259, %p260
    %p262 = scmp.ne.s32.totalorder %s250, %s251
    %p263 = scmp.eq.s32.totalorder %s31, 1
    %p264 = por %p262, %p263
    %p266 = scmp.ne.s32.totalorder %s251, %s265
    %p267 = scmp.eq.s32.totalorder %s31, 0
    %p268 = por %p266, %p267
    %s270 = sadd.s32 %s269, 1
    %p273 = scmp.eq.s32.totalorder %s25, 1
    %p274 = scmp.ne.s32.totalorder %s269, %s271
    %p275 = scmp.eq.s32.totalorder %s25, 0
    %p276 = por %p274, %p275
    %p277 = scmp.ne.s32.totalorder %s269, %s271
    %p278 = scmp.eq.s32.totalorder %s30, 1
    %p279 = por %p277, %p278
    %p280 = scmp.ne.s32.totalorder %s271, %s272
    %p281 = scmp.eq.s32.totalorder %s30, 0
    %p282 = por %p280, %p281
    %p283 = scmp.ne.s32.totalorder %s271, %s272
    %p284 = scmp.eq.s32.totalorder %s31, 1
    %p285 = por %p283, %p284
    %p287 = scmp.ne.s32.totalorder %s272, %s286
    %p288 = scmp.eq.s32.totalorder %s31, 0
    %p289 = por %p287, %p288
    %s291 = sadd.s32 %s290, 1
    %p294 = scmp.eq.s32.totalorder %s25, 1
    %p295 = scmp.ne.s32.totalorder %s290, %s292
    %p296 = scmp.eq.s32.totalorder %s25, 0
    %p297 = por %p295, %p296
    %p298 = scmp.ne.s32.totalorder %s290, %s292
    %p299 = scmp.eq.s32.totalorder %s30, 1
    %p300 = por %p298, %p299
    %p301 = scmp.ne.s32.totalorder %s292, %s293
    %p302 = scmp.eq.s32.totalorder %s30, 0
    %p303 = por %p301, %p302
    %p304 = scmp.ne.s32.totalorder %s292, %s293
    %p305 = scmp.eq.s32.totalorder %s31, 1
    %p306 = por %p304, %p305
    %p308 = scmp.ne.s32.totalorder %s293, %s307
    %p309 = scmp.eq.s32.totalorder %s31, 0
    %p310 = por %p308, %p309
    %s312 = sadd.s32 %s311, 1
    %p315 = scmp.eq.s32.totalorder %s25, 1
    %p316 = scmp.ne.s32.totalorder %s311, %s313
    %p317 = scmp.eq.s32.totalorder %s25, 0
    %p318 = por %p316, %p317
    %p319 = scmp.ne.s32.totalorder %s311, %s313
    %p320 = scmp.eq.s32.totalorder %s30, 1
    %p321 = por %p319, %p320
    %p322 = scmp.ne.s32.totalorder %s313, %s314
    %p323 = scmp.eq.s32.totalorder %s30, 0
    %p324 = por %p322, %p323
    %p325 = scmp.ne.s32.totalorder %s313, %s314
    %p326 = scmp.eq.s32.totalorder %s31, 1
    %p327 = por %p325, %p326
    %p329 = scmp.ne.s32.totalorder %s314, %s328
    %p330 = scmp.eq.s32.totalorder %s31, 0
    %p331 = por %p329, %p330
    %s333 = sadd.s32 %s332, 1
    %p336 = scmp.eq.s32.totalorder %s25, 1
    %p337 = scmp.ne.s32.totalorder %s332, %s334
    %p338 = scmp.eq.s32.totalorder %s25, 0
    %p339 = por %p337, %p338
    %p340 = scmp.ne.s32.totalorder %s332, %s334
    %p341 = scmp.eq.s32.totalorder %s30, 1
    %p342 = por %p340, %p341
    %p343 = scmp.ne.s32.totalorder %s334, %s335
    %p344 = scmp.eq.s32.totalorder %s30, 0
    %p345 = por %p343, %p344
    %p346 = scmp.ne.s32.totalorder %s334, %s335
    %p347 = scmp.eq.s32.totalorder %s31, 1
    %p348 = por %p346, %p347
    %p350 = scmp.ne.s32.totalorder %s335, %s349
    %p351 = scmp.eq.s32.totalorder %s31, 0
    %p352 = por %p350, %p351
    %s354 = sadd.s32 %s353, 1
    %p357 = scmp.eq.s32.totalorder %s25, 1
    %p358 = scmp.ne.s32.totalorder %s353, %s355
    %p359 = scmp.eq.s32.totalorder %s25, 0
    %p360 = por %p358, %p359
    %p361 = scmp.ne.s32.totalorder %s353, %s355
    %p362 = scmp.eq.s32.totalorder %s30, 1
    %p363 = por %p361, %p362
    %p364 = scmp.ne.s32.totalorder %s355, %s356
    %p365 = scmp.eq.s32.totalorder %s30, 0
    %p366 = por %p364, %p365
    %p367 = scmp.ne.s32.totalorder %s355, %s356
    %p368 = scmp.eq.s32.totalorder %s31, 1
    %p369 = por %p367, %p368
    %p371 = scmp.ne.s32.totalorder %s356, %s370
    %p372 = scmp.eq.s32.totalorder %s31, 0
    %p373 = por %p371, %p372
    %s375 = sadd.s32 %s374, 1
    %p378 = scmp.eq.s32.totalorder %s25, 1
    %p379 = scmp.ne.s32.totalorder %s374, %s376
    %p380 = scmp.eq.s32.totalorder %s25, 0
    %p381 = por %p379, %p380
    %p382 = scmp.ne.s32.totalorder %s374, %s376
    %p383 = scmp.eq.s32.totalorder %s30, 1
    %p384 = por %p382, %p383
    %p385 = scmp.ne.s32.totalorder %s376, %s377
    %p386 = scmp.eq.s32.totalorder %s30, 0
    %p387 = por %p385, %p386
    %p388 = scmp.ne.s32.totalorder %s376, %s377
    %p389 = scmp.eq.s32.totalorder %s31, 1
    %p390 = por %p388, %p389
    %p392 = scmp.ne.s32.totalorder %s377, %s391
    %p393 = scmp.eq.s32.totalorder %s31, 0
    %p394 = por %p392, %p393
    %s395 = ssub.s32 %s25, %s32
    %p396 = scmp.eq.s32.totalorder %s395, 0
    %s398 = sadd.s32 %s397, 1
    %s399 = scalar_select %p396, %s397, %s398
    %p402 = pneg %p396
    %p403 = scmp.eq.s32.totalorder %s25, 1
    %p404 = por %p402, %p403
    %p405 = scmp.ne.s32.totalorder %s397, %s400
    %p406 = scmp.eq.s32.totalorder %s25, 0
    %p407 = por %p405, %p406
    %p408 = scmp.ne.s32.totalorder %s397, %s400
    %p409 = scmp.eq.s32.totalorder %s30, 1
    %p410 = por %p408, %p409
    %p411 = scmp.ne.s32.totalorder %s400, %s401
    %p412 = scmp.eq.s32.totalorder %s30, 0
    %p413 = por %p411, %p412
    %p414 = scmp.ne.s32.totalorder %s400, %s401
    %p415 = scmp.eq.s32.totalorder %s31, 1
    %p416 = por %p414, %p415
    %p418 = scmp.ne.s32.totalorder %s401, %s417
    %p419 = scmp.eq.s32.totalorder %s31, 0
    %p420 = por %p418, %p419
    %s421 = ssub.s32 %s25, %s32
    %p422 = scmp.eq.s32.totalorder %s421, 0
    %s424 = sadd.s32 %s423, 1
    %s425 = scalar_select %p422, %s423, %s424
    %p428 = pneg %p422
    %p429 = scmp.eq.s32.totalorder %s25, 1
    %p430 = por %p428, %p429
    %p431 = scmp.ne.s32.totalorder %s423, %s426
    %p432 = scmp.eq.s32.totalorder %s25, 0
    %p433 = por %p431, %p432
    %p434 = scmp.ne.s32.totalorder %s423, %s426
    %p435 = scmp.eq.s32.totalorder %s30, 1
    %p436 = por %p434, %p435
    %p437 = scmp.ne.s32.totalorder %s426, %s427
    %p438 = scmp.eq.s32.totalorder %s30, 0
    %p439 = por %p437, %p438
    %p440 = scmp.ne.s32.totalorder %s426, %s427
    %p441 = scmp.eq.s32.totalorder %s31, 1
    %p442 = por %p440, %p441
    %p444 = scmp.ne.s32.totalorder %s427, %s443
    %p445 = scmp.eq.s32.totalorder %s31, 0
    %p446 = por %p444, %p445
    %p447 = scmp.le.s32.totalorder 1, %s25
    %p448 = scmp.lt.s32.totalorder %s25, 3
    %p449 = pnand %p447, %p448
    %p450 = pneg %p449
    // Predicated region
    $region9: #{autoencode_forward.1} parent=5 // pred_check
      _
    $region10: #{autoencode_forward.1} parent=5 // pred_check_branch
      %452 = sbr.rel (%p449) target = $region12
    $region11: #{autoencode_forward.1} parent=5 // pred_region
      %s453 = ssub.s32 %s25, 1
      // Predicated region
      $region13: #{autoencode_forward.1} parent=11 // pred_check
        %p454 = pneg %p72
      $region14: #{autoencode_forward.1} parent=11 // pred_check_branch
        %456 = sbr.rel (%p454) target = $region16
      $region15: #{autoencode_forward.1} parent=11 // pred_region
        _
      $region16: #{autoencode_forward.1} parent=11 // pred_fallthru
        _
      // Predicated region
      $region17: #{autoencode_forward.1} parent=11 // pred_check
        %p457 = pneg %p93
      $region18: #{autoencode_forward.1} parent=11 // pred_check_branch
        %459 = sbr.rel (%p457) target = $region20
      $region19: #{autoencode_forward.1} parent=11 // pred_region
        _
      $region20: #{autoencode_forward.1} parent=11 // pred_fallthru
        _
      // Predicated region
      $region21: #{autoencode_forward.1} parent=11 // pred_check
        %p460 = pneg %p114
      $region22: #{autoencode_forward.1} parent=11 // pred_check_branch
        %462 = sbr.rel (%p460) target = $region24
      $region23: #{autoencode_forward.1} parent=11 // pred_region
        _
      $region24: #{autoencode_forward.1} parent=11 // pred_fallthru
        _
      // Predicated region
      $region25: #{autoencode_forward.1} parent=11 // pred_check
        %p463 = pneg %p135
      $region26: #{autoencode_forward.1} parent=11 // pred_check_branch
        %465 = sbr.rel (%p463) target = $region28
      $region27: #{autoencode_forward.1} parent=11 // pred_region
        _
      $region28: #{autoencode_forward.1} parent=11 // pred_fallthru
        _
      // Predicated region
      $region29: #{autoencode_forward.1} parent=11 // pred_check
        %p466 = pneg %p156
      $region30: #{autoencode_forward.1} parent=11 // pred_check_branch
        %468 = sbr.rel (%p466) target = $region32
      $region31: #{autoencode_forward.1} parent=11 // pred_region
        _
      $region32: #{autoencode_forward.1} parent=11 // pred_fallthru
        _
      // Predicated region
      $region33: #{autoencode_forward.1} parent=11 // pred_check
        %p469 = pneg %p177
      $region34: #{autoencode_forward.1} parent=11 // pred_check_branch
        %471 = sbr.rel (%p469) target = $region36
      $region35: #{autoencode_forward.1} parent=11 // pred_region
        _
      $region36: #{autoencode_forward.1} parent=11 // pred_fallthru
        _
      // Predicated region
      $region37: #{autoencode_forward.1} parent=11 // pred_check
        %p472 = pneg %p198
      $region38: #{autoencode_forward.1} parent=11 // pred_check_branch
        %474 = sbr.rel (%p472) target = $region40
      $region39: #{autoencode_forward.1} parent=11 // pred_region
        _
      $region40: #{autoencode_forward.1} parent=11 // pred_fallthru
        _
      // Predicated region
      $region41: #{autoencode_forward.1} parent=11 // pred_check
        %p475 = pneg %p219
      $region42: #{autoencode_forward.1} parent=11 // pred_check_branch
        %477 = sbr.rel (%p475) target = $region44
      $region43: #{autoencode_forward.1} parent=11 // pred_region
        _
      $region44: #{autoencode_forward.1} parent=11 // pred_fallthru
        _
      // Predicated region
      $region45: #{autoencode_forward.1} parent=11 // pred_check
        %p478 = pneg %p240
      $region46: #{autoencode_forward.1} parent=11 // pred_check_branch
        %480 = sbr.rel (%p478) target = $region48
      $region47: #{autoencode_forward.1} parent=11 // pred_region
        _
      $region48: #{autoencode_forward.1} parent=11 // pred_fallthru
        _
      // Predicated region
      $region49: #{autoencode_forward.1} parent=11 // pred_check
        %p481 = pneg %p261
      $region50: #{autoencode_forward.1} parent=11 // pred_check_branch
        %483 = sbr.rel (%p481) target = $region52
      $region51: #{autoencode_forward.1} parent=11 // pred_region
        _
      $region52: #{autoencode_forward.1} parent=11 // pred_fallthru
        _
      // Predicated region
      $region53: #{autoencode_forward.1} parent=11 // pred_check
        %p484 = pneg %p282
      $region54: #{autoencode_forward.1} parent=11 // pred_check_branch
        %486 = sbr.rel (%p484) target = $region56
      $region55: #{autoencode_forward.1} parent=11 // pred_region
        _
      $region56: #{autoencode_forward.1} parent=11 // pred_fallthru
        _
      // Predicated region
      $region57: #{autoencode_forward.1} parent=11 // pred_check
        %p487 = pneg %p303
      $region58: #{autoencode_forward.1} parent=11 // pred_check_branch
        %489 = sbr.rel (%p487) target = $region60
      $region59: #{autoencode_forward.1} parent=11 // pred_region
        _
      $region60: #{autoencode_forward.1} parent=11 // pred_fallthru
        _
      // Predicated region
      $region61: #{autoencode_forward.1} parent=11 // pred_check
        %p490 = pneg %p324
      $region62: #{autoencode_forward.1} parent=11 // pred_check_branch
        %492 = sbr.rel (%p490) target = $region64
      $region63: #{autoencode_forward.1} parent=11 // pred_region
        _
      $region64: #{autoencode_forward.1} parent=11 // pred_fallthru
        _
      // Predicated region
      $region65: #{autoencode_forward.1} parent=11 // pred_check
        %p493 = pneg %p345
      $region66: #{autoencode_forward.1} parent=11 // pred_check_branch
        %495 = sbr.rel (%p493) target = $region68
      $region67: #{autoencode_forward.1} parent=11 // pred_region
        _
      $region68: #{autoencode_forward.1} parent=11 // pred_fallthru
        _
      // Predicated region
      $region69: #{autoencode_forward.1} parent=11 // pred_check
        %p496 = pneg %p366
      $region70: #{autoencode_forward.1} parent=11 // pred_check_branch
        %498 = sbr.rel (%p496) target = $region72
      $region71: #{autoencode_forward.1} parent=11 // pred_region
        _
      $region72: #{autoencode_forward.1} parent=11 // pred_fallthru
        _
      // Predicated region
      $region73: #{autoencode_forward.1} parent=11 // pred_check
        %p499 = pneg %p387
      $region74: #{autoencode_forward.1} parent=11 // pred_check_branch
        %501 = sbr.rel (%p499) target = $region76
      $region75: #{autoencode_forward.1} parent=11 // pred_region
        _
      $region76: #{autoencode_forward.1} parent=11 // pred_fallthru
        _
    $region12: #{autoencode_forward.1} parent=5 // pred_fallthru
      _
    %p502 = scmp.lt.s32.totalorder %s25, 2
    // Predicated region
    $region77: #{autoencode_forward.1} parent=5 // pred_check
      %p503 = pneg %p502
    $region78: #{autoencode_forward.1} parent=5 // pred_check_branch
      %505 = sbr.rel (%p503) target = $region80
    $region79: #{autoencode_forward.1} parent=5 // pred_region
      // Predicated region
      $region81: #{autoencode_forward.1} parent=79 // pred_check
        %p506 = pneg %p45
      $region82: #{autoencode_forward.1} parent=79 // pred_check_branch
        %508 = sbr.rel (%p506) target = $region84
      $region83: #{autoencode_forward.1} parent=79 // pred_region
        %s509 = smul.u32 32, %s25
        %p510 = scmp.lt.s32.totalorder %s509, 63
        %s511 = scalar_select %p510, %s509, 63
        %s512 = smul.addr %s511, 7
        %s513 = smul.addr %s512, 8
        %s514 = scalar_lea.vmem %s0, %s513
        %s515 = smul.u32 32, %s25
      $region84: #{autoencode_forward.1} parent=79 // pred_fallthru
        _
    $region80: #{autoencode_forward.1} parent=5 // pred_fallthru
      _
    %p516 = scmp.le.s32.totalorder 1, %s25
    %p517 = scmp.lt.s32.totalorder %s25, 3
    %p518 = pnand %p516, %p517
    %p519 = pneg %p518
    // Predicated region
    $region85: #{autoencode_forward.1} parent=5 // pred_check
      _
    $region86: #{autoencode_forward.1} parent=5 // pred_check_branch
      %521 = sbr.rel (%p518) target = $region88
    $region87: #{autoencode_forward.1} parent=5 // pred_region
      %s522 = ssub.s32 %s25, 1
      %s523 = smul.u32 32, %s30
      %p524 = scmp.lt.s32.totalorder %s523, 63
      %s525 = scalar_select %p524, %s523, 63
      %s526 = smul.addr %s525, 7
      %s527 = smul.addr %s526, 8
      %s528 = scalar_lea.vmem %s0, %s527
      %p529 = pneg %p51
      %p530 = pneg %p48
      %p531 = pneg %p72
      %p532 = pneg %p69
      %p533 = pneg %p93
      %p534 = pneg %p90
      %p535 = pneg %p114
      %p536 = pneg %p111
      %p537 = pneg %p135
      %p538 = pneg %p132
      %p539 = pneg %p156
      %p540 = pneg %p153
      %p541 = pneg %p177
      %p542 = pneg %p174
      %p543 = pneg %p198
      %p544 = pneg %p195
      %p545 = pneg %p219
      %p546 = pneg %p216
      %p547 = pneg %p240
      %p548 = pneg %p237
      %p549 = pneg %p261
      %p550 = pneg %p258
      %p551 = pneg %p282
      %p552 = pneg %p279
      %p553 = pneg %p303
      %p554 = pneg %p300
      %p555 = pneg %p324
      %p556 = pneg %p321
      %p557 = pneg %p345
      %p558 = pneg %p342
      %p559 = pneg %p366
      %p560 = pneg %p363
      %p561 = pneg %p387
      %p562 = pneg %p384
      %p563 = pneg %p413
      %p564 = pneg %p410
      %s565 = smul.u32 32, %s30
      %p566 = scmp.lt.s32.totalorder %s565, 63
      %s567 = scalar_select %p566, %s565, 63
      %s568 = smul.addr %s567, 8
      %s569 = scalar_lea.vmem %s17, %s568
      %p570 = pneg %p439
      %p571 = pneg %p436
      %s572 = smul.u32 32, %s30
      %p573 = scmp.lt.s32.totalorder %s572, 63
      %s574 = scalar_select %p573, %s572, 63
      %s575 = smul.addr %s574, 7
      %s576 = smul.addr %s575, 8
      %s577 = scalar_lea.vmem %s18, %s576
      %s578 = smul.u32 32, %s30
      %p579 = scmp.lt.s32.totalorder %s578, 63
      %s580 = scalar_select %p579, %s578, 63
      %s581 = smul.addr %s580, 7
      %s582 = smul.addr %s581, 8
      %s583 = scalar_lea.vmem %s0, %s582
      %s584 = smul.u32 32, %s30
      %s585 = smul.u32 32, %s30
      %p586 = scmp.lt.s32.totalorder %s585, 63
      %s587 = scalar_select %p586, %s585, 63
      %s588 = smul.addr %s587, 8
      %s589 = scalar_lea.vmem %s17, %s588
      %s590 = smul.u32 32, %s30
      %s591 = smul.u32 32, %s30
      %p592 = scmp.lt.s32.totalorder %s591, 63
      %s593 = scalar_select %p592, %s591, 63
      %s594 = smul.addr %s593, 7
      %s595 = smul.addr %s594, 8
      %s596 = scalar_lea.vmem %s18, %s595
      %s597 = smul.u32 32, %s30
      %v599 = vld [vmem:[%s583] sm:$0xff]
      %v600 = vld [vmem:[%s583 + $0x8] sm:$0xff]
      %v601 = vld [vmem:[%s583 + $0x10] sm:$0xff]
      %v602 = vld [vmem:[%s583 + $0x18] sm:$0xff]
      %v603 = vld [vmem:[%s583 + $0x20] sm:$0xff]
      %v604 = vld [vmem:[%s583 + $0x28] sm:$0xff]
      %v605 = vld [vmem:[%s583 + $0x30] sm:$0xff]
      %v606 = vld [vmem:[%s583 + $0x38] sm:$0xff]
      %v607 = vld [vmem:[%s583 + $0x40] sm:$0xff]
      %v608 = vld [vmem:[%s583 + $0x48] sm:$0xff]
      %v609 = vld [vmem:[%s583 + $0x50] sm:$0xff]
      %v610 = vld [vmem:[%s583 + $0x58] sm:$0xff]
      %v611 = vld [vmem:[%s583 + $0x60] sm:$0xff]
      %v612 = vld [vmem:[%s583 + $0x68] sm:$0xff]
      %v613 = vld [vmem:[%s583 + $0x70] sm:$0xff]
      %v614 = vld [vmem:[%s583 + $0x78] sm:$0xff]
      %v615 = vld [vmem:[%s583 + $0x80] sm:$0xff]
      %v616 = vld [vmem:[%s583 + $0x88] sm:$0xff]
      %v617 = vld [vmem:[%s583 + $0x90] sm:$0xff]
      %v618 = vld [vmem:[%s583 + $0x98] sm:$0xff]
      %v619 = vld [vmem:[%s583 + $0xa0] sm:$0xff]
      %v620 = vld [vmem:[%s583 + $0xa8] sm:$0xff]
      %v621 = vld [vmem:[%s583 + $0xb0] sm:$0xff]
      %v622 = vld [vmem:[%s583 + $0xb8] sm:$0xff]
      %v623 = vld [vmem:[%s583 + $0xc0] sm:$0xff]
      %v624 = vld [vmem:[%s583 + $0xc8] sm:$0xff]
      %v625 = vld [vmem:[%s583 + $0xd0] sm:$0xff]
      %v626 = vld [vmem:[%s583 + $0xd8] sm:$0xff]
      %v627 = vld [vmem:[%s583 + $0xe0] sm:$0xff]
      %v628 = vld [vmem:[%s583 + $0xe8] sm:$0xff]
      %v629 = vld [vmem:[%s583 + $0xf0] sm:$0xff]
      %v630 = vld [vmem:[%s583 + $0xf8] sm:$0xff]
      %v631 = vld [vmem:[%s583 + $0x100] sm:$0xff]
      %v632 = vld [vmem:[%s583 + $0x108] sm:$0xff]
      %v633 = vld [vmem:[%s583 + $0x110] sm:$0xff]
      %v634 = vld [vmem:[%s583 + $0x118] sm:$0xff]
      %v635 = vld [vmem:[%s583 + $0x120] sm:$0xff]
      %v636 = vld [vmem:[%s583 + $0x128] sm:$0xff]
      %v637 = vld [vmem:[%s583 + $0x130] sm:$0xff]
      %v638 = vld [vmem:[%s583 + $0x138] sm:$0xff]
      %v639 = vld [vmem:[%s583 + $0x140] sm:$0xff]
      %v640 = vld [vmem:[%s583 + $0x148] sm:$0xff]
      %v641 = vld [vmem:[%s583 + $0x150] sm:$0xff]
      %v642 = vld [vmem:[%s583 + $0x158] sm:$0xff]
      %v643 = vld [vmem:[%s583 + $0x160] sm:$0xff]
      %v644 = vld [vmem:[%s583 + $0x168] sm:$0xff]
      %v645 = vld [vmem:[%s583 + $0x170] sm:$0xff]
      %v646 = vld [vmem:[%s583 + $0x178] sm:$0xff]
      %v647 = vld [vmem:[%s583 + $0x180] sm:$0xff]
      %v648 = vld [vmem:[%s583 + $0x188] sm:$0xff]
      %v649 = vld [vmem:[%s583 + $0x190] sm:$0xff]
      %v650 = vld [vmem:[%s583 + $0x198] sm:$0xff]
      %v651 = vld [vmem:[%s583 + $0x1a0] sm:$0xff]
      %v652 = vld [vmem:[%s583 + $0x1a8] sm:$0xff]
      %v653 = vld [vmem:[%s583 + $0x1b0] sm:$0xff]
      %v654 = vld [vmem:[%s583 + $0x1b8] sm:$0xff]
      %v655 = vld [vmem:[%s583 + $0x1c0] sm:$0xff]
      %v656 = vld [vmem:[%s583 + $0x1c8] sm:$0xff]
      %v657 = vld [vmem:[%s583 + $0x1d0] sm:$0xff]
      %v658 = vld [vmem:[%s583 + $0x1d8] sm:$0xff]
      %v659 = vld [vmem:[%s583 + $0x1e0] sm:$0xff]
      %v660 = vld [vmem:[%s583 + $0x1e8] sm:$0xff]
      %v661 = vld [vmem:[%s583 + $0x1f0] sm:$0xff]
      %v662 = vld [vmem:[%s583 + $0x1f8] sm:$0xff]
      %v663 = vld [vmem:[%s583 + $0x200] sm:$0xff]
      %v664 = vld [vmem:[%s583 + $0x208] sm:$0xff]
      %v665 = vld [vmem:[%s583 + $0x210] sm:$0xff]
      %v666 = vld [vmem:[%s583 + $0x218] sm:$0xff]
      %v667 = vld [vmem:[%s583 + $0x220] sm:$0xff]
      %v668 = vld [vmem:[%s583 + $0x228] sm:$0xff]
      %v669 = vld [vmem:[%s583 + $0x230] sm:$0xff]
      %v670 = vld [vmem:[%s583 + $0x238] sm:$0xff]
      %v671 = vld [vmem:[%s583 + $0x240] sm:$0xff]
      %v672 = vld [vmem:[%s583 + $0x248] sm:$0xff]
      %v673 = vld [vmem:[%s583 + $0x250] sm:$0xff]
      %v674 = vld [vmem:[%s583 + $0x258] sm:$0xff]
      %v675 = vld [vmem:[%s583 + $0x260] sm:$0xff]
      %v676 = vld [vmem:[%s583 + $0x268] sm:$0xff]
      %v677 = vld [vmem:[%s583 + $0x270] sm:$0xff]
      %v678 = vld [vmem:[%s583 + $0x278] sm:$0xff]
      %v679 = vld [vmem:[%s583 + $0x280] sm:$0xff]
      %v680 = vld [vmem:[%s583 + $0x288] sm:$0xff]
      %v681 = vld [vmem:[%s583 + $0x290] sm:$0xff]
      %v682 = vld [vmem:[%s583 + $0x298] sm:$0xff]
      %v683 = vld [vmem:[%s583 + $0x2a0] sm:$0xff]
      %v684 = vld [vmem:[%s583 + $0x2a8] sm:$0xff]
      %v685 = vld [vmem:[%s583 + $0x2b0] sm:$0xff]
      %v686 = vld [vmem:[%s583 + $0x2b8] sm:$0xff]
      %v687 = vld [vmem:[%s583 + $0x2c0] sm:$0xff]
      %v688 = vld [vmem:[%s583 + $0x2c8] sm:$0xff]
      %v689 = vld [vmem:[%s583 + $0x2d0] sm:$0xff]
      %v690 = vld [vmem:[%s583 + $0x2d8] sm:$0xff]
      %v691 = vld [vmem:[%s583 + $0x2e0] sm:$0xff]
      %v692 = vld [vmem:[%s583 + $0x2e8] sm:$0xff]
      %v693 = vld [vmem:[%s583 + $0x2f0] sm:$0xff]
      %v694 = vld [vmem:[%s583 + $0x2f8] sm:$0xff]
      %v695 = vld [vmem:[%s583 + $0x300] sm:$0xff]
      %v696 = vld [vmem:[%s583 + $0x308] sm:$0xff]
      %v697 = vld [vmem:[%s583 + $0x310] sm:$0xff]
      %v698 = vld [vmem:[%s583 + $0x318] sm:$0xff]
      %v699 = vld [vmem:[%s583 + $0x320] sm:$0xff]
      %v700 = vld [vmem:[%s583 + $0x328] sm:$0xff]
      %v701 = vld [vmem:[%s583 + $0x330] sm:$0xff]
      %v702 = vld [vmem:[%s583 + $0x338] sm:$0xff]
      %v703 = vld [vmem:[%s583 + $0x340] sm:$0xff]
      %v704 = vld [vmem:[%s583 + $0x348] sm:$0xff]
      %v705 = vld [vmem:[%s583 + $0x350] sm:$0xff]
      %v706 = vld [vmem:[%s583 + $0x358] sm:$0xff]
      %v707 = vld [vmem:[%s583 + $0x360] sm:$0xff]
      %v708 = vld [vmem:[%s583 + $0x368] sm:$0xff]
      %v709 = vld [vmem:[%s583 + $0x370] sm:$0xff]
      %v710 = vld [vmem:[%s583 + $0x378] sm:$0xff]
      %v711 = vld [vmem:[%s583 + $0x380] sm:$0xff]
      %v712 = vld [vmem:[%s583 + $0x388] sm:$0xff]
      %v713 = vld [vmem:[%s583 + $0x390] sm:$0xff]
      %v714 = vld [vmem:[%s583 + $0x398] sm:$0xff]
      %v715 = vld [vmem:[%s583 + $0x3a0] sm:$0xff]
      %v716 = vld [vmem:[%s583 + $0x3a8] sm:$0xff]
      %v717 = vld [vmem:[%s583 + $0x3b0] sm:$0xff]
      %v718 = vld [vmem:[%s583 + $0x3b8] sm:$0xff]
      %v719 = vld [vmem:[%s583 + $0x3c0] sm:$0xff]
      %v720 = vld [vmem:[%s583 + $0x3c8] sm:$0xff]
      %v721 = vld [vmem:[%s583 + $0x3d0] sm:$0xff]
      %v722 = vld [vmem:[%s583 + $0x3d8] sm:$0xff]
      %v723 = vld [vmem:[%s583 + $0x3e0] sm:$0xff]
      %v724 = vld [vmem:[%s583 + $0x3e8] sm:$0xff]
      %v725 = vld [vmem:[%s583 + $0x3f0] sm:$0xff]
      %v726 = vld [vmem:[%s583 + $0x3f8] sm:$0xff]
      %v727 = vld [vmem:[%s583 + $0x400] sm:$0xff]
      %v728 = vld [vmem:[%s583 + $0x408] sm:$0xff]
      %v729 = vld [vmem:[%s583 + $0x410] sm:$0xff]
      %v730 = vld [vmem:[%s583 + $0x418] sm:$0xff]
      %v731 = vld [vmem:[%s583 + $0x420] sm:$0xff]
      %v732 = vld [vmem:[%s583 + $0x428] sm:$0xff]
      %v733 = vld [vmem:[%s583 + $0x430] sm:$0xff]
      %v734 = vld [vmem:[%s583 + $0x438] sm:$0xff]
      %v735 = vld [vmem:[%s583 + $0x440] sm:$0xff]
      %v736 = vld [vmem:[%s583 + $0x448] sm:$0xff]
      %v737 = vld [vmem:[%s583 + $0x450] sm:$0xff]
      %v738 = vld [vmem:[%s583 + $0x458] sm:$0xff]
      %v739 = vld [vmem:[%s583 + $0x460] sm:$0xff]
      %v740 = vld [vmem:[%s583 + $0x468] sm:$0xff]
      %v741 = vld [vmem:[%s583 + $0x470] sm:$0xff]
      %v742 = vld [vmem:[%s583 + $0x478] sm:$0xff]
      %v743 = vld [vmem:[%s583 + $0x480] sm:$0xff]
      %v744 = vld [vmem:[%s583 + $0x488] sm:$0xff]
      %v745 = vld [vmem:[%s583 + $0x490] sm:$0xff]
      %v746 = vld [vmem:[%s583 + $0x498] sm:$0xff]
      %v747 = vld [vmem:[%s583 + $0x4a0] sm:$0xff]
      %v748 = vld [vmem:[%s583 + $0x4a8] sm:$0xff]
      %v749 = vld [vmem:[%s583 + $0x4b0] sm:$0xff]
      %v750 = vld [vmem:[%s583 + $0x4b8] sm:$0xff]
      %v751 = vld [vmem:[%s583 + $0x4c0] sm:$0xff]
      %v752 = vld [vmem:[%s583 + $0x4c8] sm:$0xff]
      %v753 = vld [vmem:[%s583 + $0x4d0] sm:$0xff]
      %v754 = vld [vmem:[%s583 + $0x4d8] sm:$0xff]
      %v755 = vld [vmem:[%s583 + $0x4e0] sm:$0xff]
      %v756 = vld [vmem:[%s583 + $0x4e8] sm:$0xff]
      %v757 = vld [vmem:[%s583 + $0x4f0] sm:$0xff]
      %v758 = vld [vmem:[%s583 + $0x4f8] sm:$0xff]
      %v759 = vld [vmem:[%s583 + $0x500] sm:$0xff]
      %v760 = vld [vmem:[%s583 + $0x508] sm:$0xff]
      %v761 = vld [vmem:[%s583 + $0x510] sm:$0xff]
      %v762 = vld [vmem:[%s583 + $0x518] sm:$0xff]
      %v763 = vld [vmem:[%s583 + $0x520] sm:$0xff]
      %v764 = vld [vmem:[%s583 + $0x528] sm:$0xff]
      %v765 = vld [vmem:[%s583 + $0x530] sm:$0xff]
      %v766 = vld [vmem:[%s583 + $0x538] sm:$0xff]
      %v767 = vld [vmem:[%s583 + $0x540] sm:$0xff]
      %v768 = vld [vmem:[%s583 + $0x548] sm:$0xff]
      %v769 = vld [vmem:[%s583 + $0x550] sm:$0xff]
      %v770 = vld [vmem:[%s583 + $0x558] sm:$0xff]
      %v771 = vld [vmem:[%s583 + $0x560] sm:$0xff]
      %v772 = vld [vmem:[%s583 + $0x568] sm:$0xff]
      %v773 = vld [vmem:[%s583 + $0x570] sm:$0xff]
      %v774 = vld [vmem:[%s583 + $0x578] sm:$0xff]
      %v775 = vld [vmem:[%s583 + $0x580] sm:$0xff]
      %v776 = vld [vmem:[%s583 + $0x588] sm:$0xff]
      %v777 = vld [vmem:[%s583 + $0x590] sm:$0xff]
      %v778 = vld [vmem:[%s583 + $0x598] sm:$0xff]
      %v779 = vld [vmem:[%s583 + $0x5a0] sm:$0xff]
      %v780 = vld [vmem:[%s583 + $0x5a8] sm:$0xff]
      %v781 = vld [vmem:[%s583 + $0x5b0] sm:$0xff]
      %v782 = vld [vmem:[%s583 + $0x5b8] sm:$0xff]
      %v783 = vld [vmem:[%s583 + $0x5c0] sm:$0xff]
      %v784 = vld [vmem:[%s583 + $0x5c8] sm:$0xff]
      %v785 = vld [vmem:[%s583 + $0x5d0] sm:$0xff]
      %v786 = vld [vmem:[%s583 + $0x5d8] sm:$0xff]
      %v787 = vld [vmem:[%s583 + $0x5e0] sm:$0xff]
      %v788 = vld [vmem:[%s583 + $0x5e8] sm:$0xff]
      %v789 = vld [vmem:[%s583 + $0x5f0] sm:$0xff]
      %v790 = vld [vmem:[%s583 + $0x5f8] sm:$0xff]
      %v791 = vld [vmem:[%s583 + $0x600] sm:$0xff]
      %v792 = vld [vmem:[%s583 + $0x608] sm:$0xff]
      %v793 = vld [vmem:[%s583 + $0x610] sm:$0xff]
      %v794 = vld [vmem:[%s583 + $0x618] sm:$0xff]
      %v795 = vld [vmem:[%s583 + $0x620] sm:$0xff]
      %v796 = vld [vmem:[%s583 + $0x628] sm:$0xff]
      %v797 = vld [vmem:[%s583 + $0x630] sm:$0xff]
      %v798 = vld [vmem:[%s583 + $0x638] sm:$0xff]
      %v799 = vld [vmem:[%s583 + $0x640] sm:$0xff]
      %v800 = vld [vmem:[%s583 + $0x648] sm:$0xff]
      %v801 = vld [vmem:[%s583 + $0x650] sm:$0xff]
      %v802 = vld [vmem:[%s583 + $0x658] sm:$0xff]
      %v803 = vld [vmem:[%s583 + $0x660] sm:$0xff]
      %v804 = vld [vmem:[%s583 + $0x668] sm:$0xff]
      %v805 = vld [vmem:[%s583 + $0x670] sm:$0xff]
      %v806 = vld [vmem:[%s583 + $0x678] sm:$0xff]
      %v807 = vld [vmem:[%s583 + $0x680] sm:$0xff]
      %v808 = vld [vmem:[%s583 + $0x688] sm:$0xff]
      %v809 = vld [vmem:[%s583 + $0x690] sm:$0xff]
      %v810 = vld [vmem:[%s583 + $0x698] sm:$0xff]
      %v811 = vld [vmem:[%s583 + $0x6a0] sm:$0xff]
      %v812 = vld [vmem:[%s583 + $0x6a8] sm:$0xff]
      %v813 = vld [vmem:[%s583 + $0x6b0] sm:$0xff]
      %v814 = vld [vmem:[%s583 + $0x6b8] sm:$0xff]
      %v815 = vld [vmem:[%s583 + $0x6c0] sm:$0xff]
      %v816 = vld [vmem:[%s583 + $0x6c8] sm:$0xff]
      %v817 = vld [vmem:[%s583 + $0x6d0] sm:$0xff]
      %v818 = vld [vmem:[%s583 + $0x6d8] sm:$0xff]
      %v819 = vld [vmem:[%s583 + $0x6e0] sm:$0xff]
      %v820 = vld [vmem:[%s583 + $0x6e8] sm:$0xff]
      %v821 = vld [vmem:[%s583 + $0x6f0] sm:$0xff]
      %v822 = vld [vmem:[%s583 + $0x6f8] sm:$0xff]
      %v823 = vpack.c.bf16 %v606, %v599
      %v824 = vpack.c.bf16 %v607, %v600
      %v825 = vpack.c.bf16 %v608, %v601
      %v826 = vpack.c.bf16 %v609, %v602
      %v827 = vpack.c.bf16 %v610, %v603
      %v828 = vpack.c.bf16 %v611, %v604
      %v829 = vpack.c.bf16 %v612, %v605
      %v830 = vpack.c.bf16 %v620, %v613
      %v831 = vpack.c.bf16 %v621, %v614
      %v832 = vpack.c.bf16 %v622, %v615
      %v833 = vpack.c.bf16 %v623, %v616
      %v834 = vpack.c.bf16 %v624, %v617
      %v835 = vpack.c.bf16 %v625, %v618
      %v836 = vpack.c.bf16 %v626, %v619
      %v837 = vpack.c.bf16 %v634, %v627
      %v838 = vpack.c.bf16 %v635, %v628
      %v839 = vpack.c.bf16 %v636, %v629
      %v840 = vpack.c.bf16 %v637, %v630
      %v841 = vpack.c.bf16 %v638, %v631
      %v842 = vpack.c.bf16 %v639, %v632
      %v843 = vpack.c.bf16 %v640, %v633
      %v844 = vpack.c.bf16 %v648, %v641
      %v845 = vpack.c.bf16 %v649, %v642
      %v846 = vpack.c.bf16 %v650, %v643
      %v847 = vpack.c.bf16 %v651, %v644
      %v848 = vpack.c.bf16 %v652, %v645
      %v849 = vpack.c.bf16 %v653, %v646
      %v850 = vpack.c.bf16 %v654, %v647
      %v851 = vpack.c.bf16 %v662, %v655
      %v852 = vpack.c.bf16 %v663, %v656
      %v853 = vpack.c.bf16 %v664, %v657
      %v854 = vpack.c.bf16 %v665, %v658
      %v855 = vpack.c.bf16 %v666, %v659
      %v856 = vpack.c.bf16 %v667, %v660
      %v857 = vpack.c.bf16 %v668, %v661
      %v858 = vpack.c.bf16 %v676, %v669
      %v859 = vpack.c.bf16 %v677, %v670
      %v860 = vpack.c.bf16 %v678, %v671
      %v861 = vpack.c.bf16 %v679, %v672
      %v862 = vpack.c.bf16 %v680, %v673
      %v863 = vpack.c.bf16 %v681, %v674
      %v864 = vpack.c.bf16 %v682, %v675
      %v865 = vpack.c.bf16 %v690, %v683
      %v866 = vpack.c.bf16 %v691, %v684
      %v867 = vpack.c.bf16 %v692, %v685
      %v868 = vpack.c.bf16 %v693, %v686
      %v869 = vpack.c.bf16 %v694, %v687
      %v870 = vpack.c.bf16 %v695, %v688
      %v871 = vpack.c.bf16 %v696, %v689
      %v872 = vpack.c.bf16 %v704, %v697
      %v873 = vpack.c.bf16 %v705, %v698
      %v874 = vpack.c.bf16 %v706, %v699
      %v875 = vpack.c.bf16 %v707, %v700
      %v876 = vpack.c.bf16 %v708, %v701
      %v877 = vpack.c.bf16 %v709, %v702
      %v878 = vpack.c.bf16 %v710, %v703
      %v879 = vpack.c.bf16 %v718, %v711
      %v880 = vpack.c.bf16 %v719, %v712
      %v881 = vpack.c.bf16 %v720, %v713
      %v882 = vpack.c.bf16 %v721, %v714
      %v883 = vpack.c.bf16 %v722, %v715
      %v884 = vpack.c.bf16 %v723, %v716
      %v885 = vpack.c.bf16 %v724, %v717
      %v886 = vpack.c.bf16 %v732, %v725
      %v887 = vpack.c.bf16 %v733, %v726
      %v888 = vpack.c.bf16 %v734, %v727
      %v889 = vpack.c.bf16 %v735, %v728
      %v890 = vpack.c.bf16 %v736, %v729
      %v891 = vpack.c.bf16 %v737, %v730
      %v892 = vpack.c.bf16 %v738, %v731
      %v893 = vpack.c.bf16 %v746, %v739
      %v894 = vpack.c.bf16 %v747, %v740
      %v895 = vpack.c.bf16 %v748, %v741
      %v896 = vpack.c.bf16 %v749, %v742
      %v897 = vpack.c.bf16 %v750, %v743
      %v898 = vpack.c.bf16 %v751, %v744
      %v899 = vpack.c.bf16 %v752, %v745
      %v900 = vpack.c.bf16 %v760, %v753
      %v901 = vpack.c.bf16 %v761, %v754
      %v902 = vpack.c.bf16 %v762, %v755
      %v903 = vpack.c.bf16 %v763, %v756
      %v904 = vpack.c.bf16 %v764, %v757
      %v905 = vpack.c.bf16 %v765, %v758
      %v906 = vpack.c.bf16 %v766, %v759
      %v907 = vpack.c.bf16 %v774, %v767
      %v908 = vpack.c.bf16 %v775, %v768
      %v909 = vpack.c.bf16 %v776, %v769
      %v910 = vpack.c.bf16 %v777, %v770
      %v911 = vpack.c.bf16 %v778, %v771
      %v912 = vpack.c.bf16 %v779, %v772
      %v913 = vpack.c.bf16 %v780, %v773
      %v914 = vpack.c.bf16 %v788, %v781
      %v915 = vpack.c.bf16 %v789, %v782
      %v916 = vpack.c.bf16 %v790, %v783
      %v917 = vpack.c.bf16 %v791, %v784
      %v918 = vpack.c.bf16 %v792, %v785
      %v919 = vpack.c.bf16 %v793, %v786
      %v920 = vpack.c.bf16 %v794, %v787
      %v921 = vpack.c.bf16 %v802, %v795
      %v922 = vpack.c.bf16 %v803, %v796
      %v923 = vpack.c.bf16 %v804, %v797
      %v924 = vpack.c.bf16 %v805, %v798
      %v925 = vpack.c.bf16 %v806, %v799
      %v926 = vpack.c.bf16 %v807, %v800
      %v927 = vpack.c.bf16 %v808, %v801
      %v928 = vpack.c.bf16 %v816, %v809
      %v929 = vpack.c.bf16 %v817, %v810
      %v930 = vpack.c.bf16 %v818, %v811
      %v931 = vpack.c.bf16 %v819, %v812
      %v932 = vpack.c.bf16 %v820, %v813
      %v933 = vpack.c.bf16 %v821, %v814
      %v934 = vpack.c.bf16 %v822, %v815
      %v935 = vld [vmem:[%s1] sm:$0xf]
      %v936 = vld [vmem:[%s1 + $0x4] sm:$0xf]
      %v937 = vld [vmem:[%s1 + $0x8] sm:$0xf]
      %v938 = vld [vmem:[%s1 + $0xc] sm:$0xf]
      %v939 = vld [vmem:[%s1 + $0x10] sm:$0xf]
      %v940 = vld [vmem:[%s1 + $0x14] sm:$0xf]
      %v941 = vld [vmem:[%s1 + $0x18] sm:$0xf]
      %v942 = vld [vmem:[%s1 + $0x1c] sm:$0xf]
      %v943 = vld [vmem:[%s1 + $0x20] sm:$0xf]
      %v944 = vld [vmem:[%s1 + $0x24] sm:$0xf]
      %v945 = vld [vmem:[%s1 + $0x28] sm:$0xf]
      %v946 = vld [vmem:[%s1 + $0x2c] sm:$0xf]
      %v947 = vld [vmem:[%s1 + $0x30] sm:$0xf]
      %v948 = vld [vmem:[%s1 + $0x34] sm:$0xf]
      %v949 = vld [vmem:[%s1 + $0x38] sm:$0xf]
      %v950 = vld [vmem:[%s1 + $0x3c] sm:$0xf]
      %v951 = vld [vmem:[%s1 + $0x40] sm:$0xf]
      %v952 = vld [vmem:[%s1 + $0x44] sm:$0xf]
      %v953 = vld [vmem:[%s1 + $0x48] sm:$0xf]
      %v954 = vld [vmem:[%s1 + $0x4c] sm:$0xf]
      %v955 = vld [vmem:[%s1 + $0x50] sm:$0xf]
      %v956 = vld [vmem:[%s1 + $0x54] sm:$0xf]
      %v957 = vld [vmem:[%s1 + $0x58] sm:$0xf]
      %v958 = vld [vmem:[%s1 + $0x5c] sm:$0xf]
      %v959 = vld [vmem:[%s1 + $0x60] sm:$0xf]
      %v960 = vld [vmem:[%s1 + $0x64] sm:$0xf]
      %v961 = vld [vmem:[%s1 + $0x68] sm:$0xf]
      %v962 = vld [vmem:[%s1 + $0x6c] sm:$0xf]
      %v963 = vld [vmem:[%s1 + $0x70] sm:$0xf]
      %v964 = vld [vmem:[%s1 + $0x74] sm:$0xf]
      %v965 = vld [vmem:[%s1 + $0x78] sm:$0xf]
      %v966 = vld [vmem:[%s1 + $0x7c] sm:$0xf]
      %v967 = vld [vmem:[%s1 + $0x80] sm:$0xf]
      %v968 = vld [vmem:[%s1 + $0x84] sm:$0xf]
      %v969 = vld [vmem:[%s1 + $0x88] sm:$0xf]
      %v970 = vld [vmem:[%s1 + $0x8c] sm:$0xf]
      %v971 = vld [vmem:[%s1 + $0x90] sm:$0xf]
      %v972 = vld [vmem:[%s1 + $0x94] sm:$0xf]
      %v973 = vld [vmem:[%s1 + $0x98] sm:$0xf]
      %v974 = vld [vmem:[%s1 + $0x9c] sm:$0xf]
      %v975 = vld [vmem:[%s1 + $0xa0] sm:$0xf]
      %v976 = vld [vmem:[%s1 + $0xa4] sm:$0xf]
      %v977 = vld [vmem:[%s1 + $0xa8] sm:$0xf]
      %v978 = vld [vmem:[%s1 + $0xac] sm:$0xf]
      %v979 = vld [vmem:[%s1 + $0xb0] sm:$0xf]
      %v980 = vld [vmem:[%s1 + $0xb4] sm:$0xf]
      %v981 = vld [vmem:[%s1 + $0xb8] sm:$0xf]
      %v982 = vld [vmem:[%s1 + $0xbc] sm:$0xf]
      %v983 = vld [vmem:[%s1 + $0xc0] sm:$0xf]
      %v984 = vld [vmem:[%s1 + $0xc4] sm:$0xf]
      %v985 = vld [vmem:[%s1 + $0xc8] sm:$0xf]
      %v986 = vld [vmem:[%s1 + $0xcc] sm:$0xf]
      %v987 = vld [vmem:[%s1 + $0xd0] sm:$0xf]
      %v988 = vld [vmem:[%s1 + $0xd4] sm:$0xf]
      %v989 = vld [vmem:[%s1 + $0xd8] sm:$0xf]
      %v990 = vld [vmem:[%s1 + $0xdc] sm:$0xf]
      %v991 = vld [vmem:[%s1 + $0xe0] sm:$0xf]
      %v992 = vld [vmem:[%s1 + $0xe4] sm:$0xf]
      %v993 = vld [vmem:[%s1 + $0xe8] sm:$0xf]
      %v994 = vld [vmem:[%s1 + $0xec] sm:$0xf]
      %v995 = vld [vmem:[%s1 + $0xf0] sm:$0xf]
      %v996 = vld [vmem:[%s1 + $0xf4] sm:$0xf]
      %v997 = vld [vmem:[%s1 + $0xf8] sm:$0xf]
      %v998 = vld [vmem:[%s1 + $0xfc] sm:$0xf]
      %v999 = vld [vmem:[%s1 + $0x100] sm:$0xf]
      %v1000 = vld [vmem:[%s1 + $0x104] sm:$0xf]
      %v1001 = vld [vmem:[%s1 + $0x108] sm:$0xf]
      %v1002 = vld [vmem:[%s1 + $0x10c] sm:$0xf]
      %v1003 = vld [vmem:[%s1 + $0x110] sm:$0xf]
      %v1004 = vld [vmem:[%s1 + $0x114] sm:$0xf]
      %v1005 = vld [vmem:[%s1 + $0x118] sm:$0xf]
      %v1006 = vld [vmem:[%s1 + $0x11c] sm:$0xf]
      %v1007 = vld [vmem:[%s1 + $0x120] sm:$0xf]
      %v1008 = vld [vmem:[%s1 + $0x124] sm:$0xf]
      %v1009 = vld [vmem:[%s1 + $0x128] sm:$0xf]
      %v1010 = vld [vmem:[%s1 + $0x12c] sm:$0xf]
      %v1011 = vld [vmem:[%s1 + $0x130] sm:$0xf]
      %v1012 = vld [vmem:[%s1 + $0x134] sm:$0xf]
      %v1013 = vld [vmem:[%s1 + $0x138] sm:$0xf]
      %v1014 = vld [vmem:[%s1 + $0x13c] sm:$0xf]
      %v1015 = vld [vmem:[%s1 + $0x140] sm:$0xf]
      %v1016 = vld [vmem:[%s1 + $0x144] sm:$0xf]
      %v1017 = vld [vmem:[%s1 + $0x148] sm:$0xf]
      %v1018 = vld [vmem:[%s1 + $0x14c] sm:$0xf]
      %v1019 = vld [vmem:[%s1 + $0x150] sm:$0xf]
      %v1020 = vld [vmem:[%s1 + $0x154] sm:$0xf]
      %v1021 = vld [vmem:[%s1 + $0x158] sm:$0xf]
      %v1022 = vld [vmem:[%s1 + $0x15c] sm:$0xf]
      %v1023 = vld [vmem:[%s1 + $0x160] sm:$0xf]
      %v1024 = vld [vmem:[%s1 + $0x164] sm:$0xf]
      %v1025 = vld [vmem:[%s1 + $0x168] sm:$0xf]
      %v1026 = vld [vmem:[%s1 + $0x16c] sm:$0xf]
      %v1027 = vld [vmem:[%s1 + $0x170] sm:$0xf]
      %v1028 = vld [vmem:[%s1 + $0x174] sm:$0xf]
      %v1029 = vld [vmem:[%s1 + $0x178] sm:$0xf]
      %v1030 = vld [vmem:[%s1 + $0x17c] sm:$0xf]
      %v1031 = vld [vmem:[%s1 + $0x180] sm:$0xf]
      %v1032 = vld [vmem:[%s1 + $0x184] sm:$0xf]
      %v1033 = vld [vmem:[%s2] sm:$0x1]
      %v1035 = vperm.slane %v1033, 0
      %v1135 = vunpack.c.l.b16 %v935
      %v1136 = vunpack.c.l.b16 %v936
      %v1137 = vunpack.c.l.b16 %v937
      %v1138 = vunpack.c.l.b16 %v938
      %v1139 = vunpack.c.l.b16 %v939
      %v1140 = vunpack.c.l.b16 %v940
      %v1141 = vunpack.c.l.b16 %v941
      %v1142 = vunpack.c.l.b16 %v942
      %v1143 = vunpack.c.l.b16 %v943
      %v1144 = vunpack.c.l.b16 %v944
      %v1145 = vunpack.c.l.b16 %v945
      %v1146 = vunpack.c.l.b16 %v946
      %v1147 = vunpack.c.l.b16 %v947
      %v1148 = vunpack.c.l.b16 %v948
      %v1149 = vunpack.c.l.b16 %v949
      %v1150 = vunpack.c.l.b16 %v950
      %v1151 = vunpack.c.l.b16 %v951
      %v1152 = vunpack.c.l.b16 %v952
      %v1153 = vunpack.c.l.b16 %v953
      %v1154 = vunpack.c.l.b16 %v954
      %v1155 = vunpack.c.l.b16 %v955
      %v1156 = vunpack.c.l.b16 %v956
      %v1157 = vunpack.c.l.b16 %v957
      %v1158 = vunpack.c.l.b16 %v958
      %v1159 = vunpack.c.l.b16 %v959
      %v1160 = vunpack.c.l.b16 %v960
      %v1161 = vunpack.c.l.b16 %v961
      %v1162 = vunpack.c.l.b16 %v962
      %v1163 = vunpack.c.l.b16 %v963
      %v1164 = vunpack.c.l.b16 %v964
      %v1165 = vunpack.c.l.b16 %v965
      %v1166 = vunpack.c.l.b16 %v966
      %v1167 = vunpack.c.l.b16 %v967
      %v1168 = vunpack.c.l.b16 %v968
      %v1169 = vunpack.c.l.b16 %v969
      %v1170 = vunpack.c.l.b16 %v970
      %v1171 = vunpack.c.l.b16 %v971
      %v1172 = vunpack.c.l.b16 %v972
      %v1173 = vunpack.c.l.b16 %v973
      %v1174 = vunpack.c.l.b16 %v974
      %v1175 = vunpack.c.l.b16 %v975
      %v1176 = vunpack.c.l.b16 %v976
      %v1177 = vunpack.c.l.b16 %v977
      %v1178 = vunpack.c.l.b16 %v978
      %v1179 = vunpack.c.l.b16 %v979
      %v1180 = vunpack.c.l.b16 %v980
      %v1181 = vunpack.c.l.b16 %v981
      %v1182 = vunpack.c.l.b16 %v982
      %v1183 = vunpack.c.l.b16 %v983
      %v1184 = vunpack.c.l.b16 %v984
      %v1185 = vunpack.c.l.b16 %v985
      %v1186 = vunpack.c.l.b16 %v986
      %v1187 = vunpack.c.l.b16 %v987
      %v1188 = vunpack.c.l.b16 %v988
      %v1189 = vunpack.c.l.b16 %v989
      %v1190 = vunpack.c.l.b16 %v990
      %v1191 = vunpack.c.l.b16 %v991
      %v1192 = vunpack.c.l.b16 %v992
      %v1193 = vunpack.c.l.b16 %v993
      %v1194 = vunpack.c.l.b16 %v994
      %v1195 = vunpack.c.l.b16 %v995
      %v1196 = vunpack.c.l.b16 %v996
      %v1197 = vunpack.c.l.b16 %v997
      %v1198 = vunpack.c.l.b16 %v998
      %v1199 = vunpack.c.l.b16 %v999
      %v1200 = vunpack.c.l.b16 %v1000
      %v1201 = vunpack.c.l.b16 %v1001
      %v1202 = vunpack.c.l.b16 %v1002
      %v1203 = vunpack.c.l.b16 %v1003
      %v1204 = vunpack.c.l.b16 %v1004
      %v1205 = vunpack.c.l.b16 %v1005
      %v1206 = vunpack.c.l.b16 %v1006
      %v1207 = vunpack.c.l.b16 %v1007
      %v1208 = vunpack.c.l.b16 %v1008
      %v1209 = vunpack.c.l.b16 %v1009
      %v1210 = vunpack.c.l.b16 %v1010
      %v1211 = vunpack.c.l.b16 %v1011
      %v1212 = vunpack.c.l.b16 %v1012
      %v1213 = vunpack.c.l.b16 %v1013
      %v1214 = vunpack.c.l.b16 %v1014
      %v1215 = vunpack.c.l.b16 %v1015
      %v1216 = vunpack.c.l.b16 %v1016
      %v1217 = vunpack.c.l.b16 %v1017
      %v1218 = vunpack.c.l.b16 %v1018
      %v1219 = vunpack.c.l.b16 %v1019
      %v1220 = vunpack.c.l.b16 %v1020
      %v1221 = vunpack.c.l.b16 %v1021
      %v1222 = vunpack.c.l.b16 %v1022
      %v1223 = vunpack.c.l.b16 %v1023
      %v1224 = vunpack.c.l.b16 %v1024
      %v1225 = vunpack.c.l.b16 %v1025
      %v1226 = vunpack.c.l.b16 %v1026
      %v1227 = vunpack.c.l.b16 %v1027
      %v1228 = vunpack.c.l.b16 %v1028
      %v1229 = vunpack.c.l.b16 %v1029
      %v1230 = vunpack.c.l.b16 %v1030
      %v1231 = vunpack.c.l.b16 %v1031
      %v1232 = vunpack.c.l.b16 %v1032
      %v1233 = vpack.c.b16 %v1136, %v1135
      %v1234 = vpack.c.b16 %v1138, %v1137
      %v1235 = vpack.c.b16 %v1140, %v1139
      %v1236 = vpack.c.b16 %v1142, %v1141
      %v1237 = vpack.c.b16 %v1144, %v1143
      %v1238 = vpack.c.b16 %v1146, %v1145
      %v1239 = vpack.c.b16 %v1148, %v1147
      %v1240 = vpack.c.b16 %v1150, %v1149
      %v1241 = vpack.c.b16 %v1152, %v1151
      %v1242 = vpack.c.b16 %v1154, %v1153
      %v1243 = vpack.c.b16 %v1156, %v1155
      %v1244 = vpack.c.b16 %v1158, %v1157
      %v1245 = vpack.c.b16 %v1160, %v1159
      %v1246 = vpack.c.b16 %v1162, %v1161
      %v1247 = vpack.c.b16 %v1164, %v1163
      %v1248 = vpack.c.b16 %v1166, %v1165
      %v1249 = vpack.c.b16 %v1168, %v1167
      %v1250 = vpack.c.b16 %v1170, %v1169
      %v1251 = vpack.c.b16 %v1172, %v1171
      %v1252 = vpack.c.b16 %v1174, %v1173
      %v1253 = vpack.c.b16 %v1176, %v1175
      %v1254 = vpack.c.b16 %v1178, %v1177
      %v1255 = vpack.c.b16 %v1180, %v1179
      %v1256 = vpack.c.b16 %v1182, %v1181
      %v1257 = vpack.c.b16 %v1184, %v1183
      %v1258 = vpack.c.b16 %v1186, %v1185
      %v1259 = vpack.c.b16 %v1188, %v1187
      %v1260 = vpack.c.b16 %v1190, %v1189
      %v1261 = vpack.c.b16 %v1192, %v1191
      %v1262 = vpack.c.b16 %v1194, %v1193
      %v1263 = vpack.c.b16 %v1196, %v1195
      %v1264 = vpack.c.b16 %v1198, %v1197
      %v1265 = vpack.c.b16 %v1200, %v1199
      %v1266 = vpack.c.b16 %v1202, %v1201
      %v1267 = vpack.c.b16 %v1204, %v1203
      %v1268 = vpack.c.b16 %v1206, %v1205
      %v1269 = vpack.c.b16 %v1208, %v1207
      %v1270 = vpack.c.b16 %v1210, %v1209
      %v1271 = vpack.c.b16 %v1212, %v1211
      %v1272 = vpack.c.b16 %v1214, %v1213
      %v1273 = vpack.c.b16 %v1216, %v1215
      %v1274 = vpack.c.b16 %v1218, %v1217
      %v1275 = vpack.c.b16 %v1220, %v1219
      %v1276 = vpack.c.b16 %v1222, %v1221
      %v1277 = vpack.c.b16 %v1224, %v1223
      %v1278 = vpack.c.b16 %v1226, %v1225
      %v1279 = vpack.c.b16 %v1228, %v1227
      %v1280 = vpack.c.b16 %v1230, %v1229
      %v1281 = vpack.c.b16 %v1232, %v1231
      %vm1331 = vcmask 130048
      %v1333 = vsel %vm1331, %v829, 0
      %v1336 = vsel %vm1331, %v836, 0
      %v1339 = vsel %vm1331, %v843, 0
      %v1342 = vsel %vm1331, %v850, 0
      %v1345 = vsel %vm1331, %v857, 0
      %v1348 = vsel %vm1331, %v864, 0
      %v1351 = vsel %vm1331, %v871, 0
      %v1354 = vsel %vm1331, %v878, 0
      %v1357 = vsel %vm1331, %v885, 0
      %v1360 = vsel %vm1331, %v892, 0
      %v1363 = vsel %vm1331, %v899, 0
      %v1366 = vsel %vm1331, %v906, 0
      %v1369 = vsel %vm1331, %v913, 0
      %v1372 = vsel %vm1331, %v920, 0
      %v1375 = vsel %vm1331, %v927, 0
      %v1378 = vsel %vm1331, %v934, 0
      %1380 = vmatpush.bf16.msra.mxu0 %v1240
      %1381 = vmatpush.bf16.msra.mxu0 %v1239
      %1382 = vmatpush.bf16.msra.mxu0 %v1238
      %1383 = vmatpush.bf16.msra.mxu0 %v1237
      %1384 = vmatpush.bf16.msra.mxu0 %v1236
      %1385 = vmatpush.bf16.msra.mxu0 %v1235
      %1386 = vmatpush.bf16.msra.mxu0 %v1234
      %1387 = vmatpush.bf16.msra.mxu0 %v1233
      %1388 = vmatmul.bf16.gmra.mxu0 %v823
      %v1389 = vpop.f32.mrf.mxu0
      %v1390 = vadd.f32 %v1035, %v1389
      %v1391 = vpop.f32.mrf.mxu0
      %v1392 = vadd.f32 %v1035, %v1391
      %1393 = vmatmul.bf16.gmra.mxu0 %v830
      %v1394 = vpop.f32.mrf.mxu0
      %v1395 = vadd.f32 %v1035, %v1394
      %v1396 = vpop.f32.mrf.mxu0
      %v1397 = vadd.f32 %v1035, %v1396
      %1398 = vmatmul.bf16.gmra.mxu0 %v837
      %v1399 = vpop.f32.mrf.mxu0
      %v1400 = vadd.f32 %v1035, %v1399
      %v1401 = vpop.f32.mrf.mxu0
      %v1402 = vadd.f32 %v1035, %v1401
      %1403 = vmatmul.bf16.gmra.mxu0 %v844
      %v1404 = vpop.f32.mrf.mxu0
      %v1405 = vadd.f32 %v1035, %v1404
      %v1406 = vpop.f32.mrf.mxu0
      %v1407 = vadd.f32 %v1035, %v1406
      %1408 = vmatmul.bf16.gmra.mxu0 %v851
      %v1409 = vpop.f32.mrf.mxu0
      %v1410 = vadd.f32 %v1035, %v1409
      %v1411 = vpop.f32.mrf.mxu0
      %v1412 = vadd.f32 %v1035, %v1411
      %1413 = vmatmul.bf16.gmra.mxu0 %v858
      %v1414 = vpop.f32.mrf.mxu0
      %v1415 = vadd.f32 %v1035, %v1414
      %v1416 = vpop.f32.mrf.mxu0
      %v1417 = vadd.f32 %v1035, %v1416
      %1418 = vmatmul.bf16.gmra.mxu0 %v865
      %v1419 = vpop.f32.mrf.mxu0
      %v1420 = vadd.f32 %v1035, %v1419
      %v1421 = vpop.f32.mrf.mxu0
      %v1422 = vadd.f32 %v1035, %v1421
      %1423 = vmatmul.bf16.gmra.mxu0 %v872
      %v1424 = vpop.f32.mrf.mxu0
      %v1425 = vadd.f32 %v1035, %v1424
      %v1426 = vpop.f32.mrf.mxu0
      %v1427 = vadd.f32 %v1035, %v1426
      %1428 = vmatmul.bf16.gmra.mxu0 %v879
      %v1429 = vpop.f32.mrf.mxu0
      %v1430 = vadd.f32 %v1035, %v1429
      %v1431 = vpop.f32.mrf.mxu0
      %v1432 = vadd.f32 %v1035, %v1431
      %1433 = vmatmul.bf16.gmra.mxu0 %v886
      %v1434 = vpop.f32.mrf.mxu0
      %v1435 = vadd.f32 %v1035, %v1434
      %v1436 = vpop.f32.mrf.mxu0
      %v1437 = vadd.f32 %v1035, %v1436
      %1438 = vmatmul.bf16.gmra.mxu0 %v893
      %v1439 = vpop.f32.mrf.mxu0
      %v1440 = vadd.f32 %v1035, %v1439
      %v1441 = vpop.f32.mrf.mxu0
      %v1442 = vadd.f32 %v1035, %v1441
      %1443 = vmatmul.bf16.gmra.mxu0 %v900
      %v1444 = vpop.f32.mrf.mxu0
      %v1445 = vadd.f32 %v1035, %v1444
      %v1446 = vpop.f32.mrf.mxu0
      %v1447 = vadd.f32 %v1035, %v1446
      %1448 = vmatmul.bf16.gmra.mxu0 %v907
      %v1449 = vpop.f32.mrf.mxu0
      %v1450 = vadd.f32 %v1035, %v1449
      %v1451 = vpop.f32.mrf.mxu0
      %v1452 = vadd.f32 %v1035, %v1451
      %1453 = vmatmul.bf16.gmra.mxu0 %v914
      %v1454 = vpop.f32.mrf.mxu0
      %v1455 = vadd.f32 %v1035, %v1454
      %v1456 = vpop.f32.mrf.mxu0
      %v1457 = vadd.f32 %v1035, %v1456
      %1458 = vmatmul.bf16.gmra.mxu0 %v921
      %v1459 = vpop.f32.mrf.mxu0
      %v1460 = vadd.f32 %v1035, %v1459
      %v1461 = vpop.f32.mrf.mxu0
      %v1462 = vadd.f32 %v1035, %v1461
      %1463 = vmatmul.bf16.gmra.mxu0 %v928
      %v1464 = vpop.f32.mrf.mxu0
      %v1465 = vadd.f32 %v1035, %v1464
      %v1466 = vpop.f32.mrf.mxu0
      %v1467 = vadd.f32 %v1035, %v1466
      %1468 = vdwg.mxu0
      %1469 = vmatpush.bf16.msra.mxu0 %v1248
      %1470 = vmatpush.bf16.msra.mxu0 %v1247
      %1471 = vmatpush.bf16.msra.mxu0 %v1246
      %1472 = vmatpush.bf16.msra.mxu0 %v1245
      %1473 = vmatpush.bf16.msra.mxu0 %v1244
      %1474 = vmatpush.bf16.msra.mxu0 %v1243
      %1475 = vmatpush.bf16.msra.mxu0 %v1242
      %1476 = vmatpush.bf16.msra.mxu0 %v1241
      %1477 = vmatmul.bf16.gmra.mxu0 %v824
      %v1478 = vpop.f32.mrf.mxu0
      %v1479 = vadd.f32 %v1390, %v1478
      %v1480 = vpop.f32.mrf.mxu0
      %v1481 = vadd.f32 %v1392, %v1480
      %1482 = vmatmul.bf16.gmra.mxu0 %v831
      %v1483 = vpop.f32.mrf.mxu0
      %v1484 = vadd.f32 %v1395, %v1483
      %v1485 = vpop.f32.mrf.mxu0
      %v1486 = vadd.f32 %v1397, %v1485
      %1487 = vmatmul.bf16.gmra.mxu0 %v838
      %v1488 = vpop.f32.mrf.mxu0
      %v1489 = vadd.f32 %v1400, %v1488
      %v1490 = vpop.f32.mrf.mxu0
      %v1491 = vadd.f32 %v1402, %v1490
      %1492 = vmatmul.bf16.gmra.mxu0 %v845
      %v1493 = vpop.f32.mrf.mxu0
      %v1494 = vadd.f32 %v1405, %v1493
      %v1495 = vpop.f32.mrf.mxu0
      %v1496 = vadd.f32 %v1407, %v1495
      %1497 = vmatmul.bf16.gmra.mxu0 %v852
      %v1498 = vpop.f32.mrf.mxu0
      %v1499 = vadd.f32 %v1410, %v1498
      %v1500 = vpop.f32.mrf.mxu0
      %v1501 = vadd.f32 %v1412, %v1500
      %1502 = vmatmul.bf16.gmra.mxu0 %v859
      %v1503 = vpop.f32.mrf.mxu0
      %v1504 = vadd.f32 %v1415, %v1503
      %v1505 = vpop.f32.mrf.mxu0
      %v1506 = vadd.f32 %v1417, %v1505
      %1507 = vmatmul.bf16.gmra.mxu0 %v866
      %v1508 = vpop.f32.mrf.mxu0
      %v1509 = vadd.f32 %v1420, %v1508
      %v1510 = vpop.f32.mrf.mxu0
      %v1511 = vadd.f32 %v1422, %v1510
      %1512 = vmatmul.bf16.gmra.mxu0 %v873
      %v1513 = vpop.f32.mrf.mxu0
      %v1514 = vadd.f32 %v1425, %v1513
      %v1515 = vpop.f32.mrf.mxu0
      %v1516 = vadd.f32 %v1427, %v1515
      %1517 = vmatmul.bf16.gmra.mxu0 %v880
      %v1518 = vpop.f32.mrf.mxu0
      %v1519 = vadd.f32 %v1430, %v1518
      %v1520 = vpop.f32.mrf.mxu0
      %v1521 = vadd.f32 %v1432, %v1520
      %1522 = vmatmul.bf16.gmra.mxu0 %v887
      %v1523 = vpop.f32.mrf.mxu0
      %v1524 = vadd.f32 %v1435, %v1523
      %v1525 = vpop.f32.mrf.mxu0
      %v1526 = vadd.f32 %v1437, %v1525
      %1527 = vmatmul.bf16.gmra.mxu0 %v894
      %v1528 = vpop.f32.mrf.mxu0
      %v1529 = vadd.f32 %v1440, %v1528
      %v1530 = vpop.f32.mrf.mxu0
      %v1531 = vadd.f32 %v1442, %v1530
      %1532 = vmatmul.bf16.gmra.mxu0 %v901
      %v1533 = vpop.f32.mrf.mxu0
      %v1534 = vadd.f32 %v1445, %v1533
      %v1535 = vpop.f32.mrf.mxu0
      %v1536 = vadd.f32 %v1447, %v1535
      %1537 = vmatmul.bf16.gmra.mxu0 %v908
      %v1538 = vpop.f32.mrf.mxu0
      %v1539 = vadd.f32 %v1450, %v1538
      %v1540 = vpop.f32.mrf.mxu0
      %v1541 = vadd.f32 %v1452, %v1540
      %1542 = vmatmul.bf16.gmra.mxu0 %v915
      %v1543 = vpop.f32.mrf.mxu0
      %v1544 = vadd.f32 %v1455, %v1543
      %v1545 = vpop.f32.mrf.mxu0
      %v1546 = vadd.f32 %v1457, %v1545
      %1547 = vmatmul.bf16.gmra.mxu0 %v922
      %v1548 = vpop.f32.mrf.mxu0
      %v1549 = vadd.f32 %v1460, %v1548
      %v1550 = vpop.f32.mrf.mxu0
      %v1551 = vadd.f32 %v1462, %v1550
      %1552 = vmatmul.bf16.gmra.mxu0 %v929
      %v1553 = vpop.f32.mrf.mxu0
      %v1554 = vadd.f32 %v1465, %v1553
      %v1555 = vpop.f32.mrf.mxu0
      %v1556 = vadd.f32 %v1467, %v1555
      %1557 = vdwg.mxu0
      %1558 = vmatpush.bf16.msra.mxu0 %v1256
      %1559 = vmatpush.bf16.msra.mxu0 %v1255
      %1560 = vmatpush.bf16.msra.mxu0 %v1254
      %1561 = vmatpush.bf16.msra.mxu0 %v1253
      %1562 = vmatpush.bf16.msra.mxu0 %v1252
      %1563 = vmatpush.bf16.msra.mxu0 %v1251
      %1564 = vmatpush.bf16.msra.mxu0 %v1250
      %1565 = vmatpush.bf16.msra.mxu0 %v1249
      %1566 = vmatmul.bf16.gmra.mxu0 %v825
      %v1567 = vpop.f32.mrf.mxu0
      %v1568 = vadd.f32 %v1479, %v1567
      %v1569 = vpop.f32.mrf.mxu0
      %v1570 = vadd.f32 %v1481, %v1569
      %1571 = vmatmul.bf16.gmra.mxu0 %v832
      %v1572 = vpop.f32.mrf.mxu0
      %v1573 = vadd.f32 %v1484, %v1572
      %v1574 = vpop.f32.mrf.mxu0
      %v1575 = vadd.f32 %v1486, %v1574
      %1576 = vmatmul.bf16.gmra.mxu0 %v839
      %v1577 = vpop.f32.mrf.mxu0
      %v1578 = vadd.f32 %v1489, %v1577
      %v1579 = vpop.f32.mrf.mxu0
      %v1580 = vadd.f32 %v1491, %v1579
      %1581 = vmatmul.bf16.gmra.mxu0 %v846
      %v1582 = vpop.f32.mrf.mxu0
      %v1583 = vadd.f32 %v1494, %v1582
      %v1584 = vpop.f32.mrf.mxu0
      %v1585 = vadd.f32 %v1496, %v1584
      %1586 = vmatmul.bf16.gmra.mxu0 %v853
      %v1587 = vpop.f32.mrf.mxu0
      %v1588 = vadd.f32 %v1499, %v1587
      %v1589 = vpop.f32.mrf.mxu0
      %v1590 = vadd.f32 %v1501, %v1589
      %1591 = vmatmul.bf16.gmra.mxu0 %v860
      %v1592 = vpop.f32.mrf.mxu0
      %v1593 = vadd.f32 %v1504, %v1592
      %v1594 = vpop.f32.mrf.mxu0
      %v1595 = vadd.f32 %v1506, %v1594
      %1596 = vmatmul.bf16.gmra.mxu0 %v867
      %v1597 = vpop.f32.mrf.mxu0
      %v1598 = vadd.f32 %v1509, %v1597
      %v1599 = vpop.f32.mrf.mxu0
      %v1600 = vadd.f32 %v1511, %v1599
      %1601 = vmatmul.bf16.gmra.mxu0 %v874
      %v1602 = vpop.f32.mrf.mxu0
      %v1603 = vadd.f32 %v1514, %v1602
      %v1604 = vpop.f32.mrf.mxu0
      %v1605 = vadd.f32 %v1516, %v1604
      %1606 = vmatmul.bf16.gmra.mxu0 %v881
      %v1607 = vpop.f32.mrf.mxu0
      %v1608 = vadd.f32 %v1519, %v1607
      %v1609 = vpop.f32.mrf.mxu0
      %v1610 = vadd.f32 %v1521, %v1609
      %1611 = vmatmul.bf16.gmra.mxu0 %v888
      %v1612 = vpop.f32.mrf.mxu0
      %v1613 = vadd.f32 %v1524, %v1612
      %v1614 = vpop.f32.mrf.mxu0
      %v1615 = vadd.f32 %v1526, %v1614
      %1616 = vmatmul.bf16.gmra.mxu0 %v895
      %v1617 = vpop.f32.mrf.mxu0
      %v1618 = vadd.f32 %v1529, %v1617
      %v1619 = vpop.f32.mrf.mxu0
      %v1620 = vadd.f32 %v1531, %v1619
      %1621 = vmatmul.bf16.gmra.mxu0 %v902
      %v1622 = vpop.f32.mrf.mxu0
      %v1623 = vadd.f32 %v1534, %v1622
      %v1624 = vpop.f32.mrf.mxu0
      %v1625 = vadd.f32 %v1536, %v1624
      %1626 = vmatmul.bf16.gmra.mxu0 %v909
      %v1627 = vpop.f32.mrf.mxu0
      %v1628 = vadd.f32 %v1539, %v1627
      %v1629 = vpop.f32.mrf.mxu0
      %v1630 = vadd.f32 %v1541, %v1629
      %1631 = vmatmul.bf16.gmra.mxu0 %v916
      %v1632 = vpop.f32.mrf.mxu0
      %v1633 = vadd.f32 %v1544, %v1632
      %v1634 = vpop.f32.mrf.mxu0
      %v1635 = vadd.f32 %v1546, %v1634
      %1636 = vmatmul.bf16.gmra.mxu0 %v923
      %v1637 = vpop.f32.mrf.mxu0
      %v1638 = vadd.f32 %v1549, %v1637
      %v1639 = vpop.f32.mrf.mxu0
      %v1640 = vadd.f32 %v1551, %v1639
      %1641 = vmatmul.bf16.gmra.mxu0 %v930
      %v1642 = vpop.f32.mrf.mxu0
      %v1643 = vadd.f32 %v1554, %v1642
      %v1644 = vpop.f32.mrf.mxu0
      %v1645 = vadd.f32 %v1556, %v1644
      %1646 = vdwg.mxu0
      %1647 = vmatpush.bf16.msra.mxu0 %v1264
      %1648 = vmatpush.bf16.msra.mxu0 %v1263
      %1649 = vmatpush.bf16.msra.mxu0 %v1262
      %1650 = vmatpush.bf16.msra.mxu0 %v1261
      %1651 = vmatpush.bf16.msra.mxu0 %v1260
      %1652 = vmatpush.bf16.msra.mxu0 %v1259
      %1653 = vmatpush.bf16.msra.mxu0 %v1258
      %1654 = vmatpush.bf16.msra.mxu0 %v1257
      %1655 = vmatmul.bf16.gmra.mxu0 %v826
      %v1656 = vpop.f32.mrf.mxu0
      %v1657 = vadd.f32 %v1568, %v1656
      %v1658 = vpop.f32.mrf.mxu0
      %v1659 = vadd.f32 %v1570, %v1658
      %1660 = vmatmul.bf16.gmra.mxu0 %v833
      %v1661 = vpop.f32.mrf.mxu0
      %v1662 = vadd.f32 %v1573, %v1661
      %v1663 = vpop.f32.mrf.mxu0
      %v1664 = vadd.f32 %v1575, %v1663
      %1665 = vmatmul.bf16.gmra.mxu0 %v840
      %v1666 = vpop.f32.mrf.mxu0
      %v1667 = vadd.f32 %v1578, %v1666
      %v1668 = vpop.f32.mrf.mxu0
      %v1669 = vadd.f32 %v1580, %v1668
      %1670 = vmatmul.bf16.gmra.mxu0 %v847
      %v1671 = vpop.f32.mrf.mxu0
      %v1672 = vadd.f32 %v1583, %v1671
      %v1673 = vpop.f32.mrf.mxu0
      %v1674 = vadd.f32 %v1585, %v1673
      %1675 = vmatmul.bf16.gmra.mxu0 %v854
      %v1676 = vpop.f32.mrf.mxu0
      %v1677 = vadd.f32 %v1588, %v1676
      %v1678 = vpop.f32.mrf.mxu0
      %v1679 = vadd.f32 %v1590, %v1678
      %1680 = vmatmul.bf16.gmra.mxu0 %v861
      %v1681 = vpop.f32.mrf.mxu0
      %v1682 = vadd.f32 %v1593, %v1681
      %v1683 = vpop.f32.mrf.mxu0
      %v1684 = vadd.f32 %v1595, %v1683
      %1685 = vmatmul.bf16.gmra.mxu0 %v868
      %v1686 = vpop.f32.mrf.mxu0
      %v1687 = vadd.f32 %v1598, %v1686
      %v1688 = vpop.f32.mrf.mxu0
      %v1689 = vadd.f32 %v1600, %v1688
      %1690 = vmatmul.bf16.gmra.mxu0 %v875
      %v1691 = vpop.f32.mrf.mxu0
      %v1692 = vadd.f32 %v1603, %v1691
      %v1693 = vpop.f32.mrf.mxu0
      %v1694 = vadd.f32 %v1605, %v1693
      %1695 = vmatmul.bf16.gmra.mxu0 %v882
      %v1696 = vpop.f32.mrf.mxu0
      %v1697 = vadd.f32 %v1608, %v1696
      %v1698 = vpop.f32.mrf.mxu0
      %v1699 = vadd.f32 %v1610, %v1698
      %1700 = vmatmul.bf16.gmra.mxu0 %v889
      %v1701 = vpop.f32.mrf.mxu0
      %v1702 = vadd.f32 %v1613, %v1701
      %v1703 = vpop.f32.mrf.mxu0
      %v1704 = vadd.f32 %v1615, %v1703
      %1705 = vmatmul.bf16.gmra.mxu0 %v896
      %v1706 = vpop.f32.mrf.mxu0
      %v1707 = vadd.f32 %v1618, %v1706
      %v1708 = vpop.f32.mrf.mxu0
      %v1709 = vadd.f32 %v1620, %v1708
      %1710 = vmatmul.bf16.gmra.mxu0 %v903
      %v1711 = vpop.f32.mrf.mxu0
      %v1712 = vadd.f32 %v1623, %v1711
      %v1713 = vpop.f32.mrf.mxu0
      %v1714 = vadd.f32 %v1625, %v1713
      %1715 = vmatmul.bf16.gmra.mxu0 %v910
      %v1716 = vpop.f32.mrf.mxu0
      %v1717 = vadd.f32 %v1628, %v1716
      %v1718 = vpop.f32.mrf.mxu0
      %v1719 = vadd.f32 %v1630, %v1718
      %1720 = vmatmul.bf16.gmra.mxu0 %v917
      %v1721 = vpop.f32.mrf.mxu0
      %v1722 = vadd.f32 %v1633, %v1721
      %v1723 = vpop.f32.mrf.mxu0
      %v1724 = vadd.f32 %v1635, %v1723
      %1725 = vmatmul.bf16.gmra.mxu0 %v924
      %v1726 = vpop.f32.mrf.mxu0
      %v1727 = vadd.f32 %v1638, %v1726
      %v1728 = vpop.f32.mrf.mxu0
      %v1729 = vadd.f32 %v1640, %v1728
      %1730 = vmatmul.bf16.gmra.mxu0 %v931
      %v1731 = vpop.f32.mrf.mxu0
      %v1732 = vadd.f32 %v1643, %v1731
      %v1733 = vpop.f32.mrf.mxu0
      %v1734 = vadd.f32 %v1645, %v1733
      %1735 = vdwg.mxu0
      %1736 = vmatpush.bf16.msra.mxu0 %v1272
      %1737 = vmatpush.bf16.msra.mxu0 %v1271
      %1738 = vmatpush.bf16.msra.mxu0 %v1270
      %1739 = vmatpush.bf16.msra.mxu0 %v1269
      %1740 = vmatpush.bf16.msra.mxu0 %v1268
      %1741 = vmatpush.bf16.msra.mxu0 %v1267
      %1742 = vmatpush.bf16.msra.mxu0 %v1266
      %1743 = vmatpush.bf16.msra.mxu0 %v1265
      %1744 = vmatmul.bf16.gmra.mxu0 %v827
      %v1745 = vpop.f32.mrf.mxu0
      %v1746 = vadd.f32 %v1657, %v1745
      %v1747 = vpop.f32.mrf.mxu0
      %v1748 = vadd.f32 %v1659, %v1747
      %1749 = vmatmul.bf16.gmra.mxu0 %v834
      %v1750 = vpop.f32.mrf.mxu0
      %v1751 = vadd.f32 %v1662, %v1750
      %v1752 = vpop.f32.mrf.mxu0
      %v1753 = vadd.f32 %v1664, %v1752
      %1754 = vmatmul.bf16.gmra.mxu0 %v841
      %v1755 = vpop.f32.mrf.mxu0
      %v1756 = vadd.f32 %v1667, %v1755
      %v1757 = vpop.f32.mrf.mxu0
      %v1758 = vadd.f32 %v1669, %v1757
      %1759 = vmatmul.bf16.gmra.mxu0 %v848
      %v1760 = vpop.f32.mrf.mxu0
      %v1761 = vadd.f32 %v1672, %v1760
      %v1762 = vpop.f32.mrf.mxu0
      %v1763 = vadd.f32 %v1674, %v1762
      %1764 = vmatmul.bf16.gmra.mxu0 %v855
      %v1765 = vpop.f32.mrf.mxu0
      %v1766 = vadd.f32 %v1677, %v1765
      %v1767 = vpop.f32.mrf.mxu0
      %v1768 = vadd.f32 %v1679, %v1767
      %1769 = vmatmul.bf16.gmra.mxu0 %v862
      %v1770 = vpop.f32.mrf.mxu0
      %v1771 = vadd.f32 %v1682, %v1770
      %v1772 = vpop.f32.mrf.mxu0
      %v1773 = vadd.f32 %v1684, %v1772
      %1774 = vmatmul.bf16.gmra.mxu0 %v869
      %v1775 = vpop.f32.mrf.mxu0
      %v1776 = vadd.f32 %v1687, %v1775
      %v1777 = vpop.f32.mrf.mxu0
      %v1778 = vadd.f32 %v1689, %v1777
      %1779 = vmatmul.bf16.gmra.mxu0 %v876
      %v1780 = vpop.f32.mrf.mxu0
      %v1781 = vadd.f32 %v1692, %v1780
      %v1782 = vpop.f32.mrf.mxu0
      %v1783 = vadd.f32 %v1694, %v1782
      %1784 = vmatmul.bf16.gmra.mxu0 %v883
      %v1785 = vpop.f32.mrf.mxu0
      %v1786 = vadd.f32 %v1697, %v1785
      %v1787 = vpop.f32.mrf.mxu0
      %v1788 = vadd.f32 %v1699, %v1787
      %1789 = vmatmul.bf16.gmra.mxu0 %v890
      %v1790 = vpop.f32.mrf.mxu0
      %v1791 = vadd.f32 %v1702, %v1790
      %v1792 = vpop.f32.mrf.mxu0
      %v1793 = vadd.f32 %v1704, %v1792
      %1794 = vmatmul.bf16.gmra.mxu0 %v897
      %v1795 = vpop.f32.mrf.mxu0
      %v1796 = vadd.f32 %v1707, %v1795
      %v1797 = vpop.f32.mrf.mxu0
      %v1798 = vadd.f32 %v1709, %v1797
      %1799 = vmatmul.bf16.gmra.mxu0 %v904
      %v1800 = vpop.f32.mrf.mxu0
      %v1801 = vadd.f32 %v1712, %v1800
      %v1802 = vpop.f32.mrf.mxu0
      %v1803 = vadd.f32 %v1714, %v1802
      %1804 = vmatmul.bf16.gmra.mxu0 %v911
      %v1805 = vpop.f32.mrf.mxu0
      %v1806 = vadd.f32 %v1717, %v1805
      %v1807 = vpop.f32.mrf.mxu0
      %v1808 = vadd.f32 %v1719, %v1807
      %1809 = vmatmul.bf16.gmra.mxu0 %v918
      %v1810 = vpop.f32.mrf.mxu0
      %v1811 = vadd.f32 %v1722, %v1810
      %v1812 = vpop.f32.mrf.mxu0
      %v1813 = vadd.f32 %v1724, %v1812
      %1814 = vmatmul.bf16.gmra.mxu0 %v925
      %v1815 = vpop.f32.mrf.mxu0
      %v1816 = vadd.f32 %v1727, %v1815
      %v1817 = vpop.f32.mrf.mxu0
      %v1818 = vadd.f32 %v1729, %v1817
      %1819 = vmatmul.bf16.gmra.mxu0 %v932
      %v1820 = vpop.f32.mrf.mxu0
      %v1821 = vadd.f32 %v1732, %v1820
      %v1822 = vpop.f32.mrf.mxu0
      %v1823 = vadd.f32 %v1734, %v1822
      %1824 = vdwg.mxu0
      %1825 = vmatpush.bf16.msra.mxu0 %v1280
      %1826 = vmatpush.bf16.msra.mxu0 %v1279
      %1827 = vmatpush.bf16.msra.mxu0 %v1278
      %1828 = vmatpush.bf16.msra.mxu0 %v1277
      %1829 = vmatpush.bf16.msra.mxu0 %v1276
      %1830 = vmatpush.bf16.msra.mxu0 %v1275
      %1831 = vmatpush.bf16.msra.mxu0 %v1274
      %1832 = vmatpush.bf16.msra.mxu0 %v1273
      %1833 = vmatmul.bf16.gmra.mxu0 %v828
      %v1834 = vpop.f32.mrf.mxu0
      %v1835 = vadd.f32 %v1746, %v1834
      %v1836 = vpop.f32.mrf.mxu0
      %v1837 = vadd.f32 %v1748, %v1836
      %1838 = vmatmul.bf16.gmra.mxu0 %v835
      %v1839 = vpop.f32.mrf.mxu0
      %v1840 = vadd.f32 %v1751, %v1839
      %v1841 = vpop.f32.mrf.mxu0
      %v1842 = vadd.f32 %v1753, %v1841
      %1843 = vmatmul.bf16.gmra.mxu0 %v842
      %v1844 = vpop.f32.mrf.mxu0
      %v1845 = vadd.f32 %v1756, %v1844
      %v1846 = vpop.f32.mrf.mxu0
      %v1847 = vadd.f32 %v1758, %v1846
      %1848 = vmatmul.bf16.gmra.mxu0 %v849
      %v1849 = vpop.f32.mrf.mxu0
      %v1850 = vadd.f32 %v1761, %v1849
      %v1851 = vpop.f32.mrf.mxu0
      %v1852 = vadd.f32 %v1763, %v1851
      %1853 = vmatmul.bf16.gmra.mxu0 %v856
      %v1854 = vpop.f32.mrf.mxu0
      %v1855 = vadd.f32 %v1766, %v1854
      %v1856 = vpop.f32.mrf.mxu0
      %v1857 = vadd.f32 %v1768, %v1856
      %1858 = vmatmul.bf16.gmra.mxu0 %v863
      %v1859 = vpop.f32.mrf.mxu0
      %v1860 = vadd.f32 %v1771, %v1859
      %v1861 = vpop.f32.mrf.mxu0
      %v1862 = vadd.f32 %v1773, %v1861
      %1863 = vmatmul.bf16.gmra.mxu0 %v870
      %v1864 = vpop.f32.mrf.mxu0
      %v1865 = vadd.f32 %v1776, %v1864
      %v1866 = vpop.f32.mrf.mxu0
      %v1867 = vadd.f32 %v1778, %v1866
      %1868 = vmatmul.bf16.gmra.mxu0 %v877
      %v1869 = vpop.f32.mrf.mxu0
      %v1870 = vadd.f32 %v1781, %v1869
      %v1871 = vpop.f32.mrf.mxu0
      %v1872 = vadd.f32 %v1783, %v1871
      %1873 = vmatmul.bf16.gmra.mxu0 %v884
      %v1874 = vpop.f32.mrf.mxu0
      %v1875 = vadd.f32 %v1786, %v1874
      %v1876 = vpop.f32.mrf.mxu0
      %v1877 = vadd.f32 %v1788, %v1876
      %1878 = vmatmul.bf16.gmra.mxu0 %v891
      %v1879 = vpop.f32.mrf.mxu0
      %v1880 = vadd.f32 %v1791, %v1879
      %v1881 = vpop.f32.mrf.mxu0
      %v1882 = vadd.f32 %v1793, %v1881
      %1883 = vmatmul.bf16.gmra.mxu0 %v898
      %v1884 = vpop.f32.mrf.mxu0
      %v1885 = vadd.f32 %v1796, %v1884
      %v1886 = vpop.f32.mrf.mxu0
      %v1887 = vadd.f32 %v1798, %v1886
      %1888 = vmatmul.bf16.gmra.mxu0 %v905
      %v1889 = vpop.f32.mrf.mxu0
      %v1890 = vadd.f32 %v1801, %v1889
      %v1891 = vpop.f32.mrf.mxu0
      %v1892 = vadd.f32 %v1803, %v1891
      %1893 = vmatmul.bf16.gmra.mxu0 %v912
      %v1894 = vpop.f32.mrf.mxu0
      %v1895 = vadd.f32 %v1806, %v1894
      %v1896 = vpop.f32.mrf.mxu0
      %v1897 = vadd.f32 %v1808, %v1896
      %1898 = vmatmul.bf16.gmra.mxu0 %v919
      %v1899 = vpop.f32.mrf.mxu0
      %v1900 = vadd.f32 %v1811, %v1899
      %v1901 = vpop.f32.mrf.mxu0
      %v1902 = vadd.f32 %v1813, %v1901
      %1903 = vmatmul.bf16.gmra.mxu0 %v926
      %v1904 = vpop.f32.mrf.mxu0
      %v1905 = vadd.f32 %v1816, %v1904
      %v1906 = vpop.f32.mrf.mxu0
      %v1907 = vadd.f32 %v1818, %v1906
      %1908 = vmatmul.bf16.gmra.mxu0 %v933
      %v1909 = vpop.f32.mrf.mxu0
      %v1910 = vadd.f32 %v1821, %v1909
      %v1911 = vpop.f32.mrf.mxu0
      %v1912 = vadd.f32 %v1823, %v1911
      %1913 = vdwg.mxu0
      %1914 = vmatpush.bf16.msra.mxu0 0
      %1915 = vmatpush.bf16.msra.mxu0 0
      %1916 = vmatpush.bf16.msra.mxu0 0
      %1917 = vmatpush.bf16.msra.mxu0 0
      %1918 = vmatpush.bf16.msra.mxu0 0
      %1919 = vmatpush.bf16.msra.mxu0 0
      %1920 = vmatpush.bf16.msra.mxu0 0
      %1921 = vmatpush.bf16.msra.mxu0 %v1281
      %1922 = vmatmul.bf16.gmra.mxu0 %v1333
      %v1923 = vpop.f32.mrf.mxu0
      %v1924 = vadd.f32 %v1835, %v1923
      %v1925 = vpop.f32.mrf.mxu0
      %v1926 = vadd.f32 %v1837, %v1925
      %1927 = vmatmul.bf16.gmra.mxu0 %v1336
      %v1928 = vpop.f32.mrf.mxu0
      %v1929 = vadd.f32 %v1840, %v1928
      %v1930 = vpop.f32.mrf.mxu0
      %v1931 = vadd.f32 %v1842, %v1930
      %1932 = vmatmul.bf16.gmra.mxu0 %v1339
      %v1933 = vpop.f32.mrf.mxu0
      %v1934 = vadd.f32 %v1845, %v1933
      %v1935 = vpop.f32.mrf.mxu0
      %v1936 = vadd.f32 %v1847, %v1935
      %1937 = vmatmul.bf16.gmra.mxu0 %v1342
      %v1938 = vpop.f32.mrf.mxu0
      %v1939 = vadd.f32 %v1850, %v1938
      %v1940 = vpop.f32.mrf.mxu0
      %v1941 = vadd.f32 %v1852, %v1940
      %1942 = vmatmul.bf16.gmra.mxu0 %v1345
      %v1943 = vpop.f32.mrf.mxu0
      %v1944 = vadd.f32 %v1855, %v1943
      %v1945 = vpop.f32.mrf.mxu0
      %v1946 = vadd.f32 %v1857, %v1945
      %1947 = vmatmul.bf16.gmra.mxu0 %v1348
      %v1948 = vpop.f32.mrf.mxu0
      %v1949 = vadd.f32 %v1860, %v1948
      %v1950 = vpop.f32.mrf.mxu0
      %v1951 = vadd.f32 %v1862, %v1950
      %1952 = vmatmul.bf16.gmra.mxu0 %v1351
      %v1953 = vpop.f32.mrf.mxu0
      %v1954 = vadd.f32 %v1865, %v1953
      %v1955 = vpop.f32.mrf.mxu0
      %v1956 = vadd.f32 %v1867, %v1955
      %1957 = vmatmul.bf16.gmra.mxu0 %v1354
      %v1958 = vpop.f32.mrf.mxu0
      %v1959 = vadd.f32 %v1870, %v1958
      %v1960 = vpop.f32.mrf.mxu0
      %v1961 = vadd.f32 %v1872, %v1960
      %1962 = vmatmul.bf16.gmra.mxu0 %v1357
      %v1963 = vpop.f32.mrf.mxu0
      %v1964 = vadd.f32 %v1875, %v1963
      %v1965 = vpop.f32.mrf.mxu0
      %v1966 = vadd.f32 %v1877, %v1965
      %1967 = vmatmul.bf16.gmra.mxu0 %v1360
      %v1968 = vpop.f32.mrf.mxu0
      %v1969 = vadd.f32 %v1880, %v1968
      %v1970 = vpop.f32.mrf.mxu0
      %v1971 = vadd.f32 %v1882, %v1970
      %1972 = vmatmul.bf16.gmra.mxu0 %v1363
      %v1973 = vpop.f32.mrf.mxu0
      %v1974 = vadd.f32 %v1885, %v1973
      %v1975 = vpop.f32.mrf.mxu0
      %v1976 = vadd.f32 %v1887, %v1975
      %1977 = vmatmul.bf16.gmra.mxu0 %v1366
      %v1978 = vpop.f32.mrf.mxu0
      %v1979 = vadd.f32 %v1890, %v1978
      %v1980 = vpop.f32.mrf.mxu0
      %v1981 = vadd.f32 %v1892, %v1980
      %1982 = vmatmul.bf16.gmra.mxu0 %v1369
      %v1983 = vpop.f32.mrf.mxu0
      %v1984 = vadd.f32 %v1895, %v1983
      %v1985 = vpop.f32.mrf.mxu0
      %v1986 = vadd.f32 %v1897, %v1985
      %1987 = vmatmul.bf16.gmra.mxu0 %v1372
      %v1988 = vpop.f32.mrf.mxu0
      %v1989 = vadd.f32 %v1900, %v1988
      %v1990 = vpop.f32.mrf.mxu0
      %v1991 = vadd.f32 %v1902, %v1990
      %1992 = vmatmul.bf16.gmra.mxu0 %v1375
      %v1993 = vpop.f32.mrf.mxu0
      %v1994 = vadd.f32 %v1905, %v1993
      %v1995 = vpop.f32.mrf.mxu0
      %v1996 = vadd.f32 %v1907, %v1995
      %1997 = vmatmul.bf16.gmra.mxu0 %v1378
      %v1998 = vpop.f32.mrf.mxu0
      %v1999 = vadd.f32 %v1910, %v1998
      %v2000 = vpop.f32.mrf.mxu0
      %v2001 = vadd.f32 %v1912, %v2000
      %2002 = vdwg.mxu0
      %v2003 = vtanh.pop %v1924
      %v2004 = vtanh.pop %v1926
      %v2005 = vtanh.pop %v1929
      %v2006 = vtanh.pop %v1931
      %v2007 = vtanh.pop %v1934
      %v2008 = vtanh.pop %v1936
      %v2009 = vtanh.pop %v1939
      %v2010 = vtanh.pop %v1941
      %v2011 = vtanh.pop %v1944
      %v2012 = vtanh.pop %v1946
      %v2013 = vtanh.pop %v1949
      %v2014 = vtanh.pop %v1951
      %v2015 = vtanh.pop %v1954
      %v2016 = vtanh.pop %v1956
      %v2017 = vtanh.pop %v1959
      %v2018 = vtanh.pop %v1961
      %v2019 = vtanh.pop %v1964
      %v2020 = vtanh.pop %v1966
      %v2021 = vtanh.pop %v1969
      %v2022 = vtanh.pop %v1971
      %v2023 = vtanh.pop %v1974
      %v2024 = vtanh.pop %v1976
      %v2025 = vtanh.pop %v1979
      %v2026 = vtanh.pop %v1981
      %v2027 = vtanh.pop %v1984
      %v2028 = vtanh.pop %v1986
      %v2029 = vtanh.pop %v1989
      %v2030 = vtanh.pop %v1991
      %v2031 = vtanh.pop %v1994
      %v2032 = vtanh.pop %v1996
      %v2033 = vtanh.pop %v1999
      %v2034 = vtanh.pop %v2001
      %v2035 = vld [vmem:[%s3] sm:$0xff]
      %v2036 = vld [vmem:[%s3 + $0x8] sm:$0xff]
      %v2037 = vld [vmem:[%s3 + $0x10] sm:$0xff]
      %v2038 = vld [vmem:[%s3 + $0x18] sm:$0xff]
      %v2039 = vld [vmem:[%s3 + $0x20] sm:$0xff]
      %v2040 = vld [vmem:[%s3 + $0x28] sm:$0xff]
      %v2041 = vld [vmem:[%s3 + $0x30] sm:$0xff]
      %v2042 = vld [vmem:[%s3 + $0x38] sm:$0xff]
      %v2043 = vld [vmem:[%s3 + $0x40] sm:$0xff]
      %v2044 = vld [vmem:[%s3 + $0x48] sm:$0xff]
      %v2045 = vld [vmem:[%s3 + $0x50] sm:$0xff]
      %v2046 = vld [vmem:[%s3 + $0x58] sm:$0xff]
      %v2047 = vld [vmem:[%s3 + $0x60] sm:$0xff]
      %v2048 = vld [vmem:[%s3 + $0x68] sm:$0xff]
      %v2049 = vld [vmem:[%s3 + $0x70] sm:$0xff]
      %v2050 = vld [vmem:[%s3 + $0x78] sm:$0xff]
      %v2051 = vld [vmem:[%s4] sm:$0x1]
      %v2053 = vperm.slane %v2051, 0
      %2055 = vmatpush.msra.mxu0 %v2050
      %2056 = vmatpush.msra.mxu0 %v2049
      %2057 = vmatpush.msra.mxu0 %v2048
      %2058 = vmatpush.msra.mxu0 %v2047
      %2059 = vmatpush.msra.mxu0 %v2046
      %2060 = vmatpush.msra.mxu0 %v2045
      %2061 = vmatpush.msra.mxu0 %v2044
      %2062 = vmatpush.msra.mxu0 %v2043
      %2063 = vmatpush.msra.mxu0 %v2042
      %2064 = vmatpush.msra.mxu0 %v2041
      %2065 = vmatpush.msra.mxu0 %v2040
      %2066 = vmatpush.msra.mxu0 %v2039
      %2067 = vmatpush.msra.mxu0 %v2038
      %2068 = vmatpush.msra.mxu0 %v2037
      %2069 = vmatpush.msra.mxu0 %v2036
      %2070 = vmatpush.msra.mxu0 %v2035
      %2071 = vmatmul.f32.gmra.mxu0 %v2003
      %v2072 = vpop.f32.mrf.mxu0
      %v2073 = vadd.f32 %v2053, %v2072
      %2074 = vmatmul.f32.gmra.mxu0 %v2004
      %v2075 = vpop.f32.mrf.mxu0
      %v2076 = vadd.f32 %v2053, %v2075
      %2077 = vmatmul.f32.gmra.mxu0 %v2005
      %v2078 = vpop.f32.mrf.mxu0
      %v2079 = vadd.f32 %v2053, %v2078
      %2080 = vmatmul.f32.gmra.mxu0 %v2006
      %v2081 = vpop.f32.mrf.mxu0
      %v2082 = vadd.f32 %v2053, %v2081
      %2083 = vmatmul.f32.gmra.mxu0 %v2007
      %v2084 = vpop.f32.mrf.mxu0
      %v2085 = vadd.f32 %v2053, %v2084
      %2086 = vmatmul.f32.gmra.mxu0 %v2008
      %v2087 = vpop.f32.mrf.mxu0
      %v2088 = vadd.f32 %v2053, %v2087
      %2089 = vmatmul.f32.gmra.mxu0 %v2009
      %v2090 = vpop.f32.mrf.mxu0
      %v2091 = vadd.f32 %v2053, %v2090
      %2092 = vmatmul.f32.gmra.mxu0 %v2010
      %v2093 = vpop.f32.mrf.mxu0
      %v2094 = vadd.f32 %v2053, %v2093
      %2095 = vmatmul.f32.gmra.mxu0 %v2011
      %v2096 = vpop.f32.mrf.mxu0
      %v2097 = vadd.f32 %v2053, %v2096
      %2098 = vmatmul.f32.gmra.mxu0 %v2012
      %v2099 = vpop.f32.mrf.mxu0
      %v2100 = vadd.f32 %v2053, %v2099
      %2101 = vmatmul.f32.gmra.mxu0 %v2013
      %v2102 = vpop.f32.mrf.mxu0
      %v2103 = vadd.f32 %v2053, %v2102
      %2104 = vmatmul.f32.gmra.mxu0 %v2014
      %v2105 = vpop.f32.mrf.mxu0
      %v2106 = vadd.f32 %v2053, %v2105
      %2107 = vmatmul.f32.gmra.mxu0 %v2015
      %v2108 = vpop.f32.mrf.mxu0
      %v2109 = vadd.f32 %v2053, %v2108
      %2110 = vmatmul.f32.gmra.mxu0 %v2016
      %v2111 = vpop.f32.mrf.mxu0
      %v2112 = vadd.f32 %v2053, %v2111
      %2113 = vmatmul.f32.gmra.mxu0 %v2017
      %v2114 = vpop.f32.mrf.mxu0
      %v2115 = vadd.f32 %v2053, %v2114
      %2116 = vmatmul.f32.gmra.mxu0 %v2018
      %v2117 = vpop.f32.mrf.mxu0
      %v2118 = vadd.f32 %v2053, %v2117
      %2119 = vmatmul.f32.gmra.mxu0 %v2019
      %v2120 = vpop.f32.mrf.mxu0
      %v2121 = vadd.f32 %v2053, %v2120
      %2122 = vmatmul.f32.gmra.mxu0 %v2020
      %v2123 = vpop.f32.mrf.mxu0
      %v2124 = vadd.f32 %v2053, %v2123
      %2125 = vmatmul.f32.gmra.mxu0 %v2021
      %v2126 = vpop.f32.mrf.mxu0
      %v2127 = vadd.f32 %v2053, %v2126
      %2128 = vmatmul.f32.gmra.mxu0 %v2022
      %v2129 = vpop.f32.mrf.mxu0
      %v2130 = vadd.f32 %v2053, %v2129
      %2131 = vmatmul.f32.gmra.mxu0 %v2023
      %v2132 = vpop.f32.mrf.mxu0
      %v2133 = vadd.f32 %v2053, %v2132
      %2134 = vmatmul.f32.gmra.mxu0 %v2024
      %v2135 = vpop.f32.mrf.mxu0
      %v2136 = vadd.f32 %v2053, %v2135
      %2137 = vmatmul.f32.gmra.mxu0 %v2025
      %v2138 = vpop.f32.mrf.mxu0
      %v2139 = vadd.f32 %v2053, %v2138
      %2140 = vmatmul.f32.gmra.mxu0 %v2026
      %v2141 = vpop.f32.mrf.mxu0
      %v2142 = vadd.f32 %v2053, %v2141
      %2143 = vmatmul.f32.gmra.mxu0 %v2027
      %v2144 = vpop.f32.mrf.mxu0
      %v2145 = vadd.f32 %v2053, %v2144
      %2146 = vmatmul.f32.gmra.mxu0 %v2028
      %v2147 = vpop.f32.mrf.mxu0
      %v2148 = vadd.f32 %v2053, %v2147
      %2149 = vmatmul.f32.gmra.mxu0 %v2029
      %v2150 = vpop.f32.mrf.mxu0
      %v2151 = vadd.f32 %v2053, %v2150
      %2152 = vmatmul.f32.gmra.mxu0 %v2030
      %v2153 = vpop.f32.mrf.mxu0
      %v2154 = vadd.f32 %v2053, %v2153
      %2155 = vmatmul.f32.gmra.mxu0 %v2031
      %v2156 = vpop.f32.mrf.mxu0
      %v2157 = vadd.f32 %v2053, %v2156
      %2158 = vmatmul.f32.gmra.mxu0 %v2032
      %v2159 = vpop.f32.mrf.mxu0
      %v2160 = vadd.f32 %v2053, %v2159
      %2161 = vmatmul.f32.gmra.mxu0 %v2033
      %v2162 = vpop.f32.mrf.mxu0
      %v2163 = vadd.f32 %v2053, %v2162
      %2164 = vmatmul.f32.gmra.mxu0 %v2034
      %v2165 = vpop.f32.mrf.mxu0
      %v2166 = vadd.f32 %v2053, %v2165
      %2167 = vdwg.mxu0
      %v2168 = vtanh.pop %v2073
      %v2169 = vtanh.pop %v2076
      %v2170 = vtanh.pop %v2079
      %v2171 = vtanh.pop %v2082
      %v2172 = vtanh.pop %v2085
      %v2173 = vtanh.pop %v2088
      %v2174 = vtanh.pop %v2091
      %v2175 = vtanh.pop %v2094
      %v2176 = vtanh.pop %v2097
      %v2177 = vtanh.pop %v2100
      %v2178 = vtanh.pop %v2103
      %v2179 = vtanh.pop %v2106
      %v2180 = vtanh.pop %v2109
      %v2181 = vtanh.pop %v2112
      %v2182 = vtanh.pop %v2115
      %v2183 = vtanh.pop %v2118
      %v2184 = vtanh.pop %v2121
      %v2185 = vtanh.pop %v2124
      %v2186 = vtanh.pop %v2127
      %v2187 = vtanh.pop %v2130
      %v2188 = vtanh.pop %v2133
      %v2189 = vtanh.pop %v2136
      %v2190 = vtanh.pop %v2139
      %v2191 = vtanh.pop %v2142
      %v2192 = vtanh.pop %v2145
      %v2193 = vtanh.pop %v2148
      %v2194 = vtanh.pop %v2151
      %v2195 = vtanh.pop %v2154
      %v2196 = vtanh.pop %v2157
      %v2197 = vtanh.pop %v2160
      %v2198 = vtanh.pop %v2163
      %v2199 = vtanh.pop %v2166
      %v2200 = vld [vmem:[%s5] sm:$0xff]
      %v2201 = vld [vmem:[%s5 + $0x8] sm:$0xff]
      %v2202 = vld [vmem:[%s5 + $0x10] sm:$0xff]
      %v2203 = vld [vmem:[%s5 + $0x18] sm:$0xff]
      %v2204 = vld [vmem:[%s5 + $0x20] sm:$0xff]
      %v2205 = vld [vmem:[%s5 + $0x28] sm:$0xff]
      %v2206 = vld [vmem:[%s5 + $0x30] sm:$0xff]
      %v2207 = vld [vmem:[%s5 + $0x38] sm:$0xff]
      %v2208 = vld [vmem:[%s6] sm:$0x1]
      %v2210 = vperm.slane %v2208, 0
      %vm2212 = vcmask 523264
      %v2214 = vsel %vm2212, %v2168, 0
      %v2217 = vsel %vm2212, %v2169, 0
      %v2220 = vsel %vm2212, %v2170, 0
      %v2223 = vsel %vm2212, %v2171, 0
      %v2226 = vsel %vm2212, %v2172, 0
      %v2229 = vsel %vm2212, %v2173, 0
      %v2232 = vsel %vm2212, %v2174, 0
      %v2235 = vsel %vm2212, %v2175, 0
      %v2238 = vsel %vm2212, %v2176, 0
      %v2241 = vsel %vm2212, %v2177, 0
      %v2244 = vsel %vm2212, %v2178, 0
      %v2247 = vsel %vm2212, %v2179, 0
      %v2250 = vsel %vm2212, %v2180, 0
      %v2253 = vsel %vm2212, %v2181, 0
      %v2256 = vsel %vm2212, %v2182, 0
      %v2259 = vsel %vm2212, %v2183, 0
      %v2262 = vsel %vm2212, %v2184, 0
      %v2265 = vsel %vm2212, %v2185, 0
      %v2268 = vsel %vm2212, %v2186, 0
      %v2271 = vsel %vm2212, %v2187, 0
      %v2274 = vsel %vm2212, %v2188, 0
      %v2277 = vsel %vm2212, %v2189, 0
      %v2280 = vsel %vm2212, %v2190, 0
      %v2283 = vsel %vm2212, %v2191, 0
      %v2286 = vsel %vm2212, %v2192, 0
      %v2289 = vsel %vm2212, %v2193, 0
      %v2292 = vsel %vm2212, %v2194, 0
      %v2295 = vsel %vm2212, %v2195, 0
      %v2298 = vsel %vm2212, %v2196, 0
      %v2301 = vsel %vm2212, %v2197, 0
      %v2304 = vsel %vm2212, %v2198, 0
      %v2307 = vsel %vm2212, %v2199, 0
      %2309 = vmatpush.msra.mxu0 0.0
      %2310 = vmatpush.msra.mxu0 0.0
      %2311 = vmatpush.msra.mxu0 0.0
      %2312 = vmatpush.msra.mxu0 0.0
      %2313 = vmatpush.msra.mxu0 0.0
      %2314 = vmatpush.msra.mxu0 0.0
      %2315 = vmatpush.msra.mxu0 0.0
      %2316 = vmatpush.msra.mxu0 0.0
      %2317 = vmatpush.msra.mxu0 %v2207
      %2318 = vmatpush.msra.mxu0 %v2206
      %2319 = vmatpush.msra.mxu0 %v2205
      %2320 = vmatpush.msra.mxu0 %v2204
      %2321 = vmatpush.msra.mxu0 %v2203
      %2322 = vmatpush.msra.mxu0 %v2202
      %2323 = vmatpush.msra.mxu0 %v2201
      %2324 = vmatpush.msra.mxu0 %v2200
      %2325 = vmatmul.f32.gmra.mxu0 %v2214
      %v2326 = vpop.f32.mrf.mxu0
      %v2327 = vadd.f32 %v2210, %v2326
      %2328 = vmatmul.f32.gmra.mxu0 %v2217
      %v2329 = vpop.f32.mrf.mxu0
      %v2330 = vadd.f32 %v2210, %v2329
      %2331 = vmatmul.f32.gmra.mxu0 %v2220
      %v2332 = vpop.f32.mrf.mxu0
      %v2333 = vadd.f32 %v2210, %v2332
      %2334 = vmatmul.f32.gmra.mxu0 %v2223
      %v2335 = vpop.f32.mrf.mxu0
      %v2336 = vadd.f32 %v2210, %v2335
      %2337 = vmatmul.f32.gmra.mxu0 %v2226
      %v2338 = vpop.f32.mrf.mxu0
      %v2339 = vadd.f32 %v2210, %v2338
      %2340 = vmatmul.f32.gmra.mxu0 %v2229
      %v2341 = vpop.f32.mrf.mxu0
      %v2342 = vadd.f32 %v2210, %v2341
      %2343 = vmatmul.f32.gmra.mxu0 %v2232
      %v2344 = vpop.f32.mrf.mxu0
      %v2345 = vadd.f32 %v2210, %v2344
      %2346 = vmatmul.f32.gmra.mxu0 %v2235
      %v2347 = vpop.f32.mrf.mxu0
      %v2348 = vadd.f32 %v2210, %v2347
      %2349 = vmatmul.f32.gmra.mxu0 %v2238
      %v2350 = vpop.f32.mrf.mxu0
      %v2351 = vadd.f32 %v2210, %v2350
      %2352 = vmatmul.f32.gmra.mxu0 %v2241
      %v2353 = vpop.f32.mrf.mxu0
      %v2354 = vadd.f32 %v2210, %v2353
      %2355 = vmatmul.f32.gmra.mxu0 %v2244
      %v2356 = vpop.f32.mrf.mxu0
      %v2357 = vadd.f32 %v2210, %v2356
      %2358 = vmatmul.f32.gmra.mxu0 %v2247
      %v2359 = vpop.f32.mrf.mxu0
      %v2360 = vadd.f32 %v2210, %v2359
      %2361 = vmatmul.f32.gmra.mxu0 %v2250
      %v2362 = vpop.f32.mrf.mxu0
      %v2363 = vadd.f32 %v2210, %v2362
      %2364 = vmatmul.f32.gmra.mxu0 %v2253
      %v2365 = vpop.f32.mrf.mxu0
      %v2366 = vadd.f32 %v2210, %v2365
      %2367 = vmatmul.f32.gmra.mxu0 %v2256
      %v2368 = vpop.f32.mrf.mxu0
      %v2369 = vadd.f32 %v2210, %v2368
      %2370 = vmatmul.f32.gmra.mxu0 %v2259
      %v2371 = vpop.f32.mrf.mxu0
      %v2372 = vadd.f32 %v2210, %v2371
      %2373 = vmatmul.f32.gmra.mxu0 %v2262
      %v2374 = vpop.f32.mrf.mxu0
      %v2375 = vadd.f32 %v2210, %v2374
      %2376 = vmatmul.f32.gmra.mxu0 %v2265
      %v2377 = vpop.f32.mrf.mxu0
      %v2378 = vadd.f32 %v2210, %v2377
      %2379 = vmatmul.f32.gmra.mxu0 %v2268
      %v2380 = vpop.f32.mrf.mxu0
      %v2381 = vadd.f32 %v2210, %v2380
      %2382 = vmatmul.f32.gmra.mxu0 %v2271
      %v2383 = vpop.f32.mrf.mxu0
      %v2384 = vadd.f32 %v2210, %v2383
      %2385 = vmatmul.f32.gmra.mxu0 %v2274
      %v2386 = vpop.f32.mrf.mxu0
      %v2387 = vadd.f32 %v2210, %v2386
      %2388 = vmatmul.f32.gmra.mxu0 %v2277
      %v2389 = vpop.f32.mrf.mxu0
      %v2390 = vadd.f32 %v2210, %v2389
      %2391 = vmatmul.f32.gmra.mxu0 %v2280
      %v2392 = vpop.f32.mrf.mxu0
      %v2393 = vadd.f32 %v2210, %v2392
      %2394 = vmatmul.f32.gmra.mxu0 %v2283
      %v2395 = vpop.f32.mrf.mxu0
      %v2396 = vadd.f32 %v2210, %v2395
      %2397 = vmatmul.f32.gmra.mxu0 %v2286
      %v2398 = vpop.f32.mrf.mxu0
      %v2399 = vadd.f32 %v2210, %v2398
      %2400 = vmatmul.f32.gmra.mxu0 %v2289
      %v2401 = vpop.f32.mrf.mxu0
      %v2402 = vadd.f32 %v2210, %v2401
      %2403 = vmatmul.f32.gmra.mxu0 %v2292
      %v2404 = vpop.f32.mrf.mxu0
      %v2405 = vadd.f32 %v2210, %v2404
      %2406 = vmatmul.f32.gmra.mxu0 %v2295
      %v2407 = vpop.f32.mrf.mxu0
      %v2408 = vadd.f32 %v2210, %v2407
      %2409 = vmatmul.f32.gmra.mxu0 %v2298
      %v2410 = vpop.f32.mrf.mxu0
      %v2411 = vadd.f32 %v2210, %v2410
      %2412 = vmatmul.f32.gmra.mxu0 %v2301
      %v2413 = vpop.f32.mrf.mxu0
      %v2414 = vadd.f32 %v2210, %v2413
      %2415 = vmatmul.f32.gmra.mxu0 %v2304
      %v2416 = vpop.f32.mrf.mxu0
      %v2417 = vadd.f32 %v2210, %v2416
      %2418 = vmatmul.f32.gmra.mxu0 %v2307
      %v2419 = vpop.f32.mrf.mxu0
      %v2420 = vadd.f32 %v2210, %v2419
      %2421 = vdwg.mxu0
      %v2422 = vtanh.pop %v2327
      %v2423 = vtanh.pop %v2330
      %v2424 = vtanh.pop %v2333
      %v2425 = vtanh.pop %v2336
      %v2426 = vtanh.pop %v2339
      %v2427 = vtanh.pop %v2342
      %v2428 = vtanh.pop %v2345
      %v2429 = vtanh.pop %v2348
      %v2430 = vtanh.pop %v2351
      %v2431 = vtanh.pop %v2354
      %v2432 = vtanh.pop %v2357
      %v2433 = vtanh.pop %v2360
      %v2434 = vtanh.pop %v2363
      %v2435 = vtanh.pop %v2366
      %v2436 = vtanh.pop %v2369
      %v2437 = vtanh.pop %v2372
      %v2438 = vtanh.pop %v2375
      %v2439 = vtanh.pop %v2378
      %v2440 = vtanh.pop %v2381
      %v2441 = vtanh.pop %v2384
      %v2442 = vtanh.pop %v2387
      %v2443 = vtanh.pop %v2390
      %v2444 = vtanh.pop %v2393
      %v2445 = vtanh.pop %v2396
      %v2446 = vtanh.pop %v2399
      %v2447 = vtanh.pop %v2402
      %v2448 = vtanh.pop %v2405
      %v2449 = vtanh.pop %v2408
      %v2450 = vtanh.pop %v2411
      %v2451 = vtanh.pop %v2414
      %v2452 = vtanh.pop %v2417
      %v2453 = vtanh.pop %v2420
      %v2454 = vld [vmem:[%s7] sm:$0xff]
      %v2455 = vld [vmem:[%s7 + $0x8] sm:$0xf]
      %v2456 = vld [vmem:[%s8] sm:$0x1]
      %v2458 = vperm.slane %v2456, 0
      %vm2460 = vcmask 97280
      %v2462 = vsel %vm2460, %v2422, 0
      %v2465 = vsel %vm2460, %v2423, 0
      %v2468 = vsel %vm2460, %v2424, 0
      %v2471 = vsel %vm2460, %v2425, 0
      %v2474 = vsel %vm2460, %v2426, 0
      %v2477 = vsel %vm2460, %v2427, 0
      %v2480 = vsel %vm2460, %v2428, 0
      %v2483 = vsel %vm2460, %v2429, 0
      %v2486 = vsel %vm2460, %v2430, 0
      %v2489 = vsel %vm2460, %v2431, 0
      %v2492 = vsel %vm2460, %v2432, 0
      %v2495 = vsel %vm2460, %v2433, 0
      %v2498 = vsel %vm2460, %v2434, 0
      %v2501 = vsel %vm2460, %v2435, 0
      %v2504 = vsel %vm2460, %v2436, 0
      %v2507 = vsel %vm2460, %v2437, 0
      %v2510 = vsel %vm2460, %v2438, 0
      %v2513 = vsel %vm2460, %v2439, 0
      %v2516 = vsel %vm2460, %v2440, 0
      %v2519 = vsel %vm2460, %v2441, 0
      %v2522 = vsel %vm2460, %v2442, 0
      %v2525 = vsel %vm2460, %v2443, 0
      %v2528 = vsel %vm2460, %v2444, 0
      %v2531 = vsel %vm2460, %v2445, 0
      %v2534 = vsel %vm2460, %v2446, 0
      %v2537 = vsel %vm2460, %v2447, 0
      %v2540 = vsel %vm2460, %v2448, 0
      %v2543 = vsel %vm2460, %v2449, 0
      %v2546 = vsel %vm2460, %v2450, 0
      %v2549 = vsel %vm2460, %v2451, 0
      %v2552 = vsel %vm2460, %v2452, 0
      %v2555 = vsel %vm2460, %v2453, 0
      %vm2557 = vcmask 1043456
      %v2559 = vsel %vm2557, %v2455, 0
      %2561 = vmatpush.msra.mxu0 0.0
      %2562 = vmatpush.msra.mxu0 0.0
      %2563 = vmatpush.msra.mxu0 0.0
      %2564 = vmatpush.msra.mxu0 0.0
      %2565 = vmatpush.msra.mxu0 0.0
      %2566 = vmatpush.msra.mxu0 0.0
      %2567 = vmatpush.msra.mxu0 0.0
      %2568 = vmatpush.msra.mxu0 0.0
      %2569 = vmatpush.msra.mxu0 0.0
      %2570 = vmatpush.msra.mxu0 0.0
      %2571 = vmatpush.msra.mxu0 0.0
      %2572 = vmatpush.msra.mxu0 0.0
      %2573 = vmatpush.msra.mxu0 0.0
      %2574 = vmatpush.msra.mxu0 0.0
      %2575 = vmatpush.msra.mxu0 %v2559
      %2576 = vmatpush.msra.mxu0 %v2454
      %2577 = vmatmul.f32.gmra.mxu0 %v2462
      %v2578 = vpop.f32.mrf.mxu0
      %v2579 = vadd.f32 %v2458, %v2578
      %2580 = vmatmul.f32.gmra.mxu0 %v2465
      %v2581 = vpop.f32.mrf.mxu0
      %v2582 = vadd.f32 %v2458, %v2581
      %2583 = vmatmul.f32.gmra.mxu0 %v2468
      %v2584 = vpop.f32.mrf.mxu0
      %v2585 = vadd.f32 %v2458, %v2584
      %2586 = vmatmul.f32.gmra.mxu0 %v2471
      %v2587 = vpop.f32.mrf.mxu0
      %v2588 = vadd.f32 %v2458, %v2587
      %2589 = vmatmul.f32.gmra.mxu0 %v2474
      %v2590 = vpop.f32.mrf.mxu0
      %v2591 = vadd.f32 %v2458, %v2590
      %2592 = vmatmul.f32.gmra.mxu0 %v2477
      %v2593 = vpop.f32.mrf.mxu0
      %v2594 = vadd.f32 %v2458, %v2593
      %2595 = vmatmul.f32.gmra.mxu0 %v2480
      %v2596 = vpop.f32.mrf.mxu0
      %v2597 = vadd.f32 %v2458, %v2596
      %2598 = vmatmul.f32.gmra.mxu0 %v2483
      %v2599 = vpop.f32.mrf.mxu0
      %v2600 = vadd.f32 %v2458, %v2599
      %2601 = vmatmul.f32.gmra.mxu0 %v2486
      %v2602 = vpop.f32.mrf.mxu0
      %v2603 = vadd.f32 %v2458, %v2602
      %2604 = vmatmul.f32.gmra.mxu0 %v2489
      %v2605 = vpop.f32.mrf.mxu0
      %v2606 = vadd.f32 %v2458, %v2605
      %2607 = vmatmul.f32.gmra.mxu0 %v2492
      %v2608 = vpop.f32.mrf.mxu0
      %v2609 = vadd.f32 %v2458, %v2608
      %2610 = vmatmul.f32.gmra.mxu0 %v2495
      %v2611 = vpop.f32.mrf.mxu0
      %v2612 = vadd.f32 %v2458, %v2611
      %2613 = vmatmul.f32.gmra.mxu0 %v2498
      %v2614 = vpop.f32.mrf.mxu0
      %v2615 = vadd.f32 %v2458, %v2614
      %2616 = vmatmul.f32.gmra.mxu0 %v2501
      %v2617 = vpop.f32.mrf.mxu0
      %v2618 = vadd.f32 %v2458, %v2617
      %2619 = vmatmul.f32.gmra.mxu0 %v2504
      %v2620 = vpop.f32.mrf.mxu0
      %v2621 = vadd.f32 %v2458, %v2620
      %2622 = vmatmul.f32.gmra.mxu0 %v2507
      %v2623 = vpop.f32.mrf.mxu0
      %v2624 = vadd.f32 %v2458, %v2623
      %2625 = vmatmul.f32.gmra.mxu0 %v2510
      %v2626 = vpop.f32.mrf.mxu0
      %v2627 = vadd.f32 %v2458, %v2626
      %2628 = vmatmul.f32.gmra.mxu0 %v2513
      %v2629 = vpop.f32.mrf.mxu0
      %v2630 = vadd.f32 %v2458, %v2629
      %2631 = vmatmul.f32.gmra.mxu0 %v2516
      %v2632 = vpop.f32.mrf.mxu0
      %v2633 = vadd.f32 %v2458, %v2632
      %2634 = vmatmul.f32.gmra.mxu0 %v2519
      %v2635 = vpop.f32.mrf.mxu0
      %v2636 = vadd.f32 %v2458, %v2635
      %2637 = vmatmul.f32.gmra.mxu0 %v2522
      %v2638 = vpop.f32.mrf.mxu0
      %v2639 = vadd.f32 %v2458, %v2638
      %2640 = vmatmul.f32.gmra.mxu0 %v2525
      %v2641 = vpop.f32.mrf.mxu0
      %v2642 = vadd.f32 %v2458, %v2641
      %2643 = vmatmul.f32.gmra.mxu0 %v2528
      %v2644 = vpop.f32.mrf.mxu0
      %v2645 = vadd.f32 %v2458, %v2644
      %2646 = vmatmul.f32.gmra.mxu0 %v2531
      %v2647 = vpop.f32.mrf.mxu0
      %v2648 = vadd.f32 %v2458, %v2647
      %2649 = vmatmul.f32.gmra.mxu0 %v2534
      %v2650 = vpop.f32.mrf.mxu0
      %v2651 = vadd.f32 %v2458, %v2650
      %2652 = vmatmul.f32.gmra.mxu0 %v2537
      %v2653 = vpop.f32.mrf.mxu0
      %v2654 = vadd.f32 %v2458, %v2653
      %2655 = vmatmul.f32.gmra.mxu0 %v2540
      %v2656 = vpop.f32.mrf.mxu0
      %v2657 = vadd.f32 %v2458, %v2656
      %2658 = vmatmul.f32.gmra.mxu0 %v2543
      %v2659 = vpop.f32.mrf.mxu0
      %v2660 = vadd.f32 %v2458, %v2659
      %2661 = vmatmul.f32.gmra.mxu0 %v2546
      %v2662 = vpop.f32.mrf.mxu0
      %v2663 = vadd.f32 %v2458, %v2662
      %2664 = vmatmul.f32.gmra.mxu0 %v2549
      %v2665 = vpop.f32.mrf.mxu0
      %v2666 = vadd.f32 %v2458, %v2665
      %2667 = vmatmul.f32.gmra.mxu0 %v2552
      %v2668 = vpop.f32.mrf.mxu0
      %v2669 = vadd.f32 %v2458, %v2668
      %2670 = vmatmul.f32.gmra.mxu0 %v2555
      %v2671 = vpop.f32.mrf.mxu0
      %v2672 = vadd.f32 %v2458, %v2671
      %2673 = vdwg.mxu0
      %v2674 = vld [vmem:[%s9] sm:$0x7]
      %v2675 = vld [vmem:[%s10] sm:$0x1]
      %v2677 = vperm.slane %v2675, 0
      %vm2679 = vcmask 23552
      %v2681 = vsel %vm2679, %v2579, 0
      %v2684 = vsel %vm2679, %v2582, 0
      %v2687 = vsel %vm2679, %v2585, 0
      %v2690 = vsel %vm2679, %v2588, 0
      %v2693 = vsel %vm2679, %v2591, 0
      %v2696 = vsel %vm2679, %v2594, 0
      %v2699 = vsel %vm2679, %v2597, 0
      %v2702 = vsel %vm2679, %v2600, 0
      %v2705 = vsel %vm2679, %v2603, 0
      %v2708 = vsel %vm2679, %v2606, 0
      %v2711 = vsel %vm2679, %v2609, 0
      %v2714 = vsel %vm2679, %v2612, 0
      %v2717 = vsel %vm2679, %v2615, 0
      %v2720 = vsel %vm2679, %v2618, 0
      %v2723 = vsel %vm2679, %v2621, 0
      %v2726 = vsel %vm2679, %v2624, 0
      %v2729 = vsel %vm2679, %v2627, 0
      %v2732 = vsel %vm2679, %v2630, 0
      %v2735 = vsel %vm2679, %v2633, 0
      %v2738 = vsel %vm2679, %v2636, 0
      %v2741 = vsel %vm2679, %v2639, 0
      %v2744 = vsel %vm2679, %v2642, 0
      %v2747 = vsel %vm2679, %v2645, 0
      %v2750 = vsel %vm2679, %v2648, 0
      %v2753 = vsel %vm2679, %v2651, 0
      %v2756 = vsel %vm2679, %v2654, 0
      %v2759 = vsel %vm2679, %v2657, 0
      %v2762 = vsel %vm2679, %v2660, 0
      %v2765 = vsel %vm2679, %v2663, 0
      %v2768 = vsel %vm2679, %v2666, 0
      %v2771 = vsel %vm2679, %v2669, 0
      %v2774 = vsel %vm2679, %v2672, 0
      %vm2776 = vcmask 1042432
      %v2778 = vsel %vm2776, %v2674, 0
      %2780 = vmatpush.msra.mxu0 0.0
      %2781 = vmatpush.msra.mxu0 0.0
      %2782 = vmatpush.msra.mxu0 0.0
      %2783 = vmatpush.msra.mxu0 0.0
      %2784 = vmatpush.msra.mxu0 0.0
      %2785 = vmatpush.msra.mxu0 0.0
      %2786 = vmatpush.msra.mxu0 0.0
      %2787 = vmatpush.msra.mxu0 0.0
      %2788 = vmatpush.msra.mxu0 0.0
      %2789 = vmatpush.msra.mxu0 0.0
      %2790 = vmatpush.msra.mxu0 0.0
      %2791 = vmatpush.msra.mxu0 0.0
      %2792 = vmatpush.msra.mxu0 0.0
      %2793 = vmatpush.msra.mxu0 0.0
      %2794 = vmatpush.msra.mxu0 0.0
      %2795 = vmatpush.msra.mxu0 %v2778
      %2796 = vmatmul.f32.gmra.mxu0 %v2681
      %v2797 = vpop.f32.mrf.mxu0
      %v2798 = vadd.f32 %v2677, %v2797
      %2799 = vmatmul.f32.gmra.mxu0 %v2684
      %v2800 = vpop.f32.mrf.mxu0
      %v2801 = vadd.f32 %v2677, %v2800
      %2802 = vmatmul.f32.gmra.mxu0 %v2687
      %v2803 = vpop.f32.mrf.mxu0
      %v2804 = vadd.f32 %v2677, %v2803
      %2805 = vmatmul.f32.gmra.mxu0 %v2690
      %v2806 = vpop.f32.mrf.mxu0
      %v2807 = vadd.f32 %v2677, %v2806
      %2808 = vmatmul.f32.gmra.mxu0 %v2693
      %v2809 = vpop.f32.mrf.mxu0
      %v2810 = vadd.f32 %v2677, %v2809
      %2811 = vmatmul.f32.gmra.mxu0 %v2696
      %v2812 = vpop.f32.mrf.mxu0
      %v2813 = vadd.f32 %v2677, %v2812
      %2814 = vmatmul.f32.gmra.mxu0 %v2699
      %v2815 = vpop.f32.mrf.mxu0
      %v2816 = vadd.f32 %v2677, %v2815
      %2817 = vmatmul.f32.gmra.mxu0 %v2702
      %v2818 = vpop.f32.mrf.mxu0
      %v2819 = vadd.f32 %v2677, %v2818
      %2820 = vmatmul.f32.gmra.mxu0 %v2705
      %v2821 = vpop.f32.mrf.mxu0
      %v2822 = vadd.f32 %v2677, %v2821
      %2823 = vmatmul.f32.gmra.mxu0 %v2708
      %v2824 = vpop.f32.mrf.mxu0
      %v2825 = vadd.f32 %v2677, %v2824
      %2826 = vmatmul.f32.gmra.mxu0 %v2711
      %v2827 = vpop.f32.mrf.mxu0
      %v2828 = vadd.f32 %v2677, %v2827
      %2829 = vmatmul.f32.gmra.mxu0 %v2714
      %v2830 = vpop.f32.mrf.mxu0
      %v2831 = vadd.f32 %v2677, %v2830
      %2832 = vmatmul.f32.gmra.mxu0 %v2717
      %v2833 = vpop.f32.mrf.mxu0
      %v2834 = vadd.f32 %v2677, %v2833
      %2835 = vmatmul.f32.gmra.mxu0 %v2720
      %v2836 = vpop.f32.mrf.mxu0
      %v2837 = vadd.f32 %v2677, %v2836
      %2838 = vmatmul.f32.gmra.mxu0 %v2723
      %v2839 = vpop.f32.mrf.mxu0
      %v2840 = vadd.f32 %v2677, %v2839
      %2841 = vmatmul.f32.gmra.mxu0 %v2726
      %v2842 = vpop.f32.mrf.mxu0
      %v2843 = vadd.f32 %v2677, %v2842
      %2844 = vmatmul.f32.gmra.mxu0 %v2729
      %v2845 = vpop.f32.mrf.mxu0
      %v2846 = vadd.f32 %v2677, %v2845
      %2847 = vmatmul.f32.gmra.mxu0 %v2732
      %v2848 = vpop.f32.mrf.mxu0
      %v2849 = vadd.f32 %v2677, %v2848
      %2850 = vmatmul.f32.gmra.mxu0 %v2735
      %v2851 = vpop.f32.mrf.mxu0
      %v2852 = vadd.f32 %v2677, %v2851
      %2853 = vmatmul.f32.gmra.mxu0 %v2738
      %v2854 = vpop.f32.mrf.mxu0
      %v2855 = vadd.f32 %v2677, %v2854
      %2856 = vmatmul.f32.gmra.mxu0 %v2741
      %v2857 = vpop.f32.mrf.mxu0
      %v2858 = vadd.f32 %v2677, %v2857
      %2859 = vmatmul.f32.gmra.mxu0 %v2744
      %v2860 = vpop.f32.mrf.mxu0
      %v2861 = vadd.f32 %v2677, %v2860
      %2862 = vmatmul.f32.gmra.mxu0 %v2747
      %v2863 = vpop.f32.mrf.mxu0
      %v2864 = vadd.f32 %v2677, %v2863
      %2865 = vmatmul.f32.gmra.mxu0 %v2750
      %v2866 = vpop.f32.mrf.mxu0
      %v2867 = vadd.f32 %v2677, %v2866
      %2868 = vmatmul.f32.gmra.mxu0 %v2753
      %v2869 = vpop.f32.mrf.mxu0
      %v2870 = vadd.f32 %v2677, %v2869
      %2871 = vmatmul.f32.gmra.mxu0 %v2756
      %v2872 = vpop.f32.mrf.mxu0
      %v2873 = vadd.f32 %v2677, %v2872
      %2874 = vmatmul.f32.gmra.mxu0 %v2759
      %v2875 = vpop.f32.mrf.mxu0
      %v2876 = vadd.f32 %v2677, %v2875
      %2877 = vmatmul.f32.gmra.mxu0 %v2762
      %v2878 = vpop.f32.mrf.mxu0
      %v2879 = vadd.f32 %v2677, %v2878
      %2880 = vmatmul.f32.gmra.mxu0 %v2765
      %v2881 = vpop.f32.mrf.mxu0
      %v2882 = vadd.f32 %v2677, %v2881
      %2883 = vmatmul.f32.gmra.mxu0 %v2768
      %v2884 = vpop.f32.mrf.mxu0
      %v2885 = vadd.f32 %v2677, %v2884
      %2886 = vmatmul.f32.gmra.mxu0 %v2771
      %v2887 = vpop.f32.mrf.mxu0
      %v2888 = vadd.f32 %v2677, %v2887
      %2889 = vmatmul.f32.gmra.mxu0 %v2774
      %v2890 = vpop.f32.mrf.mxu0
      %v2891 = vadd.f32 %v2677, %v2890
      %2892 = vdwg.mxu0
      %v2893 = vtanh.pop %v2798
      %v2894 = vtanh.pop %v2801
      %v2895 = vtanh.pop %v2804
      %v2896 = vtanh.pop %v2807
      %v2897 = vtanh.pop %v2810
      %v2898 = vtanh.pop %v2813
      %v2899 = vtanh.pop %v2816
      %v2900 = vtanh.pop %v2819
      %v2901 = vtanh.pop %v2822
      %v2902 = vtanh.pop %v2825
      %v2903 = vtanh.pop %v2828
      %v2904 = vtanh.pop %v2831
      %v2905 = vtanh.pop %v2834
      %v2906 = vtanh.pop %v2837
      %v2907 = vtanh.pop %v2840
      %v2908 = vtanh.pop %v2843
      %v2909 = vtanh.pop %v2846
      %v2910 = vtanh.pop %v2849
      %v2911 = vtanh.pop %v2852
      %v2912 = vtanh.pop %v2855
      %v2913 = vtanh.pop %v2858
      %v2914 = vtanh.pop %v2861
      %v2915 = vtanh.pop %v2864
      %v2916 = vtanh.pop %v2867
      %v2917 = vtanh.pop %v2870
      %v2918 = vtanh.pop %v2873
      %v2919 = vtanh.pop %v2876
      %v2920 = vtanh.pop %v2879
      %v2921 = vtanh.pop %v2882
      %v2922 = vtanh.pop %v2885
      %v2923 = vtanh.pop %v2888
      %v2924 = vtanh.pop %v2891
      %v2925 = vld [vmem:[%s11] sm:$0xff]
      %v2926 = vld [vmem:[%s11 + $0x8] sm:$0xf]
      %v2927 = vld [vmem:[%s12] sm:$0x1]
      %v2929 = vperm.slane %v2927, 0
      %v2932 = vsel %vm2460, %v2893, 0
      %v2935 = vsel %vm2460, %v2894, 0
      %v2938 = vsel %vm2460, %v2895, 0
      %v2941 = vsel %vm2460, %v2896, 0
      %v2944 = vsel %vm2460, %v2897, 0
      %v2947 = vsel %vm2460, %v2898, 0
      %v2950 = vsel %vm2460, %v2899, 0
      %v2953 = vsel %vm2460, %v2900, 0
      %v2956 = vsel %vm2460, %v2901, 0
      %v2959 = vsel %vm2460, %v2902, 0
      %v2962 = vsel %vm2460, %v2903, 0
      %v2965 = vsel %vm2460, %v2904, 0
      %v2968 = vsel %vm2460, %v2905, 0
      %v2971 = vsel %vm2460, %v2906, 0
      %v2974 = vsel %vm2460, %v2907, 0
      %v2977 = vsel %vm2460, %v2908, 0
      %v2980 = vsel %vm2460, %v2909, 0
      %v2983 = vsel %vm2460, %v2910, 0
      %v2986 = vsel %vm2460, %v2911, 0
      %v2989 = vsel %vm2460, %v2912, 0
      %v2992 = vsel %vm2460, %v2913, 0
      %v2995 = vsel %vm2460, %v2914, 0
      %v2998 = vsel %vm2460, %v2915, 0
      %v3001 = vsel %vm2460, %v2916, 0
      %v3004 = vsel %vm2460, %v2917, 0
      %v3007 = vsel %vm2460, %v2918, 0
      %v3010 = vsel %vm2460, %v2919, 0
      %v3013 = vsel %vm2460, %v2920, 0
      %v3016 = vsel %vm2460, %v2921, 0
      %v3019 = vsel %vm2460, %v2922, 0
      %v3022 = vsel %vm2460, %v2923, 0
      %v3025 = vsel %vm2460, %v2924, 0
      %v3028 = vsel %vm2557, %v2926, 0
      %3030 = vmatpush.msra.mxu0 0.0
      %3031 = vmatpush.msra.mxu0 0.0
      %3032 = vmatpush.msra.mxu0 0.0
      %3033 = vmatpush.msra.mxu0 0.0
      %3034 = vmatpush.msra.mxu0 0.0
      %3035 = vmatpush.msra.mxu0 0.0
      %3036 = vmatpush.msra.mxu0 0.0
      %3037 = vmatpush.msra.mxu0 0.0
      %3038 = vmatpush.msra.mxu0 0.0
      %3039 = vmatpush.msra.mxu0 0.0
      %3040 = vmatpush.msra.mxu0 0.0
      %3041 = vmatpush.msra.mxu0 0.0
      %3042 = vmatpush.msra.mxu0 0.0
      %3043 = vmatpush.msra.mxu0 0.0
      %3044 = vmatpush.msra.mxu0 %v3028
      %3045 = vmatpush.msra.mxu0 %v2925
      %3046 = vmatmul.f32.gmra.mxu0 %v2932
      %v3047 = vpop.f32.mrf.mxu0
      %v3048 = vadd.f32 %v2929, %v3047
      %3049 = vmatmul.f32.gmra.mxu0 %v2935
      %v3050 = vpop.f32.mrf.mxu0
      %v3051 = vadd.f32 %v2929, %v3050
      %3052 = vmatmul.f32.gmra.mxu0 %v2938
      %v3053 = vpop.f32.mrf.mxu0
      %v3054 = vadd.f32 %v2929, %v3053
      %3055 = vmatmul.f32.gmra.mxu0 %v2941
      %v3056 = vpop.f32.mrf.mxu0
      %v3057 = vadd.f32 %v2929, %v3056
      %3058 = vmatmul.f32.gmra.mxu0 %v2944
      %v3059 = vpop.f32.mrf.mxu0
      %v3060 = vadd.f32 %v2929, %v3059
      %3061 = vmatmul.f32.gmra.mxu0 %v2947
      %v3062 = vpop.f32.mrf.mxu0
      %v3063 = vadd.f32 %v2929, %v3062
      %3064 = vmatmul.f32.gmra.mxu0 %v2950
      %v3065 = vpop.f32.mrf.mxu0
      %v3066 = vadd.f32 %v2929, %v3065
      %3067 = vmatmul.f32.gmra.mxu0 %v2953
      %v3068 = vpop.f32.mrf.mxu0
      %v3069 = vadd.f32 %v2929, %v3068
      %3070 = vmatmul.f32.gmra.mxu0 %v2956
      %v3071 = vpop.f32.mrf.mxu0
      %v3072 = vadd.f32 %v2929, %v3071
      %3073 = vmatmul.f32.gmra.mxu0 %v2959
      %v3074 = vpop.f32.mrf.mxu0
      %v3075 = vadd.f32 %v2929, %v3074
      %3076 = vmatmul.f32.gmra.mxu0 %v2962
      %v3077 = vpop.f32.mrf.mxu0
      %v3078 = vadd.f32 %v2929, %v3077
      %3079 = vmatmul.f32.gmra.mxu0 %v2965
      %v3080 = vpop.f32.mrf.mxu0
      %v3081 = vadd.f32 %v2929, %v3080
      %3082 = vmatmul.f32.gmra.mxu0 %v2968
      %v3083 = vpop.f32.mrf.mxu0
      %v3084 = vadd.f32 %v2929, %v3083
      %3085 = vmatmul.f32.gmra.mxu0 %v2971
      %v3086 = vpop.f32.mrf.mxu0
      %v3087 = vadd.f32 %v2929, %v3086
      %3088 = vmatmul.f32.gmra.mxu0 %v2974
      %v3089 = vpop.f32.mrf.mxu0
      %v3090 = vadd.f32 %v2929, %v3089
      %3091 = vmatmul.f32.gmra.mxu0 %v2977
      %v3092 = vpop.f32.mrf.mxu0
      %v3093 = vadd.f32 %v2929, %v3092
      %3094 = vmatmul.f32.gmra.mxu0 %v2980
      %v3095 = vpop.f32.mrf.mxu0
      %v3096 = vadd.f32 %v2929, %v3095
      %3097 = vmatmul.f32.gmra.mxu0 %v2983
      %v3098 = vpop.f32.mrf.mxu0
      %v3099 = vadd.f32 %v2929, %v3098
      %3100 = vmatmul.f32.gmra.mxu0 %v2986
      %v3101 = vpop.f32.mrf.mxu0
      %v3102 = vadd.f32 %v2929, %v3101
      %3103 = vmatmul.f32.gmra.mxu0 %v2989
      %v3104 = vpop.f32.mrf.mxu0
      %v3105 = vadd.f32 %v2929, %v3104
      %3106 = vmatmul.f32.gmra.mxu0 %v2992
      %v3107 = vpop.f32.mrf.mxu0
      %v3108 = vadd.f32 %v2929, %v3107
      %3109 = vmatmul.f32.gmra.mxu0 %v2995
      %v3110 = vpop.f32.mrf.mxu0
      %v3111 = vadd.f32 %v2929, %v3110
      %3112 = vmatmul.f32.gmra.mxu0 %v2998
      %v3113 = vpop.f32.mrf.mxu0
      %v3114 = vadd.f32 %v2929, %v3113
      %3115 = vmatmul.f32.gmra.mxu0 %v3001
      %v3116 = vpop.f32.mrf.mxu0
      %v3117 = vadd.f32 %v2929, %v3116
      %3118 = vmatmul.f32.gmra.mxu0 %v3004
      %v3119 = vpop.f32.mrf.mxu0
      %v3120 = vadd.f32 %v2929, %v3119
      %3121 = vmatmul.f32.gmra.mxu0 %v3007
      %v3122 = vpop.f32.mrf.mxu0
      %v3123 = vadd.f32 %v2929, %v3122
      %3124 = vmatmul.f32.gmra.mxu0 %v3010
      %v3125 = vpop.f32.mrf.mxu0
      %v3126 = vadd.f32 %v2929, %v3125
      %3127 = vmatmul.f32.gmra.mxu0 %v3013
      %v3128 = vpop.f32.mrf.mxu0
      %v3129 = vadd.f32 %v2929, %v3128
      %3130 = vmatmul.f32.gmra.mxu0 %v3016
      %v3131 = vpop.f32.mrf.mxu0
      %v3132 = vadd.f32 %v2929, %v3131
      %3133 = vmatmul.f32.gmra.mxu0 %v3019
      %v3134 = vpop.f32.mrf.mxu0
      %v3135 = vadd.f32 %v2929, %v3134
      %3136 = vmatmul.f32.gmra.mxu0 %v3022
      %v3137 = vpop.f32.mrf.mxu0
      %v3138 = vadd.f32 %v2929, %v3137
      %3139 = vmatmul.f32.gmra.mxu0 %v3025
      %v3140 = vpop.f32.mrf.mxu0
      %v3141 = vadd.f32 %v2929, %v3140
      %3142 = vdwg.mxu0
      %v3143 = vtanh.pop %v3048
      %v3144 = vtanh.pop %v3051
      %v3145 = vtanh.pop %v3054
      %v3146 = vtanh.pop %v3057
      %v3147 = vtanh.pop %v3060
      %v3148 = vtanh.pop %v3063
      %v3149 = vtanh.pop %v3066
      %v3150 = vtanh.pop %v3069
      %v3151 = vtanh.pop %v3072
      %v3152 = vtanh.pop %v3075
      %v3153 = vtanh.pop %v3078
      %v3154 = vtanh.pop %v3081
      %v3155 = vtanh.pop %v3084
      %v3156 = vtanh.pop %v3087
      %v3157 = vtanh.pop %v3090
      %v3158 = vtanh.pop %v3093
      %v3159 = vtanh.pop %v3096
      %v3160 = vtanh.pop %v3099
      %v3161 = vtanh.pop %v3102
      %v3162 = vtanh.pop %v3105
      %v3163 = vtanh.pop %v3108
      %v3164 = vtanh.pop %v3111
      %v3165 = vtanh.pop %v3114
      %v3166 = vtanh.pop %v3117
      %v3167 = vtanh.pop %v3120
      %v3168 = vtanh.pop %v3123
      %v3169 = vtanh.pop %v3126
      %v3170 = vtanh.pop %v3129
      %v3171 = vtanh.pop %v3132
      %v3172 = vtanh.pop %v3135
      %v3173 = vtanh.pop %v3138
      %v3174 = vtanh.pop %v3141
      %v3175 = vld [vmem:[%s13] sm:$0xff]
      %v3176 = vld [vmem:[%s13 + $0x8] sm:$0xff]
      %v3177 = vld [vmem:[%s13 + $0x10] sm:$0xff]
      %v3178 = vld [vmem:[%s13 + $0x18] sm:$0xff]
      %v3179 = vld [vmem:[%s13 + $0x20] sm:$0xff]
      %v3180 = vld [vmem:[%s13 + $0x28] sm:$0xff]
      %v3181 = vld [vmem:[%s13 + $0x30] sm:$0xff]
      %v3182 = vld [vmem:[%s13 + $0x38] sm:$0xff]
      %v3183 = vld [vmem:[%s14] sm:$0x1]
      %v3185 = vperm.slane %v3183, 0
      %v3188 = vsel %vm2212, %v3143, 0
      %v3191 = vsel %vm2212, %v3144, 0
      %v3194 = vsel %vm2212, %v3145, 0
      %v3197 = vsel %vm2212, %v3146, 0
      %v3200 = vsel %vm2212, %v3147, 0
      %v3203 = vsel %vm2212, %v3148, 0
      %v3206 = vsel %vm2212, %v3149, 0
      %v3209 = vsel %vm2212, %v3150, 0
      %v3212 = vsel %vm2212, %v3151, 0
      %v3215 = vsel %vm2212, %v3152, 0
      %v3218 = vsel %vm2212, %v3153, 0
      %v3221 = vsel %vm2212, %v3154, 0
      %v3224 = vsel %vm2212, %v3155, 0
      %v3227 = vsel %vm2212, %v3156, 0
      %v3230 = vsel %vm2212, %v3157, 0
      %v3233 = vsel %vm2212, %v3158, 0
      %v3236 = vsel %vm2212, %v3159, 0
      %v3239 = vsel %vm2212, %v3160, 0
      %v3242 = vsel %vm2212, %v3161, 0
      %v3245 = vsel %vm2212, %v3162, 0
      %v3248 = vsel %vm2212, %v3163, 0
      %v3251 = vsel %vm2212, %v3164, 0
      %v3254 = vsel %vm2212, %v3165, 0
      %v3257 = vsel %vm2212, %v3166, 0
      %v3260 = vsel %vm2212, %v3167, 0
      %v3263 = vsel %vm2212, %v3168, 0
      %v3266 = vsel %vm2212, %v3169, 0
      %v3269 = vsel %vm2212, %v3170, 0
      %v3272 = vsel %vm2212, %v3171, 0
      %v3275 = vsel %vm2212, %v3172, 0
      %v3278 = vsel %vm2212, %v3173, 0
      %v3281 = vsel %vm2212, %v3174, 0
      %3283 = vmatpush.msra.mxu0 0.0
      %3284 = vmatpush.msra.mxu0 0.0
      %3285 = vmatpush.msra.mxu0 0.0
      %3286 = vmatpush.msra.mxu0 0.0
      %3287 = vmatpush.msra.mxu0 0.0
      %3288 = vmatpush.msra.mxu0 0.0
      %3289 = vmatpush.msra.mxu0 0.0
      %3290 = vmatpush.msra.mxu0 0.0
      %3291 = vmatpush.msra.mxu0 %v3182
      %3292 = vmatpush.msra.mxu0 %v3181
      %3293 = vmatpush.msra.mxu0 %v3180
      %3294 = vmatpush.msra.mxu0 %v3179
      %3295 = vmatpush.msra.mxu0 %v3178
      %3296 = vmatpush.msra.mxu0 %v3177
      %3297 = vmatpush.msra.mxu0 %v3176
      %3298 = vmatpush.msra.mxu0 %v3175
      %3299 = vmatmul.f32.gmra.mxu0 %v3188
      %v3300 = vpop.f32.mrf.mxu0
      %v3301 = vadd.f32 %v3185, %v3300
      %3302 = vmatmul.f32.gmra.mxu0 %v3191
      %v3303 = vpop.f32.mrf.mxu0
      %v3304 = vadd.f32 %v3185, %v3303
      %3305 = vmatmul.f32.gmra.mxu0 %v3194
      %v3306 = vpop.f32.mrf.mxu0
      %v3307 = vadd.f32 %v3185, %v3306
      %3308 = vmatmul.f32.gmra.mxu0 %v3197
      %v3309 = vpop.f32.mrf.mxu0
      %v3310 = vadd.f32 %v3185, %v3309
      %3311 = vmatmul.f32.gmra.mxu0 %v3200
      %v3312 = vpop.f32.mrf.mxu0
      %v3313 = vadd.f32 %v3185, %v3312
      %3314 = vmatmul.f32.gmra.mxu0 %v3203
      %v3315 = vpop.f32.mrf.mxu0
      %v3316 = vadd.f32 %v3185, %v3315
      %3317 = vmatmul.f32.gmra.mxu0 %v3206
      %v3318 = vpop.f32.mrf.mxu0
      %v3319 = vadd.f32 %v3185, %v3318
      %3320 = vmatmul.f32.gmra.mxu0 %v3209
      %v3321 = vpop.f32.mrf.mxu0
      %v3322 = vadd.f32 %v3185, %v3321
      %3323 = vmatmul.f32.gmra.mxu0 %v3212
      %v3324 = vpop.f32.mrf.mxu0
      %v3325 = vadd.f32 %v3185, %v3324
      %3326 = vmatmul.f32.gmra.mxu0 %v3215
      %v3327 = vpop.f32.mrf.mxu0
      %v3328 = vadd.f32 %v3185, %v3327
      %3329 = vmatmul.f32.gmra.mxu0 %v3218
      %v3330 = vpop.f32.mrf.mxu0
      %v3331 = vadd.f32 %v3185, %v3330
      %3332 = vmatmul.f32.gmra.mxu0 %v3221
      %v3333 = vpop.f32.mrf.mxu0
      %v3334 = vadd.f32 %v3185, %v3333
      %3335 = vmatmul.f32.gmra.mxu0 %v3224
      %v3336 = vpop.f32.mrf.mxu0
      %v3337 = vadd.f32 %v3185, %v3336
      %3338 = vmatmul.f32.gmra.mxu0 %v3227
      %v3339 = vpop.f32.mrf.mxu0
      %v3340 = vadd.f32 %v3185, %v3339
      %3341 = vmatmul.f32.gmra.mxu0 %v3230
      %v3342 = vpop.f32.mrf.mxu0
      %v3343 = vadd.f32 %v3185, %v3342
      %3344 = vmatmul.f32.gmra.mxu0 %v3233
      %v3345 = vpop.f32.mrf.mxu0
      %v3346 = vadd.f32 %v3185, %v3345
      %3347 = vmatmul.f32.gmra.mxu0 %v3236
      %v3348 = vpop.f32.mrf.mxu0
      %v3349 = vadd.f32 %v3185, %v3348
      %3350 = vmatmul.f32.gmra.mxu0 %v3239
      %v3351 = vpop.f32.mrf.mxu0
      %v3352 = vadd.f32 %v3185, %v3351
      %3353 = vmatmul.f32.gmra.mxu0 %v3242
      %v3354 = vpop.f32.mrf.mxu0
      %v3355 = vadd.f32 %v3185, %v3354
      %3356 = vmatmul.f32.gmra.mxu0 %v3245
      %v3357 = vpop.f32.mrf.mxu0
      %v3358 = vadd.f32 %v3185, %v3357
      %3359 = vmatmul.f32.gmra.mxu0 %v3248
      %v3360 = vpop.f32.mrf.mxu0
      %v3361 = vadd.f32 %v3185, %v3360
      %3362 = vmatmul.f32.gmra.mxu0 %v3251
      %v3363 = vpop.f32.mrf.mxu0
      %v3364 = vadd.f32 %v3185, %v3363
      %3365 = vmatmul.f32.gmra.mxu0 %v3254
      %v3366 = vpop.f32.mrf.mxu0
      %v3367 = vadd.f32 %v3185, %v3366
      %3368 = vmatmul.f32.gmra.mxu0 %v3257
      %v3369 = vpop.f32.mrf.mxu0
      %v3370 = vadd.f32 %v3185, %v3369
      %3371 = vmatmul.f32.gmra.mxu0 %v3260
      %v3372 = vpop.f32.mrf.mxu0
      %v3373 = vadd.f32 %v3185, %v3372
      %3374 = vmatmul.f32.gmra.mxu0 %v3263
      %v3375 = vpop.f32.mrf.mxu0
      %v3376 = vadd.f32 %v3185, %v3375
      %3377 = vmatmul.f32.gmra.mxu0 %v3266
      %v3378 = vpop.f32.mrf.mxu0
      %v3379 = vadd.f32 %v3185, %v3378
      %3380 = vmatmul.f32.gmra.mxu0 %v3269
      %v3381 = vpop.f32.mrf.mxu0
      %v3382 = vadd.f32 %v3185, %v3381
      %3383 = vmatmul.f32.gmra.mxu0 %v3272
      %v3384 = vpop.f32.mrf.mxu0
      %v3385 = vadd.f32 %v3185, %v3384
      %3386 = vmatmul.f32.gmra.mxu0 %v3275
      %v3387 = vpop.f32.mrf.mxu0
      %v3388 = vadd.f32 %v3185, %v3387
      %3389 = vmatmul.f32.gmra.mxu0 %v3278
      %v3390 = vpop.f32.mrf.mxu0
      %v3391 = vadd.f32 %v3185, %v3390
      %3392 = vmatmul.f32.gmra.mxu0 %v3281
      %v3393 = vpop.f32.mrf.mxu0
      %v3394 = vadd.f32 %v3185, %v3393
      %3395 = vdwg.mxu0
      %v3396 = vtanh.pop %v3301
      %v3397 = vtanh.pop %v3304
      %v3398 = vtanh.pop %v3307
      %v3399 = vtanh.pop %v3310
      %v3400 = vtanh.pop %v3313
      %v3401 = vtanh.pop %v3316
      %v3402 = vtanh.pop %v3319
      %v3403 = vtanh.pop %v3322
      %v3404 = vtanh.pop %v3325
      %v3405 = vtanh.pop %v3328
      %v3406 = vtanh.pop %v3331
      %v3407 = vtanh.pop %v3334
      %v3408 = vtanh.pop %v3337
      %v3409 = vtanh.pop %v3340
      %v3410 = vtanh.pop %v3343
      %v3411 = vtanh.pop %v3346
      %v3412 = vtanh.pop %v3349
      %v3413 = vtanh.pop %v3352
      %v3414 = vtanh.pop %v3355
      %v3415 = vtanh.pop %v3358
      %v3416 = vtanh.pop %v3361
      %v3417 = vtanh.pop %v3364
      %v3418 = vtanh.pop %v3367
      %v3419 = vtanh.pop %v3370
      %v3420 = vtanh.pop %v3373
      %v3421 = vtanh.pop %v3376
      %v3422 = vtanh.pop %v3379
      %v3423 = vtanh.pop %v3382
      %v3424 = vtanh.pop %v3385
      %v3425 = vtanh.pop %v3388
      %v3426 = vtanh.pop %v3391
      %v3427 = vtanh.pop %v3394
      %v3428 = vpack.c.bf16 %v3397, %v3396
      %v3429 = vpack.c.bf16 %v3399, %v3398
      %v3430 = vpack.c.bf16 %v3401, %v3400
      %v3431 = vpack.c.bf16 %v3403, %v3402
      %v3432 = vpack.c.bf16 %v3405, %v3404
      %v3433 = vpack.c.bf16 %v3407, %v3406
      %v3434 = vpack.c.bf16 %v3409, %v3408
      %v3435 = vpack.c.bf16 %v3411, %v3410
      %v3436 = vpack.c.bf16 %v3413, %v3412
      %v3437 = vpack.c.bf16 %v3415, %v3414
      %v3438 = vpack.c.bf16 %v3417, %v3416
      %v3439 = vpack.c.bf16 %v3419, %v3418
      %v3440 = vpack.c.bf16 %v3421, %v3420
      %v3441 = vpack.c.bf16 %v3423, %v3422
      %v3442 = vpack.c.bf16 %v3425, %v3424
      %v3443 = vpack.c.bf16 %v3427, %v3426
      %v3444 = vld [vmem:[%s15] sm:$0xff]
      %v3445 = vld [vmem:[%s15 + $0x8] sm:$0xff]
      %v3446 = vld [vmem:[%s15 + $0x10] sm:$0xff]
      %v3447 = vld [vmem:[%s15 + $0x18] sm:$0xf]
      %v3448 = vld [vmem:[%s15 + $0x1c] sm:$0xff]
      %v3449 = vld [vmem:[%s15 + $0x24] sm:$0xff]
      %v3450 = vld [vmem:[%s15 + $0x2c] sm:$0xff]
      %v3451 = vld [vmem:[%s15 + $0x34] sm:$0xf]
      %v3452 = vld [vmem:[%s15 + $0x38] sm:$0xff]
      %v3453 = vld [vmem:[%s15 + $0x40] sm:$0xff]
      %v3454 = vld [vmem:[%s15 + $0x48] sm:$0xff]
      %v3455 = vld [vmem:[%s15 + $0x50] sm:$0xf]
      %v3456 = vld [vmem:[%s15 + $0x54] sm:$0xff]
      %v3457 = vld [vmem:[%s15 + $0x5c] sm:$0xff]
      %v3458 = vld [vmem:[%s15 + $0x64] sm:$0xff]
      %v3459 = vld [vmem:[%s15 + $0x6c] sm:$0xf]
      %v3460 = vld [vmem:[%s15 + $0x70] sm:$0xff]
      %v3461 = vld [vmem:[%s15 + $0x78] sm:$0xff]
      %v3462 = vld [vmem:[%s15 + $0x80] sm:$0xff]
      %v3463 = vld [vmem:[%s15 + $0x88] sm:$0xf]
      %v3464 = vld [vmem:[%s15 + $0x8c] sm:$0xff]
      %v3465 = vld [vmem:[%s15 + $0x94] sm:$0xff]
      %v3466 = vld [vmem:[%s15 + $0x9c] sm:$0xff]
      %v3467 = vld [vmem:[%s15 + $0xa4] sm:$0xf]
      %v3468 = vld [vmem:[%s15 + $0xa8] sm:$0xff]
      %v3469 = vld [vmem:[%s15 + $0xb0] sm:$0xff]
      %v3470 = vld [vmem:[%s15 + $0xb8] sm:$0xff]
      %v3471 = vld [vmem:[%s15 + $0xc0] sm:$0xf]
      %v3472 = vld [vmem:[%s15 + $0xc4] sm:$0xff]
      %v3473 = vld [vmem:[%s15 + $0xcc] sm:$0xff]
      %v3474 = vld [vmem:[%s15 + $0xd4] sm:$0xff]
      %v3475 = vld [vmem:[%s15 + $0xdc] sm:$0xf]
      %v3476 = vld [vmem:[%s15 + $0xe0] sm:$0xff]
      %v3477 = vld [vmem:[%s15 + $0xe8] sm:$0xff]
      %v3478 = vld [vmem:[%s15 + $0xf0] sm:$0xff]
      %v3479 = vld [vmem:[%s15 + $0xf8] sm:$0xf]
      %v3480 = vld [vmem:[%s15 + $0xfc] sm:$0xff]
      %v3481 = vld [vmem:[%s15 + $0x104] sm:$0xff]
      %v3482 = vld [vmem:[%s15 + $0x10c] sm:$0xff]
      %v3483 = vld [vmem:[%s15 + $0x114] sm:$0xf]
      %v3484 = vld [vmem:[%s15 + $0x118] sm:$0xff]
      %v3485 = vld [vmem:[%s15 + $0x120] sm:$0xff]
      %v3486 = vld [vmem:[%s15 + $0x128] sm:$0xff]
      %v3487 = vld [vmem:[%s15 + $0x130] sm:$0xf]
      %v3488 = vld [vmem:[%s15 + $0x134] sm:$0xff]
      %v3489 = vld [vmem:[%s15 + $0x13c] sm:$0xff]
      %v3490 = vld [vmem:[%s15 + $0x144] sm:$0xff]
      %v3491 = vld [vmem:[%s15 + $0x14c] sm:$0xf]
      %v3492 = vld [vmem:[%s15 + $0x150] sm:$0xff]
      %v3493 = vld [vmem:[%s15 + $0x158] sm:$0xff]
      %v3494 = vld [vmem:[%s15 + $0x160] sm:$0xff]
      %v3495 = vld [vmem:[%s15 + $0x168] sm:$0xf]
      %v3496 = vld [vmem:[%s15 + $0x16c] sm:$0xff]
      %v3497 = vld [vmem:[%s15 + $0x174] sm:$0xff]
      %v3498 = vld [vmem:[%s15 + $0x17c] sm:$0xff]
      %v3499 = vld [vmem:[%s15 + $0x184] sm:$0xf]
      %v3500 = vld [vmem:[%s15 + $0x188] sm:$0xff]
      %v3501 = vld [vmem:[%s15 + $0x190] sm:$0xff]
      %v3502 = vld [vmem:[%s15 + $0x198] sm:$0xff]
      %v3503 = vld [vmem:[%s15 + $0x1a0] sm:$0xf]
      %v3504 = vld [vmem:[%s15 + $0x1a4] sm:$0xff]
      %v3505 = vld [vmem:[%s15 + $0x1ac] sm:$0xff]
      %v3506 = vld [vmem:[%s15 + $0x1b4] sm:$0xff]
      %v3507 = vld [vmem:[%s15 + $0x1bc] sm:$0xf]
      %v3508 = vld [vmem:[%s16] sm:$0x7f]
      %v3510 = vperm.slane %v3508, 0
      %v3511 = vperm.slane %v3508, 1
      %v3512 = vperm.slane %v3508, 2
      %v3513 = vperm.slane %v3508, 3
      %v3514 = vperm.slane %v3508, 4
      %v3515 = vperm.slane %v3508, 5
      %v3516 = vperm.slane %v3508, 6
      %v3588 = vunpack.c.l.b16 %v3444
      %v3589 = vunpack.c.h.b16 %v3444
      %v3590 = vunpack.c.l.b16 %v3445
      %v3591 = vunpack.c.h.b16 %v3445
      %v3592 = vunpack.c.l.b16 %v3446
      %v3593 = vunpack.c.h.b16 %v3446
      %v3594 = vunpack.c.l.b16 %v3447
      %v3595 = vunpack.c.l.b16 %v3448
      %v3596 = vunpack.c.h.b16 %v3448
      %v3597 = vunpack.c.l.b16 %v3449
      %v3598 = vunpack.c.h.b16 %v3449
      %v3599 = vunpack.c.l.b16 %v3450
      %v3600 = vunpack.c.h.b16 %v3450
      %v3601 = vunpack.c.l.b16 %v3451
      %v3602 = vunpack.c.l.b16 %v3452
      %v3603 = vunpack.c.h.b16 %v3452
      %v3604 = vunpack.c.l.b16 %v3453
      %v3605 = vunpack.c.h.b16 %v3453
      %v3606 = vunpack.c.l.b16 %v3454
      %v3607 = vunpack.c.h.b16 %v3454
      %v3608 = vunpack.c.l.b16 %v3455
      %v3609 = vunpack.c.l.b16 %v3456
      %v3610 = vunpack.c.h.b16 %v3456
      %v3611 = vunpack.c.l.b16 %v3457
      %v3612 = vunpack.c.h.b16 %v3457
      %v3613 = vunpack.c.l.b16 %v3458
      %v3614 = vunpack.c.h.b16 %v3458
      %v3615 = vunpack.c.l.b16 %v3459
      %v3616 = vunpack.c.l.b16 %v3460
      %v3617 = vunpack.c.h.b16 %v3460
      %v3618 = vunpack.c.l.b16 %v3461
      %v3619 = vunpack.c.h.b16 %v3461
      %v3620 = vunpack.c.l.b16 %v3462
      %v3621 = vunpack.c.h.b16 %v3462
      %v3622 = vunpack.c.l.b16 %v3463
      %v3623 = vunpack.c.l.b16 %v3464
      %v3624 = vunpack.c.h.b16 %v3464
      %v3625 = vunpack.c.l.b16 %v3465
      %v3626 = vunpack.c.h.b16 %v3465
      %v3627 = vunpack.c.l.b16 %v3466
      %v3628 = vunpack.c.h.b16 %v3466
      %v3629 = vunpack.c.l.b16 %v3467
      %v3630 = vunpack.c.l.b16 %v3468
      %v3631 = vunpack.c.h.b16 %v3468
      %v3632 = vunpack.c.l.b16 %v3469
      %v3633 = vunpack.c.h.b16 %v3469
      %v3634 = vunpack.c.l.b16 %v3470
      %v3635 = vunpack.c.h.b16 %v3470
      %v3636 = vunpack.c.l.b16 %v3471
      %v3637 = vunpack.c.l.b16 %v3472
      %v3638 = vunpack.c.h.b16 %v3472
      %v3639 = vunpack.c.l.b16 %v3473
      %v3640 = vunpack.c.h.b16 %v3473
      %v3641 = vunpack.c.l.b16 %v3474
      %v3642 = vunpack.c.h.b16 %v3474
      %v3643 = vunpack.c.l.b16 %v3475
      %v3644 = vunpack.c.l.b16 %v3476
      %v3645 = vunpack.c.h.b16 %v3476
      %v3646 = vunpack.c.l.b16 %v3477
      %v3647 = vunpack.c.h.b16 %v3477
      %v3648 = vunpack.c.l.b16 %v3478
      %v3649 = vunpack.c.h.b16 %v3478
      %v3650 = vunpack.c.l.b16 %v3479
      %v3651 = vunpack.c.l.b16 %v3480
      %v3652 = vunpack.c.h.b16 %v3480
      %v3653 = vunpack.c.l.b16 %v3481
      %v3654 = vunpack.c.h.b16 %v3481
      %v3655 = vunpack.c.l.b16 %v3482
      %v3656 = vunpack.c.h.b16 %v3482
      %v3657 = vunpack.c.l.b16 %v3483
      %v3658 = vunpack.c.l.b16 %v3484
      %v3659 = vunpack.c.h.b16 %v3484
      %v3660 = vunpack.c.l.b16 %v3485
      %v3661 = vunpack.c.h.b16 %v3485
      %v3662 = vunpack.c.l.b16 %v3486
      %v3663 = vunpack.c.h.b16 %v3486
      %v3664 = vunpack.c.l.b16 %v3487
      %v3665 = vunpack.c.l.b16 %v3488
      %v3666 = vunpack.c.h.b16 %v3488
      %v3667 = vunpack.c.l.b16 %v3489
      %v3668 = vunpack.c.h.b16 %v3489
      %v3669 = vunpack.c.l.b16 %v3490
      %v3670 = vunpack.c.h.b16 %v3490
      %v3671 = vunpack.c.l.b16 %v3491
      %v3672 = vunpack.c.l.b16 %v3492
      %v3673 = vunpack.c.h.b16 %v3492
      %v3674 = vunpack.c.l.b16 %v3493
      %v3675 = vunpack.c.h.b16 %v3493
      %v3676 = vunpack.c.l.b16 %v3494
      %v3677 = vunpack.c.h.b16 %v3494
      %v3678 = vunpack.c.l.b16 %v3495
      %v3679 = vunpack.c.l.b16 %v3496
      %v3680 = vunpack.c.h.b16 %v3496
      %v3681 = vunpack.c.l.b16 %v3497
      %v3682 = vunpack.c.h.b16 %v3497
      %v3683 = vunpack.c.l.b16 %v3498
      %v3684 = vunpack.c.h.b16 %v3498
      %v3685 = vunpack.c.l.b16 %v3499
      %v3686 = vunpack.c.l.b16 %v3500
      %v3687 = vunpack.c.h.b16 %v3500
      %v3688 = vunpack.c.l.b16 %v3501
      %v3689 = vunpack.c.h.b16 %v3501
      %v3690 = vunpack.c.l.b16 %v3502
      %v3691 = vunpack.c.h.b16 %v3502
      %v3692 = vunpack.c.l.b16 %v3503
      %v3693 = vunpack.c.l.b16 %v3504
      %v3694 = vunpack.c.h.b16 %v3504
      %v3695 = vunpack.c.l.b16 %v3505
      %v3696 = vunpack.c.h.b16 %v3505
      %v3697 = vunpack.c.l.b16 %v3506
      %v3698 = vunpack.c.h.b16 %v3506
      %v3699 = vunpack.c.l.b16 %v3507
      %v3700 = vpack.c.b16 %v3595, %v3588
      %v3701 = vpack.c.b16 %v3596, %v3589
      %v3702 = vpack.c.b16 %v3597, %v3590
      %v3703 = vpack.c.b16 %v3598, %v3591
      %v3704 = vpack.c.b16 %v3599, %v3592
      %v3705 = vpack.c.b16 %v3600, %v3593
      %v3706 = vpack.c.b16 %v3601, %v3594
      %v3707 = vpack.c.b16 %v3609, %v3602
      %v3708 = vpack.c.b16 %v3610, %v3603
      %v3709 = vpack.c.b16 %v3611, %v3604
      %v3710 = vpack.c.b16 %v3612, %v3605
      %v3711 = vpack.c.b16 %v3613, %v3606
      %v3712 = vpack.c.b16 %v3614, %v3607
      %v3713 = vpack.c.b16 %v3615, %v3608
      %v3714 = vpack.c.b16 %v3623, %v3616
      %v3715 = vpack.c.b16 %v3624, %v3617
      %v3716 = vpack.c.b16 %v3625, %v3618
      %v3717 = vpack.c.b16 %v3626, %v3619
      %v3718 = vpack.c.b16 %v3627, %v3620
      %v3719 = vpack.c.b16 %v3628, %v3621
      %v3720 = vpack.c.b16 %v3629, %v3622
      %v3721 = vpack.c.b16 %v3637, %v3630
      %v3722 = vpack.c.b16 %v3638, %v3631
      %v3723 = vpack.c.b16 %v3639, %v3632
      %v3724 = vpack.c.b16 %v3640, %v3633
      %v3725 = vpack.c.b16 %v3641, %v3634
      %v3726 = vpack.c.b16 %v3642, %v3635
      %v3727 = vpack.c.b16 %v3643, %v3636
      %v3728 = vpack.c.b16 %v3651, %v3644
      %v3729 = vpack.c.b16 %v3652, %v3645
      %v3730 = vpack.c.b16 %v3653, %v3646
      %v3731 = vpack.c.b16 %v3654, %v3647
      %v3732 = vpack.c.b16 %v3655, %v3648
      %v3733 = vpack.c.b16 %v3656, %v3649
      %v3734 = vpack.c.b16 %v3657, %v3650
      %v3735 = vpack.c.b16 %v3665, %v3658
      %v3736 = vpack.c.b16 %v3666, %v3659
      %v3737 = vpack.c.b16 %v3667, %v3660
      %v3738 = vpack.c.b16 %v3668, %v3661
      %v3739 = vpack.c.b16 %v3669, %v3662
      %v3740 = vpack.c.b16 %v3670, %v3663
      %v3741 = vpack.c.b16 %v3671, %v3664
      %v3742 = vpack.c.b16 %v3679, %v3672
      %v3743 = vpack.c.b16 %v3680, %v3673
      %v3744 = vpack.c.b16 %v3681, %v3674
      %v3745 = vpack.c.b16 %v3682, %v3675
      %v3746 = vpack.c.b16 %v3683, %v3676
      %v3747 = vpack.c.b16 %v3684, %v3677
      %v3748 = vpack.c.b16 %v3685, %v3678
      %v3749 = vpack.c.b16 %v3693, %v3686
      %v3750 = vpack.c.b16 %v3694, %v3687
      %v3751 = vpack.c.b16 %v3695, %v3688
      %v3752 = vpack.c.b16 %v3696, %v3689
      %v3753 = vpack.c.b16 %v3697, %v3690
      %v3754 = vpack.c.b16 %v3698, %v3691
      %v3755 = vpack.c.b16 %v3699, %v3692
      %3812 = vmatpush.bf16.msra.mxu0 %v3749
      %3813 = vmatpush.bf16.msra.mxu0 %v3742
      %3814 = vmatpush.bf16.msra.mxu0 %v3735
      %3815 = vmatpush.bf16.msra.mxu0 %v3728
      %3816 = vmatpush.bf16.msra.mxu0 %v3721
      %3817 = vmatpush.bf16.msra.mxu0 %v3714
      %3818 = vmatpush.bf16.msra.mxu0 %v3707
      %3819 = vmatpush.bf16.msra.mxu0 %v3700
      %3820 = vmatmul.bf16.gmra.mxu0 %v3428
      %v3821 = vpop.f32.mrf.mxu0
      %v3822 = vadd.f32 %v3510, %v3821
      %v3823 = vpop.f32.mrf.mxu0
      %v3824 = vadd.f32 %v3510, %v3823
      %3825 = vmatmul.bf16.gmra.mxu0 %v3429
      %v3826 = vpop.f32.mrf.mxu0
      %v3827 = vadd.f32 %v3510, %v3826
      %v3828 = vpop.f32.mrf.mxu0
      %v3829 = vadd.f32 %v3510, %v3828
      %3830 = vmatmul.bf16.gmra.mxu0 %v3430
      %v3831 = vpop.f32.mrf.mxu0
      %v3832 = vadd.f32 %v3510, %v3831
      %v3833 = vpop.f32.mrf.mxu0
      %v3834 = vadd.f32 %v3510, %v3833
      %3835 = vmatmul.bf16.gmra.mxu0 %v3431
      %v3836 = vpop.f32.mrf.mxu0
      %v3837 = vadd.f32 %v3510, %v3836
      %v3838 = vpop.f32.mrf.mxu0
      %v3839 = vadd.f32 %v3510, %v3838
      %3840 = vmatmul.bf16.gmra.mxu0 %v3432
      %v3841 = vpop.f32.mrf.mxu0
      %v3842 = vadd.f32 %v3510, %v3841
      %v3843 = vpop.f32.mrf.mxu0
      %v3844 = vadd.f32 %v3510, %v3843
      %3845 = vmatmul.bf16.gmra.mxu0 %v3433
      %v3846 = vpop.f32.mrf.mxu0
      %v3847 = vadd.f32 %v3510, %v3846
      %v3848 = vpop.f32.mrf.mxu0
      %v3849 = vadd.f32 %v3510, %v3848
      %3850 = vmatmul.bf16.gmra.mxu0 %v3434
      %v3851 = vpop.f32.mrf.mxu0
      %v3852 = vadd.f32 %v3510, %v3851
      %v3853 = vpop.f32.mrf.mxu0
      %v3854 = vadd.f32 %v3510, %v3853
      %3855 = vmatmul.bf16.gmra.mxu0 %v3435
      %v3856 = vpop.f32.mrf.mxu0
      %v3857 = vadd.f32 %v3510, %v3856
      %v3858 = vpop.f32.mrf.mxu0
      %v3859 = vadd.f32 %v3510, %v3858
      %3860 = vmatmul.bf16.gmra.mxu0 %v3436
      %v3861 = vpop.f32.mrf.mxu0
      %v3862 = vadd.f32 %v3510, %v3861
      %v3863 = vpop.f32.mrf.mxu0
      %v3864 = vadd.f32 %v3510, %v3863
      %3865 = vmatmul.bf16.gmra.mxu0 %v3437
      %v3866 = vpop.f32.mrf.mxu0
      %v3867 = vadd.f32 %v3510, %v3866
      %v3868 = vpop.f32.mrf.mxu0
      %v3869 = vadd.f32 %v3510, %v3868
      %3870 = vmatmul.bf16.gmra.mxu0 %v3438
      %v3871 = vpop.f32.mrf.mxu0
      %v3872 = vadd.f32 %v3510, %v3871
      %v3873 = vpop.f32.mrf.mxu0
      %v3874 = vadd.f32 %v3510, %v3873
      %3875 = vmatmul.bf16.gmra.mxu0 %v3439
      %v3876 = vpop.f32.mrf.mxu0
      %v3877 = vadd.f32 %v3510, %v3876
      %v3878 = vpop.f32.mrf.mxu0
      %v3879 = vadd.f32 %v3510, %v3878
      %3880 = vmatmul.bf16.gmra.mxu0 %v3440
      %v3881 = vpop.f32.mrf.mxu0
      %v3882 = vadd.f32 %v3510, %v3881
      %v3883 = vpop.f32.mrf.mxu0
      %v3884 = vadd.f32 %v3510, %v3883
      %3885 = vmatmul.bf16.gmra.mxu0 %v3441
      %v3886 = vpop.f32.mrf.mxu0
      %v3887 = vadd.f32 %v3510, %v3886
      %v3888 = vpop.f32.mrf.mxu0
      %v3889 = vadd.f32 %v3510, %v3888
      %3890 = vmatmul.bf16.gmra.mxu0 %v3442
      %v3891 = vpop.f32.mrf.mxu0
      %v3892 = vadd.f32 %v3510, %v3891
      %v3893 = vpop.f32.mrf.mxu0
      %v3894 = vadd.f32 %v3510, %v3893
      %3895 = vmatmul.bf16.gmra.mxu0 %v3443
      %v3896 = vpop.f32.mrf.mxu0
      %v3897 = vadd.f32 %v3510, %v3896
      %v3898 = vpop.f32.mrf.mxu0
      %v3899 = vadd.f32 %v3510, %v3898
      %3900 = vdwg.mxu0
      %3901 = vmatpush.bf16.msra.mxu0 %v3750
      %3902 = vmatpush.bf16.msra.mxu0 %v3743
      %3903 = vmatpush.bf16.msra.mxu0 %v3736
      %3904 = vmatpush.bf16.msra.mxu0 %v3729
      %3905 = vmatpush.bf16.msra.mxu0 %v3722
      %3906 = vmatpush.bf16.msra.mxu0 %v3715
      %3907 = vmatpush.bf16.msra.mxu0 %v3708
      %3908 = vmatpush.bf16.msra.mxu0 %v3701
      %3909 = vmatmul.bf16.gmra.mxu0 %v3428
      %v3910 = vpop.f32.mrf.mxu0
      %v3911 = vadd.f32 %v3511, %v3910
      %v3912 = vpop.f32.mrf.mxu0
      %v3913 = vadd.f32 %v3511, %v3912
      %3914 = vmatmul.bf16.gmra.mxu0 %v3429
      %v3915 = vpop.f32.mrf.mxu0
      %v3916 = vadd.f32 %v3511, %v3915
      %v3917 = vpop.f32.mrf.mxu0
      %v3918 = vadd.f32 %v3511, %v3917
      %3919 = vmatmul.bf16.gmra.mxu0 %v3430
      %v3920 = vpop.f32.mrf.mxu0
      %v3921 = vadd.f32 %v3511, %v3920
      %v3922 = vpop.f32.mrf.mxu0
      %v3923 = vadd.f32 %v3511, %v3922
      %3924 = vmatmul.bf16.gmra.mxu0 %v3431
      %v3925 = vpop.f32.mrf.mxu0
      %v3926 = vadd.f32 %v3511, %v3925
      %v3927 = vpop.f32.mrf.mxu0
      %v3928 = vadd.f32 %v3511, %v3927
      %3929 = vmatmul.bf16.gmra.mxu0 %v3432
      %v3930 = vpop.f32.mrf.mxu0
      %v3931 = vadd.f32 %v3511, %v3930
      %v3932 = vpop.f32.mrf.mxu0
      %v3933 = vadd.f32 %v3511, %v3932
      %3934 = vmatmul.bf16.gmra.mxu0 %v3433
      %v3935 = vpop.f32.mrf.mxu0
      %v3936 = vadd.f32 %v3511, %v3935
      %v3937 = vpop.f32.mrf.mxu0
      %v3938 = vadd.f32 %v3511, %v3937
      %3939 = vmatmul.bf16.gmra.mxu0 %v3434
      %v3940 = vpop.f32.mrf.mxu0
      %v3941 = vadd.f32 %v3511, %v3940
      %v3942 = vpop.f32.mrf.mxu0
      %v3943 = vadd.f32 %v3511, %v3942
      %3944 = vmatmul.bf16.gmra.mxu0 %v3435
      %v3945 = vpop.f32.mrf.mxu0
      %v3946 = vadd.f32 %v3511, %v3945
      %v3947 = vpop.f32.mrf.mxu0
      %v3948 = vadd.f32 %v3511, %v3947
      %3949 = vmatmul.bf16.gmra.mxu0 %v3436
      %v3950 = vpop.f32.mrf.mxu0
      %v3951 = vadd.f32 %v3511, %v3950
      %v3952 = vpop.f32.mrf.mxu0
      %v3953 = vadd.f32 %v3511, %v3952
      %3954 = vmatmul.bf16.gmra.mxu0 %v3437
      %v3955 = vpop.f32.mrf.mxu0
      %v3956 = vadd.f32 %v3511, %v3955
      %v3957 = vpop.f32.mrf.mxu0
      %v3958 = vadd.f32 %v3511, %v3957
      %3959 = vmatmul.bf16.gmra.mxu0 %v3438
      %v3960 = vpop.f32.mrf.mxu0
      %v3961 = vadd.f32 %v3511, %v3960
      %v3962 = vpop.f32.mrf.mxu0
      %v3963 = vadd.f32 %v3511, %v3962
      %3964 = vmatmul.bf16.gmra.mxu0 %v3439
      %v3965 = vpop.f32.mrf.mxu0
      %v3966 = vadd.f32 %v3511, %v3965
      %v3967 = vpop.f32.mrf.mxu0
      %v3968 = vadd.f32 %v3511, %v3967
      %3969 = vmatmul.bf16.gmra.mxu0 %v3440
      %v3970 = vpop.f32.mrf.mxu0
      %v3971 = vadd.f32 %v3511, %v3970
      %v3972 = vpop.f32.mrf.mxu0
      %v3973 = vadd.f32 %v3511, %v3972
      %3974 = vmatmul.bf16.gmra.mxu0 %v3441
      %v3975 = vpop.f32.mrf.mxu0
      %v3976 = vadd.f32 %v3511, %v3975
      %v3977 = vpop.f32.mrf.mxu0
      %v3978 = vadd.f32 %v3511, %v3977
      %3979 = vmatmul.bf16.gmra.mxu0 %v3442
      %v3980 = vpop.f32.mrf.mxu0
      %v3981 = vadd.f32 %v3511, %v3980
      %v3982 = vpop.f32.mrf.mxu0
      %v3983 = vadd.f32 %v3511, %v3982
      %3984 = vmatmul.bf16.gmra.mxu0 %v3443
      %v3985 = vpop.f32.mrf.mxu0
      %v3986 = vadd.f32 %v3511, %v3985
      %v3987 = vpop.f32.mrf.mxu0
      %v3988 = vadd.f32 %v3511, %v3987
      %3989 = vdwg.mxu0
      %3990 = vmatpush.bf16.msra.mxu0 %v3751
      %3991 = vmatpush.bf16.msra.mxu0 %v3744
      %3992 = vmatpush.bf16.msra.mxu0 %v3737
      %3993 = vmatpush.bf16.msra.mxu0 %v3730
      %3994 = vmatpush.bf16.msra.mxu0 %v3723
      %3995 = vmatpush.bf16.msra.mxu0 %v3716
      %3996 = vmatpush.bf16.msra.mxu0 %v3709
      %3997 = vmatpush.bf16.msra.mxu0 %v3702
      %3998 = vmatmul.bf16.gmra.mxu0 %v3428
      %v3999 = vpop.f32.mrf.mxu0
      %v4000 = vadd.f32 %v3512, %v3999
      %v4001 = vpop.f32.mrf.mxu0
      %v4002 = vadd.f32 %v3512, %v4001
      %4003 = vmatmul.bf16.gmra.mxu0 %v3429
      %v4004 = vpop.f32.mrf.mxu0
      %v4005 = vadd.f32 %v3512, %v4004
      %v4006 = vpop.f32.mrf.mxu0
      %v4007 = vadd.f32 %v3512, %v4006
      %4008 = vmatmul.bf16.gmra.mxu0 %v3430
      %v4009 = vpop.f32.mrf.mxu0
      %v4010 = vadd.f32 %v3512, %v4009
      %v4011 = vpop.f32.mrf.mxu0
      %v4012 = vadd.f32 %v3512, %v4011
      %4013 = vmatmul.bf16.gmra.mxu0 %v3431
      %v4014 = vpop.f32.mrf.mxu0
      %v4015 = vadd.f32 %v3512, %v4014
      %v4016 = vpop.f32.mrf.mxu0
      %v4017 = vadd.f32 %v3512, %v4016
      %4018 = vmatmul.bf16.gmra.mxu0 %v3432
      %v4019 = vpop.f32.mrf.mxu0
      %v4020 = vadd.f32 %v3512, %v4019
      %v4021 = vpop.f32.mrf.mxu0
      %v4022 = vadd.f32 %v3512, %v4021
      %4023 = vmatmul.bf16.gmra.mxu0 %v3433
      %v4024 = vpop.f32.mrf.mxu0
      %v4025 = vadd.f32 %v3512, %v4024
      %v4026 = vpop.f32.mrf.mxu0
      %v4027 = vadd.f32 %v3512, %v4026
      %4028 = vmatmul.bf16.gmra.mxu0 %v3434
      %v4029 = vpop.f32.mrf.mxu0
      %v4030 = vadd.f32 %v3512, %v4029
      %v4031 = vpop.f32.mrf.mxu0
      %v4032 = vadd.f32 %v3512, %v4031
      %4033 = vmatmul.bf16.gmra.mxu0 %v3435
      %v4034 = vpop.f32.mrf.mxu0
      %v4035 = vadd.f32 %v3512, %v4034
      %v4036 = vpop.f32.mrf.mxu0
      %v4037 = vadd.f32 %v3512, %v4036
      %4038 = vmatmul.bf16.gmra.mxu0 %v3436
      %v4039 = vpop.f32.mrf.mxu0
      %v4040 = vadd.f32 %v3512, %v4039
      %v4041 = vpop.f32.mrf.mxu0
      %v4042 = vadd.f32 %v3512, %v4041
      %4043 = vmatmul.bf16.gmra.mxu0 %v3437
      %v4044 = vpop.f32.mrf.mxu0
      %v4045 = vadd.f32 %v3512, %v4044
      %v4046 = vpop.f32.mrf.mxu0
      %v4047 = vadd.f32 %v3512, %v4046
      %4048 = vmatmul.bf16.gmra.mxu0 %v3438
      %v4049 = vpop.f32.mrf.mxu0
      %v4050 = vadd.f32 %v3512, %v4049
      %v4051 = vpop.f32.mrf.mxu0
      %v4052 = vadd.f32 %v3512, %v4051
      %4053 = vmatmul.bf16.gmra.mxu0 %v3439
      %v4054 = vpop.f32.mrf.mxu0
      %v4055 = vadd.f32 %v3512, %v4054
      %v4056 = vpop.f32.mrf.mxu0
      %v4057 = vadd.f32 %v3512, %v4056
      %4058 = vmatmul.bf16.gmra.mxu0 %v3440
      %v4059 = vpop.f32.mrf.mxu0
      %v4060 = vadd.f32 %v3512, %v4059
      %v4061 = vpop.f32.mrf.mxu0
      %v4062 = vadd.f32 %v3512, %v4061
      %4063 = vmatmul.bf16.gmra.mxu0 %v3441
      %v4064 = vpop.f32.mrf.mxu0
      %v4065 = vadd.f32 %v3512, %v4064
      %v4066 = vpop.f32.mrf.mxu0
      %v4067 = vadd.f32 %v3512, %v4066
      %4068 = vmatmul.bf16.gmra.mxu0 %v3442
      %v4069 = vpop.f32.mrf.mxu0
      %v4070 = vadd.f32 %v3512, %v4069
      %v4071 = vpop.f32.mrf.mxu0
      %v4072 = vadd.f32 %v3512, %v4071
      %4073 = vmatmul.bf16.gmra.mxu0 %v3443
      %v4074 = vpop.f32.mrf.mxu0
      %v4075 = vadd.f32 %v3512, %v4074
      %v4076 = vpop.f32.mrf.mxu0
      %v4077 = vadd.f32 %v3512, %v4076
      %4078 = vdwg.mxu0
      %4079 = vmatpush.bf16.msra.mxu0 %v3752
      %4080 = vmatpush.bf16.msra.mxu0 %v3745
      %4081 = vmatpush.bf16.msra.mxu0 %v3738
      %4082 = vmatpush.bf16.msra.mxu0 %v3731
      %4083 = vmatpush.bf16.msra.mxu0 %v3724
      %4084 = vmatpush.bf16.msra.mxu0 %v3717
      %4085 = vmatpush.bf16.msra.mxu0 %v3710
      %4086 = vmatpush.bf16.msra.mxu0 %v3703
      %4087 = vmatmul.bf16.gmra.mxu0 %v3428
      %v4088 = vpop.f32.mrf.mxu0
      %v4089 = vadd.f32 %v3513, %v4088
      %v4090 = vpop.f32.mrf.mxu0
      %v4091 = vadd.f32 %v3513, %v4090
      %4092 = vmatmul.bf16.gmra.mxu0 %v3429
      %v4093 = vpop.f32.mrf.mxu0
      %v4094 = vadd.f32 %v3513, %v4093
      %v4095 = vpop.f32.mrf.mxu0
      %v4096 = vadd.f32 %v3513, %v4095
      %4097 = vmatmul.bf16.gmra.mxu0 %v3430
      %v4098 = vpop.f32.mrf.mxu0
      %v4099 = vadd.f32 %v3513, %v4098
      %v4100 = vpop.f32.mrf.mxu0
      %v4101 = vadd.f32 %v3513, %v4100
      %4102 = vmatmul.bf16.gmra.mxu0 %v3431
      %v4103 = vpop.f32.mrf.mxu0
      %v4104 = vadd.f32 %v3513, %v4103
      %v4105 = vpop.f32.mrf.mxu0
      %v4106 = vadd.f32 %v3513, %v4105
      %4107 = vmatmul.bf16.gmra.mxu0 %v3432
      %v4108 = vpop.f32.mrf.mxu0
      %v4109 = vadd.f32 %v3513, %v4108
      %v4110 = vpop.f32.mrf.mxu0
      %v4111 = vadd.f32 %v3513, %v4110
      %4112 = vmatmul.bf16.gmra.mxu0 %v3433
      %v4113 = vpop.f32.mrf.mxu0
      %v4114 = vadd.f32 %v3513, %v4113
      %v4115 = vpop.f32.mrf.mxu0
      %v4116 = vadd.f32 %v3513, %v4115
      %4117 = vmatmul.bf16.gmra.mxu0 %v3434
      %v4118 = vpop.f32.mrf.mxu0
      %v4119 = vadd.f32 %v3513, %v4118
      %v4120 = vpop.f32.mrf.mxu0
      %v4121 = vadd.f32 %v3513, %v4120
      %4122 = vmatmul.bf16.gmra.mxu0 %v3435
      %v4123 = vpop.f32.mrf.mxu0
      %v4124 = vadd.f32 %v3513, %v4123
      %v4125 = vpop.f32.mrf.mxu0
      %v4126 = vadd.f32 %v3513, %v4125
      %4127 = vmatmul.bf16.gmra.mxu0 %v3436
      %v4128 = vpop.f32.mrf.mxu0
      %v4129 = vadd.f32 %v3513, %v4128
      %v4130 = vpop.f32.mrf.mxu0
      %v4131 = vadd.f32 %v3513, %v4130
      %4132 = vmatmul.bf16.gmra.mxu0 %v3437
      %v4133 = vpop.f32.mrf.mxu0
      %v4134 = vadd.f32 %v3513, %v4133
      %v4135 = vpop.f32.mrf.mxu0
      %v4136 = vadd.f32 %v3513, %v4135
      %4137 = vmatmul.bf16.gmra.mxu0 %v3438
      %v4138 = vpop.f32.mrf.mxu0
      %v4139 = vadd.f32 %v3513, %v4138
      %v4140 = vpop.f32.mrf.mxu0
      %v4141 = vadd.f32 %v3513, %v4140
      %4142 = vmatmul.bf16.gmra.mxu0 %v3439
      %v4143 = vpop.f32.mrf.mxu0
      %v4144 = vadd.f32 %v3513, %v4143
      %v4145 = vpop.f32.mrf.mxu0
      %v4146 = vadd.f32 %v3513, %v4145
      %4147 = vmatmul.bf16.gmra.mxu0 %v3440
      %v4148 = vpop.f32.mrf.mxu0
      %v4149 = vadd.f32 %v3513, %v4148
      %v4150 = vpop.f32.mrf.mxu0
      %v4151 = vadd.f32 %v3513, %v4150
      %4152 = vmatmul.bf16.gmra.mxu0 %v3441
      %v4153 = vpop.f32.mrf.mxu0
      %v4154 = vadd.f32 %v3513, %v4153
      %v4155 = vpop.f32.mrf.mxu0
      %v4156 = vadd.f32 %v3513, %v4155
      %4157 = vmatmul.bf16.gmra.mxu0 %v3442
      %v4158 = vpop.f32.mrf.mxu0
      %v4159 = vadd.f32 %v3513, %v4158
      %v4160 = vpop.f32.mrf.mxu0
      %v4161 = vadd.f32 %v3513, %v4160
      %4162 = vmatmul.bf16.gmra.mxu0 %v3443
      %v4163 = vpop.f32.mrf.mxu0
      %v4164 = vadd.f32 %v3513, %v4163
      %v4165 = vpop.f32.mrf.mxu0
      %v4166 = vadd.f32 %v3513, %v4165
      %4167 = vdwg.mxu0
      %4168 = vmatpush.bf16.msra.mxu0 %v3753
      %4169 = vmatpush.bf16.msra.mxu0 %v3746
      %4170 = vmatpush.bf16.msra.mxu0 %v3739
      %4171 = vmatpush.bf16.msra.mxu0 %v3732
      %4172 = vmatpush.bf16.msra.mxu0 %v3725
      %4173 = vmatpush.bf16.msra.mxu0 %v3718
      %4174 = vmatpush.bf16.msra.mxu0 %v3711
      %4175 = vmatpush.bf16.msra.mxu0 %v3704
      %4176 = vmatmul.bf16.gmra.mxu0 %v3428
      %v4177 = vpop.f32.mrf.mxu0
      %v4178 = vadd.f32 %v3514, %v4177
      %v4179 = vpop.f32.mrf.mxu0
      %v4180 = vadd.f32 %v3514, %v4179
      %4181 = vmatmul.bf16.gmra.mxu0 %v3429
      %v4182 = vpop.f32.mrf.mxu0
      %v4183 = vadd.f32 %v3514, %v4182
      %v4184 = vpop.f32.mrf.mxu0
      %v4185 = vadd.f32 %v3514, %v4184
      %4186 = vmatmul.bf16.gmra.mxu0 %v3430
      %v4187 = vpop.f32.mrf.mxu0
      %v4188 = vadd.f32 %v3514, %v4187
      %v4189 = vpop.f32.mrf.mxu0
      %v4190 = vadd.f32 %v3514, %v4189
      %4191 = vmatmul.bf16.gmra.mxu0 %v3431
      %v4192 = vpop.f32.mrf.mxu0
      %v4193 = vadd.f32 %v3514, %v4192
      %v4194 = vpop.f32.mrf.mxu0
      %v4195 = vadd.f32 %v3514, %v4194
      %4196 = vmatmul.bf16.gmra.mxu0 %v3432
      %v4197 = vpop.f32.mrf.mxu0
      %v4198 = vadd.f32 %v3514, %v4197
      %v4199 = vpop.f32.mrf.mxu0
      %v4200 = vadd.f32 %v3514, %v4199
      %4201 = vmatmul.bf16.gmra.mxu0 %v3433
      %v4202 = vpop.f32.mrf.mxu0
      %v4203 = vadd.f32 %v3514, %v4202
      %v4204 = vpop.f32.mrf.mxu0
      %v4205 = vadd.f32 %v3514, %v4204
      %4206 = vmatmul.bf16.gmra.mxu0 %v3434
      %v4207 = vpop.f32.mrf.mxu0
      %v4208 = vadd.f32 %v3514, %v4207
      %v4209 = vpop.f32.mrf.mxu0
      %v4210 = vadd.f32 %v3514, %v4209
      %4211 = vmatmul.bf16.gmra.mxu0 %v3435
      %v4212 = vpop.f32.mrf.mxu0
      %v4213 = vadd.f32 %v3514, %v4212
      %v4214 = vpop.f32.mrf.mxu0
      %v4215 = vadd.f32 %v3514, %v4214
      %4216 = vmatmul.bf16.gmra.mxu0 %v3436
      %v4217 = vpop.f32.mrf.mxu0
      %v4218 = vadd.f32 %v3514, %v4217
      %v4219 = vpop.f32.mrf.mxu0
      %v4220 = vadd.f32 %v3514, %v4219
      %4221 = vmatmul.bf16.gmra.mxu0 %v3437
      %v4222 = vpop.f32.mrf.mxu0
      %v4223 = vadd.f32 %v3514, %v4222
      %v4224 = vpop.f32.mrf.mxu0
      %v4225 = vadd.f32 %v3514, %v4224
      %4226 = vmatmul.bf16.gmra.mxu0 %v3438
      %v4227 = vpop.f32.mrf.mxu0
      %v4228 = vadd.f32 %v3514, %v4227
      %v4229 = vpop.f32.mrf.mxu0
      %v4230 = vadd.f32 %v3514, %v4229
      %4231 = vmatmul.bf16.gmra.mxu0 %v3439
      %v4232 = vpop.f32.mrf.mxu0
      %v4233 = vadd.f32 %v3514, %v4232
      %v4234 = vpop.f32.mrf.mxu0
      %v4235 = vadd.f32 %v3514, %v4234
      %4236 = vmatmul.bf16.gmra.mxu0 %v3440
      %v4237 = vpop.f32.mrf.mxu0
      %v4238 = vadd.f32 %v3514, %v4237
      %v4239 = vpop.f32.mrf.mxu0
      %v4240 = vadd.f32 %v3514, %v4239
      %4241 = vmatmul.bf16.gmra.mxu0 %v3441
      %v4242 = vpop.f32.mrf.mxu0
      %v4243 = vadd.f32 %v3514, %v4242
      %v4244 = vpop.f32.mrf.mxu0
      %v4245 = vadd.f32 %v3514, %v4244
      %4246 = vmatmul.bf16.gmra.mxu0 %v3442
      %v4247 = vpop.f32.mrf.mxu0
      %v4248 = vadd.f32 %v3514, %v4247
      %v4249 = vpop.f32.mrf.mxu0
      %v4250 = vadd.f32 %v3514, %v4249
      %4251 = vmatmul.bf16.gmra.mxu0 %v3443
      %v4252 = vpop.f32.mrf.mxu0
      %v4253 = vadd.f32 %v3514, %v4252
      %v4254 = vpop.f32.mrf.mxu0
      %v4255 = vadd.f32 %v3514, %v4254
      %4256 = vdwg.mxu0
      %4257 = vmatpush.bf16.msra.mxu0 %v3754
      %4258 = vmatpush.bf16.msra.mxu0 %v3747
      %4259 = vmatpush.bf16.msra.mxu0 %v3740
      %4260 = vmatpush.bf16.msra.mxu0 %v3733
      %4261 = vmatpush.bf16.msra.mxu0 %v3726
      %4262 = vmatpush.bf16.msra.mxu0 %v3719
      %4263 = vmatpush.bf16.msra.mxu0 %v3712
      %4264 = vmatpush.bf16.msra.mxu0 %v3705
      %4265 = vmatmul.bf16.gmra.mxu0 %v3428
      %v4266 = vpop.f32.mrf.mxu0
      %v4267 = vadd.f32 %v3515, %v4266
      %v4268 = vpop.f32.mrf.mxu0
      %v4269 = vadd.f32 %v3515, %v4268
      %4270 = vmatmul.bf16.gmra.mxu0 %v3429
      %v4271 = vpop.f32.mrf.mxu0
      %v4272 = vadd.f32 %v3515, %v4271
      %v4273 = vpop.f32.mrf.mxu0
      %v4274 = vadd.f32 %v3515, %v4273
      %4275 = vmatmul.bf16.gmra.mxu0 %v3430
      %v4276 = vpop.f32.mrf.mxu0
      %v4277 = vadd.f32 %v3515, %v4276
      %v4278 = vpop.f32.mrf.mxu0
      %v4279 = vadd.f32 %v3515, %v4278
      %4280 = vmatmul.bf16.gmra.mxu0 %v3431
      %v4281 = vpop.f32.mrf.mxu0
      %v4282 = vadd.f32 %v3515, %v4281
      %v4283 = vpop.f32.mrf.mxu0
      %v4284 = vadd.f32 %v3515, %v4283
      %4285 = vmatmul.bf16.gmra.mxu0 %v3432
      %v4286 = vpop.f32.mrf.mxu0
      %v4287 = vadd.f32 %v3515, %v4286
      %v4288 = vpop.f32.mrf.mxu0
      %v4289 = vadd.f32 %v3515, %v4288
      %4290 = vmatmul.bf16.gmra.mxu0 %v3433
      %v4291 = vpop.f32.mrf.mxu0
      %v4292 = vadd.f32 %v3515, %v4291
      %v4293 = vpop.f32.mrf.mxu0
      %v4294 = vadd.f32 %v3515, %v4293
      %4295 = vmatmul.bf16.gmra.mxu0 %v3434
      %v4296 = vpop.f32.mrf.mxu0
      %v4297 = vadd.f32 %v3515, %v4296
      %v4298 = vpop.f32.mrf.mxu0
      %v4299 = vadd.f32 %v3515, %v4298
      %4300 = vmatmul.bf16.gmra.mxu0 %v3435
      %v4301 = vpop.f32.mrf.mxu0
      %v4302 = vadd.f32 %v3515, %v4301
      %v4303 = vpop.f32.mrf.mxu0
      %v4304 = vadd.f32 %v3515, %v4303
      %4305 = vmatmul.bf16.gmra.mxu0 %v3436
      %v4306 = vpop.f32.mrf.mxu0
      %v4307 = vadd.f32 %v3515, %v4306
      %v4308 = vpop.f32.mrf.mxu0
      %v4309 = vadd.f32 %v3515, %v4308
      %4310 = vmatmul.bf16.gmra.mxu0 %v3437
      %v4311 = vpop.f32.mrf.mxu0
      %v4312 = vadd.f32 %v3515, %v4311
      %v4313 = vpop.f32.mrf.mxu0
      %v4314 = vadd.f32 %v3515, %v4313
      %4315 = vmatmul.bf16.gmra.mxu0 %v3438
      %v4316 = vpop.f32.mrf.mxu0
      %v4317 = vadd.f32 %v3515, %v4316
      %v4318 = vpop.f32.mrf.mxu0
      %v4319 = vadd.f32 %v3515, %v4318
      %4320 = vmatmul.bf16.gmra.mxu0 %v3439
      %v4321 = vpop.f32.mrf.mxu0
      %v4322 = vadd.f32 %v3515, %v4321
      %v4323 = vpop.f32.mrf.mxu0
      %v4324 = vadd.f32 %v3515, %v4323
      %4325 = vmatmul.bf16.gmra.mxu0 %v3440
      %v4326 = vpop.f32.mrf.mxu0
      %v4327 = vadd.f32 %v3515, %v4326
      %v4328 = vpop.f32.mrf.mxu0
      %v4329 = vadd.f32 %v3515, %v4328
      %4330 = vmatmul.bf16.gmra.mxu0 %v3441
      %v4331 = vpop.f32.mrf.mxu0
      %v4332 = vadd.f32 %v3515, %v4331
      %v4333 = vpop.f32.mrf.mxu0
      %v4334 = vadd.f32 %v3515, %v4333
      %4335 = vmatmul.bf16.gmra.mxu0 %v3442
      %v4336 = vpop.f32.mrf.mxu0
      %v4337 = vadd.f32 %v3515, %v4336
      %v4338 = vpop.f32.mrf.mxu0
      %v4339 = vadd.f32 %v3515, %v4338
      %4340 = vmatmul.bf16.gmra.mxu0 %v3443
      %v4341 = vpop.f32.mrf.mxu0
      %v4342 = vadd.f32 %v3515, %v4341
      %v4343 = vpop.f32.mrf.mxu0
      %v4344 = vadd.f32 %v3515, %v4343
      %4345 = vdwg.mxu0
      %4346 = vmatpush.bf16.msra.mxu0 %v3755
      %4347 = vmatpush.bf16.msra.mxu0 %v3748
      %4348 = vmatpush.bf16.msra.mxu0 %v3741
      %4349 = vmatpush.bf16.msra.mxu0 %v3734
      %4350 = vmatpush.bf16.msra.mxu0 %v3727
      %4351 = vmatpush.bf16.msra.mxu0 %v3720
      %4352 = vmatpush.bf16.msra.mxu0 %v3713
      %4353 = vmatpush.bf16.msra.mxu0 %v3706
      %4354 = vmatmul.bf16.gmra.mxu0 %v3428
      %v4355 = vpop.f32.mrf.mxu0
      %v4356 = vadd.f32 %v3516, %v4355
      %v4357 = vpop.f32.mrf.mxu0
      %v4358 = vadd.f32 %v3516, %v4357
      %4359 = vmatmul.bf16.gmra.mxu0 %v3429
      %v4360 = vpop.f32.mrf.mxu0
      %v4361 = vadd.f32 %v3516, %v4360
      %v4362 = vpop.f32.mrf.mxu0
      %v4363 = vadd.f32 %v3516, %v4362
      %4364 = vmatmul.bf16.gmra.mxu0 %v3430
      %v4365 = vpop.f32.mrf.mxu0
      %v4366 = vadd.f32 %v3516, %v4365
      %v4367 = vpop.f32.mrf.mxu0
      %v4368 = vadd.f32 %v3516, %v4367
      %4369 = vmatmul.bf16.gmra.mxu0 %v3431
      %v4370 = vpop.f32.mrf.mxu0
      %v4371 = vadd.f32 %v3516, %v4370
      %v4372 = vpop.f32.mrf.mxu0
      %v4373 = vadd.f32 %v3516, %v4372
      %4374 = vmatmul.bf16.gmra.mxu0 %v3432
      %v4375 = vpop.f32.mrf.mxu0
      %v4376 = vadd.f32 %v3516, %v4375
      %v4377 = vpop.f32.mrf.mxu0
      %v4378 = vadd.f32 %v3516, %v4377
      %4379 = vmatmul.bf16.gmra.mxu0 %v3433
      %v4380 = vpop.f32.mrf.mxu0
      %v4381 = vadd.f32 %v3516, %v4380
      %v4382 = vpop.f32.mrf.mxu0
      %v4383 = vadd.f32 %v3516, %v4382
      %4384 = vmatmul.bf16.gmra.mxu0 %v3434
      %v4385 = vpop.f32.mrf.mxu0
      %v4386 = vadd.f32 %v3516, %v4385
      %v4387 = vpop.f32.mrf.mxu0
      %v4388 = vadd.f32 %v3516, %v4387
      %4389 = vmatmul.bf16.gmra.mxu0 %v3435
      %v4390 = vpop.f32.mrf.mxu0
      %v4391 = vadd.f32 %v3516, %v4390
      %v4392 = vpop.f32.mrf.mxu0
      %v4393 = vadd.f32 %v3516, %v4392
      %4394 = vmatmul.bf16.gmra.mxu0 %v3436
      %v4395 = vpop.f32.mrf.mxu0
      %v4396 = vadd.f32 %v3516, %v4395
      %v4397 = vpop.f32.mrf.mxu0
      %v4398 = vadd.f32 %v3516, %v4397
      %4399 = vmatmul.bf16.gmra.mxu0 %v3437
      %v4400 = vpop.f32.mrf.mxu0
      %v4401 = vadd.f32 %v3516, %v4400
      %v4402 = vpop.f32.mrf.mxu0
      %v4403 = vadd.f32 %v3516, %v4402
      %4404 = vmatmul.bf16.gmra.mxu0 %v3438
      %v4405 = vpop.f32.mrf.mxu0
      %v4406 = vadd.f32 %v3516, %v4405
      %v4407 = vpop.f32.mrf.mxu0
      %v4408 = vadd.f32 %v3516, %v4407
      %4409 = vmatmul.bf16.gmra.mxu0 %v3439
      %v4410 = vpop.f32.mrf.mxu0
      %v4411 = vadd.f32 %v3516, %v4410
      %v4412 = vpop.f32.mrf.mxu0
      %v4413 = vadd.f32 %v3516, %v4412
      %4414 = vmatmul.bf16.gmra.mxu0 %v3440
      %v4415 = vpop.f32.mrf.mxu0
      %v4416 = vadd.f32 %v3516, %v4415
      %v4417 = vpop.f32.mrf.mxu0
      %v4418 = vadd.f32 %v3516, %v4417
      %4419 = vmatmul.bf16.gmra.mxu0 %v3441
      %v4420 = vpop.f32.mrf.mxu0
      %v4421 = vadd.f32 %v3516, %v4420
      %v4422 = vpop.f32.mrf.mxu0
      %v4423 = vadd.f32 %v3516, %v4422
      %4424 = vmatmul.bf16.gmra.mxu0 %v3442
      %v4425 = vpop.f32.mrf.mxu0
      %v4426 = vadd.f32 %v3516, %v4425
      %v4427 = vpop.f32.mrf.mxu0
      %v4428 = vadd.f32 %v3516, %v4427
      %4429 = vmatmul.bf16.gmra.mxu0 %v3443
      %v4430 = vpop.f32.mrf.mxu0
      %v4431 = vadd.f32 %v3516, %v4430
      %v4432 = vpop.f32.mrf.mxu0
      %v4433 = vadd.f32 %v3516, %v4432
      %4434 = vdwg.mxu0
      %v4435 = vmul.f32 %v3822, 0.5
      %v4436 = vmul.f32 %v3911, 0.5
      %v4437 = vmul.f32 %v4000, 0.5
      %v4438 = vmul.f32 %v4089, 0.5
      %v4439 = vmul.f32 %v4178, 0.5
      %v4440 = vmul.f32 %v4267, 0.5
      %v4441 = vmul.f32 %v4356, 0.5
      %v4442 = vmul.f32 %v3824, 0.5
      %v4443 = vmul.f32 %v3913, 0.5
      %v4444 = vmul.f32 %v4002, 0.5
      %v4445 = vmul.f32 %v4091, 0.5
      %v4446 = vmul.f32 %v4180, 0.5
      %v4447 = vmul.f32 %v4269, 0.5
      %v4448 = vmul.f32 %v4358, 0.5
      %v4449 = vmul.f32 %v3827, 0.5
      %v4450 = vmul.f32 %v3916, 0.5
      %v4451 = vmul.f32 %v4005, 0.5
      %v4452 = vmul.f32 %v4094, 0.5
      %v4453 = vmul.f32 %v4183, 0.5
      %v4454 = vmul.f32 %v4272, 0.5
      %v4455 = vmul.f32 %v4361, 0.5
      %v4456 = vmul.f32 %v3829, 0.5
      %v4457 = vmul.f32 %v3918, 0.5
      %v4458 = vmul.f32 %v4007, 0.5
      %v4459 = vmul.f32 %v4096, 0.5
      %v4460 = vmul.f32 %v4185, 0.5
      %v4461 = vmul.f32 %v4274, 0.5
      %v4462 = vmul.f32 %v4363, 0.5
      %v4463 = vmul.f32 %v3832, 0.5
      %v4464 = vmul.f32 %v3921, 0.5
      %v4465 = vmul.f32 %v4010, 0.5
      %v4466 = vmul.f32 %v4099, 0.5
      %v4467 = vmul.f32 %v4188, 0.5
      %v4468 = vmul.f32 %v4277, 0.5
      %v4469 = vmul.f32 %v4366, 0.5
      %v4470 = vmul.f32 %v3834, 0.5
      %v4471 = vmul.f32 %v3923, 0.5
      %v4472 = vmul.f32 %v4012, 0.5
      %v4473 = vmul.f32 %v4101, 0.5
      %v4474 = vmul.f32 %v4190, 0.5
      %v4475 = vmul.f32 %v4279, 0.5
      %v4476 = vmul.f32 %v4368, 0.5
      %v4477 = vmul.f32 %v3837, 0.5
      %v4478 = vmul.f32 %v3926, 0.5
      %v4479 = vmul.f32 %v4015, 0.5
      %v4480 = vmul.f32 %v4104, 0.5
      %v4481 = vmul.f32 %v4193, 0.5
      %v4482 = vmul.f32 %v4282, 0.5
      %v4483 = vmul.f32 %v4371, 0.5
      %v4484 = vmul.f32 %v3839, 0.5
      %v4485 = vmul.f32 %v3928, 0.5
      %v4486 = vmul.f32 %v4017, 0.5
      %v4487 = vmul.f32 %v4106, 0.5
      %v4488 = vmul.f32 %v4195, 0.5
      %v4489 = vmul.f32 %v4284, 0.5
      %v4490 = vmul.f32 %v4373, 0.5
      %v4491 = vmul.f32 %v3842, 0.5
      %v4492 = vmul.f32 %v3931, 0.5
      %v4493 = vmul.f32 %v4020, 0.5
      %v4494 = vmul.f32 %v4109, 0.5
      %v4495 = vmul.f32 %v4198, 0.5
      %v4496 = vmul.f32 %v4287, 0.5
      %v4497 = vmul.f32 %v4376, 0.5
      %v4498 = vmul.f32 %v3844, 0.5
      %v4499 = vmul.f32 %v3933, 0.5
      %v4500 = vmul.f32 %v4022, 0.5
      %v4501 = vmul.f32 %v4111, 0.5
      %v4502 = vmul.f32 %v4200, 0.5
      %v4503 = vmul.f32 %v4289, 0.5
      %v4504 = vmul.f32 %v4378, 0.5
      %v4505 = vmul.f32 %v3847, 0.5
      %v4506 = vmul.f32 %v3936, 0.5
      %v4507 = vmul.f32 %v4025, 0.5
      %v4508 = vmul.f32 %v4114, 0.5
      %v4509 = vmul.f32 %v4203, 0.5
      %v4510 = vmul.f32 %v4292, 0.5
      %v4511 = vmul.f32 %v4381, 0.5
      %v4512 = vmul.f32 %v3849, 0.5
      %v4513 = vmul.f32 %v3938, 0.5
      %v4514 = vmul.f32 %v4027, 0.5
      %v4515 = vmul.f32 %v4116, 0.5
      %v4516 = vmul.f32 %v4205, 0.5
      %v4517 = vmul.f32 %v4294, 0.5
      %v4518 = vmul.f32 %v4383, 0.5
      %v4519 = vmul.f32 %v3852, 0.5
      %v4520 = vmul.f32 %v3941, 0.5
      %v4521 = vmul.f32 %v4030, 0.5
      %v4522 = vmul.f32 %v4119, 0.5
      %v4523 = vmul.f32 %v4208, 0.5
      %v4524 = vmul.f32 %v4297, 0.5
      %v4525 = vmul.f32 %v4386, 0.5
      %v4526 = vmul.f32 %v3854, 0.5
      %v4527 = vmul.f32 %v3943, 0.5
      %v4528 = vmul.f32 %v4032, 0.5
      %v4529 = vmul.f32 %v4121, 0.5
      %v4530 = vmul.f32 %v4210, 0.5
      %v4531 = vmul.f32 %v4299, 0.5
      %v4532 = vmul.f32 %v4388, 0.5
      %v4533 = vmul.f32 %v3857, 0.5
      %v4534 = vmul.f32 %v3946, 0.5
      %v4535 = vmul.f32 %v4035, 0.5
      %v4536 = vmul.f32 %v4124, 0.5
      %v4537 = vmul.f32 %v4213, 0.5
      %v4538 = vmul.f32 %v4302, 0.5
      %v4539 = vmul.f32 %v4391, 0.5
      %v4540 = vmul.f32 %v3859, 0.5
      %v4541 = vmul.f32 %v3948, 0.5
      %v4542 = vmul.f32 %v4037, 0.5
      %v4543 = vmul.f32 %v4126, 0.5
      %v4544 = vmul.f32 %v4215, 0.5
      %v4545 = vmul.f32 %v4304, 0.5
      %v4546 = vmul.f32 %v4393, 0.5
      %v4547 = vmul.f32 %v3862, 0.5
      %v4548 = vmul.f32 %v3951, 0.5
      %v4549 = vmul.f32 %v4040, 0.5
      %v4550 = vmul.f32 %v4129, 0.5
      %v4551 = vmul.f32 %v4218, 0.5
      %v4552 = vmul.f32 %v4307, 0.5
      %v4553 = vmul.f32 %v4396, 0.5
      %v4554 = vmul.f32 %v3864, 0.5
      %v4555 = vmul.f32 %v3953, 0.5
      %v4556 = vmul.f32 %v4042, 0.5
      %v4557 = vmul.f32 %v4131, 0.5
      %v4558 = vmul.f32 %v4220, 0.5
      %v4559 = vmul.f32 %v4309, 0.5
      %v4560 = vmul.f32 %v4398, 0.5
      %v4561 = vmul.f32 %v3867, 0.5
      %v4562 = vmul.f32 %v3956, 0.5
      %v4563 = vmul.f32 %v4045, 0.5
      %v4564 = vmul.f32 %v4134, 0.5
      %v4565 = vmul.f32 %v4223, 0.5
      %v4566 = vmul.f32 %v4312, 0.5
      %v4567 = vmul.f32 %v4401, 0.5
      %v4568 = vmul.f32 %v3869, 0.5
      %v4569 = vmul.f32 %v3958, 0.5
      %v4570 = vmul.f32 %v4047, 0.5
      %v4571 = vmul.f32 %v4136, 0.5
      %v4572 = vmul.f32 %v4225, 0.5
      %v4573 = vmul.f32 %v4314, 0.5
      %v4574 = vmul.f32 %v4403, 0.5
      %v4575 = vmul.f32 %v3872, 0.5
      %v4576 = vmul.f32 %v3961, 0.5
      %v4577 = vmul.f32 %v4050, 0.5
      %v4578 = vmul.f32 %v4139, 0.5
      %v4579 = vmul.f32 %v4228, 0.5
      %v4580 = vmul.f32 %v4317, 0.5
      %v4581 = vmul.f32 %v4406, 0.5
      %v4582 = vmul.f32 %v3874, 0.5
      %v4583 = vmul.f32 %v3963, 0.5
      %v4584 = vmul.f32 %v4052, 0.5
      %v4585 = vmul.f32 %v4141, 0.5
      %v4586 = vmul.f32 %v4230, 0.5
      %v4587 = vmul.f32 %v4319, 0.5
      %v4588 = vmul.f32 %v4408, 0.5
      %v4589 = vmul.f32 %v3877, 0.5
      %v4590 = vmul.f32 %v3966, 0.5
      %v4591 = vmul.f32 %v4055, 0.5
      %v4592 = vmul.f32 %v4144, 0.5
      %v4593 = vmul.f32 %v4233, 0.5
      %v4594 = vmul.f32 %v4322, 0.5
      %v4595 = vmul.f32 %v4411, 0.5
      %v4596 = vmul.f32 %v3879, 0.5
      %v4597 = vmul.f32 %v3968, 0.5
      %v4598 = vmul.f32 %v4057, 0.5
      %v4599 = vmul.f32 %v4146, 0.5
      %v4600 = vmul.f32 %v4235, 0.5
      %v4601 = vmul.f32 %v4324, 0.5
      %v4602 = vmul.f32 %v4413, 0.5
      %v4603 = vmul.f32 %v3882, 0.5
      %v4604 = vmul.f32 %v3971, 0.5
      %v4605 = vmul.f32 %v4060, 0.5
      %v4606 = vmul.f32 %v4149, 0.5
      %v4607 = vmul.f32 %v4238, 0.5
      %v4608 = vmul.f32 %v4327, 0.5
      %v4609 = vmul.f32 %v4416, 0.5
      %v4610 = vmul.f32 %v3884, 0.5
      %v4611 = vmul.f32 %v3973, 0.5
      %v4612 = vmul.f32 %v4062, 0.5
      %v4613 = vmul.f32 %v4151, 0.5
      %v4614 = vmul.f32 %v4240, 0.5
      %v4615 = vmul.f32 %v4329, 0.5
      %v4616 = vmul.f32 %v4418, 0.5
      %v4617 = vmul.f32 %v3887, 0.5
      %v4618 = vmul.f32 %v3976, 0.5
      %v4619 = vmul.f32 %v4065, 0.5
      %v4620 = vmul.f32 %v4154, 0.5
      %v4621 = vmul.f32 %v4243, 0.5
      %v4622 = vmul.f32 %v4332, 0.5
      %v4623 = vmul.f32 %v4421, 0.5
      %v4624 = vmul.f32 %v3889, 0.5
      %v4625 = vmul.f32 %v3978, 0.5
      %v4626 = vmul.f32 %v4067, 0.5
      %v4627 = vmul.f32 %v4156, 0.5
      %v4628 = vmul.f32 %v4245, 0.5
      %v4629 = vmul.f32 %v4334, 0.5
      %v4630 = vmul.f32 %v4423, 0.5
      %v4631 = vmul.f32 %v3892, 0.5
      %v4632 = vmul.f32 %v3981, 0.5
      %v4633 = vmul.f32 %v4070, 0.5
      %v4634 = vmul.f32 %v4159, 0.5
      %v4635 = vmul.f32 %v4248, 0.5
      %v4636 = vmul.f32 %v4337, 0.5
      %v4637 = vmul.f32 %v4426, 0.5
      %v4638 = vmul.f32 %v3894, 0.5
      %v4639 = vmul.f32 %v3983, 0.5
      %v4640 = vmul.f32 %v4072, 0.5
      %v4641 = vmul.f32 %v4161, 0.5
      %v4642 = vmul.f32 %v4250, 0.5
      %v4643 = vmul.f32 %v4339, 0.5
      %v4644 = vmul.f32 %v4428, 0.5
      %v4645 = vmul.f32 %v3897, 0.5
      %v4646 = vmul.f32 %v3986, 0.5
      %v4647 = vmul.f32 %v4075, 0.5
      %v4648 = vmul.f32 %v4164, 0.5
      %v4649 = vmul.f32 %v4253, 0.5
      %v4650 = vmul.f32 %v4342, 0.5
      %v4651 = vmul.f32 %v4431, 0.5
      %v4652 = vmul.f32 %v3899, 0.5
      %v4653 = vmul.f32 %v3988, 0.5
      %v4654 = vmul.f32 %v4077, 0.5
      %v4655 = vmul.f32 %v4166, 0.5
      %v4656 = vmul.f32 %v4255, 0.5
      %v4657 = vmul.f32 %v4344, 0.5
      %v4658 = vmul.f32 %v4433, 0.5
      %v4659 = vtanh.pop %v4435
      %v4660 = vtanh.pop %v4436
      %v4661 = vtanh.pop %v4437
      %v4662 = vtanh.pop %v4438
      %v4663 = vtanh.pop %v4439
      %v4664 = vtanh.pop %v4440
      %v4665 = vtanh.pop %v4441
      %v4666 = vtanh.pop %v4442
      %v4667 = vtanh.pop %v4443
      %v4668 = vtanh.pop %v4444
      %v4669 = vtanh.pop %v4445
      %v4670 = vtanh.pop %v4446
      %v4671 = vtanh.pop %v4447
      %v4672 = vtanh.pop %v4448
      %v4673 = vtanh.pop %v4449
      %v4674 = vtanh.pop %v4450
      %v4675 = vtanh.pop %v4451
      %v4676 = vtanh.pop %v4452
      %v4677 = vtanh.pop %v4453
      %v4678 = vtanh.pop %v4454
      %v4679 = vtanh.pop %v4455
      %v4680 = vtanh.pop %v4456
      %v4681 = vtanh.pop %v4457
      %v4682 = vtanh.pop %v4458
      %v4683 = vtanh.pop %v4459
      %v4684 = vtanh.pop %v4460
      %v4685 = vtanh.pop %v4461
      %v4686 = vtanh.pop %v4462
      %v4687 = vtanh.pop %v4463
      %v4688 = vtanh.pop %v4464
      %v4689 = vtanh.pop %v4465
      %v4690 = vtanh.pop %v4466
      %v4691 = vtanh.pop %v4467
      %v4692 = vtanh.pop %v4468
      %v4693 = vtanh.pop %v4469
      %v4694 = vtanh.pop %v4470
      %v4695 = vtanh.pop %v4471
      %v4696 = vtanh.pop %v4472
      %v4697 = vtanh.pop %v4473
      %v4698 = vtanh.pop %v4474
      %v4699 = vtanh.pop %v4475
      %v4700 = vtanh.pop %v4476
      %v4701 = vtanh.pop %v4477
      %v4702 = vtanh.pop %v4478
      %v4703 = vtanh.pop %v4479
      %v4704 = vtanh.pop %v4480
      %v4705 = vtanh.pop %v4481
      %v4706 = vtanh.pop %v4482
      %v4707 = vtanh.pop %v4483
      %v4708 = vtanh.pop %v4484
      %v4709 = vtanh.pop %v4485
      %v4710 = vtanh.pop %v4486
      %v4711 = vtanh.pop %v4487
      %v4712 = vtanh.pop %v4488
      %v4713 = vtanh.pop %v4489
      %v4714 = vtanh.pop %v4490
      %v4715 = vtanh.pop %v4491
      %v4716 = vtanh.pop %v4492
      %v4717 = vtanh.pop %v4493
      %v4718 = vtanh.pop %v4494
      %v4719 = vtanh.pop %v4495
      %v4720 = vtanh.pop %v4496
      %v4721 = vtanh.pop %v4497
      %v4722 = vtanh.pop %v4498
      %v4723 = vtanh.pop %v4499
      %v4724 = vtanh.pop %v4500
      %v4725 = vtanh.pop %v4501
      %v4726 = vtanh.pop %v4502
      %v4727 = vtanh.pop %v4503
      %v4728 = vtanh.pop %v4504
      %v4729 = vtanh.pop %v4505
      %v4730 = vtanh.pop %v4506
      %v4731 = vtanh.pop %v4507
      %v4732 = vtanh.pop %v4508
      %v4733 = vtanh.pop %v4509
      %v4734 = vtanh.pop %v4510
      %v4735 = vtanh.pop %v4511
      %v4736 = vtanh.pop %v4512
      %v4737 = vtanh.pop %v4513
      %v4738 = vtanh.pop %v4514
      %v4739 = vtanh.pop %v4515
      %v4740 = vtanh.pop %v4516
      %v4741 = vtanh.pop %v4517
      %v4742 = vtanh.pop %v4518
      %v4743 = vtanh.pop %v4519
      %v4744 = vtanh.pop %v4520
      %v4745 = vtanh.pop %v4521
      %v4746 = vtanh.pop %v4522
      %v4747 = vtanh.pop %v4523
      %v4748 = vtanh.pop %v4524
      %v4749 = vtanh.pop %v4525
      %v4750 = vtanh.pop %v4526
      %v4751 = vtanh.pop %v4527
      %v4752 = vtanh.pop %v4528
      %v4753 = vtanh.pop %v4529
      %v4754 = vtanh.pop %v4530
      %v4755 = vtanh.pop %v4531
      %v4756 = vtanh.pop %v4532
      %v4757 = vtanh.pop %v4533
      %v4758 = vtanh.pop %v4534
      %v4759 = vtanh.pop %v4535
      %v4760 = vtanh.pop %v4536
      %v4761 = vtanh.pop %v4537
      %v4762 = vtanh.pop %v4538
      %v4763 = vtanh.pop %v4539
      %v4764 = vtanh.pop %v4540
      %v4765 = vtanh.pop %v4541
      %v4766 = vtanh.pop %v4542
      %v4767 = vtanh.pop %v4543
      %v4768 = vtanh.pop %v4544
      %v4769 = vtanh.pop %v4545
      %v4770 = vtanh.pop %v4546
      %v4771 = vtanh.pop %v4547
      %v4772 = vtanh.pop %v4548
      %v4773 = vtanh.pop %v4549
      %v4774 = vtanh.pop %v4550
      %v4775 = vtanh.pop %v4551
      %v4776 = vtanh.pop %v4552
      %v4777 = vtanh.pop %v4553
      %v4778 = vtanh.pop %v4554
      %v4779 = vtanh.pop %v4555
      %v4780 = vtanh.pop %v4556
      %v4781 = vtanh.pop %v4557
      %v4782 = vtanh.pop %v4558
      %v4783 = vtanh.pop %v4559
      %v4784 = vtanh.pop %v4560
      %v4785 = vtanh.pop %v4561
      %v4786 = vtanh.pop %v4562
      %v4787 = vtanh.pop %v4563
      %v4788 = vtanh.pop %v4564
      %v4789 = vtanh.pop %v4565
      %v4790 = vtanh.pop %v4566
      %v4791 = vtanh.pop %v4567
      %v4792 = vtanh.pop %v4568
      %v4793 = vtanh.pop %v4569
      %v4794 = vtanh.pop %v4570
      %v4795 = vtanh.pop %v4571
      %v4796 = vtanh.pop %v4572
      %v4797 = vtanh.pop %v4573
      %v4798 = vtanh.pop %v4574
      %v4799 = vtanh.pop %v4575
      %v4800 = vtanh.pop %v4576
      %v4801 = vtanh.pop %v4577
      %v4802 = vtanh.pop %v4578
      %v4803 = vtanh.pop %v4579
      %v4804 = vtanh.pop %v4580
      %v4805 = vtanh.pop %v4581
      %v4806 = vtanh.pop %v4582
      %v4807 = vtanh.pop %v4583
      %v4808 = vtanh.pop %v4584
      %v4809 = vtanh.pop %v4585
      %v4810 = vtanh.pop %v4586
      %v4811 = vtanh.pop %v4587
      %v4812 = vtanh.pop %v4588
      %v4813 = vtanh.pop %v4589
      %v4814 = vtanh.pop %v4590
      %v4815 = vtanh.pop %v4591
      %v4816 = vtanh.pop %v4592
      %v4817 = vtanh.pop %v4593
      %v4818 = vtanh.pop %v4594
      %v4819 = vtanh.pop %v4595
      %v4820 = vtanh.pop %v4596
      %v4821 = vtanh.pop %v4597
      %v4822 = vtanh.pop %v4598
      %v4823 = vtanh.pop %v4599
      %v4824 = vtanh.pop %v4600
      %v4825 = vtanh.pop %v4601
      %v4826 = vtanh.pop %v4602
      %v4827 = vtanh.pop %v4603
      %v4828 = vtanh.pop %v4604
      %v4829 = vtanh.pop %v4605
      %v4830 = vtanh.pop %v4606
      %v4831 = vtanh.pop %v4607
      %v4832 = vtanh.pop %v4608
      %v4833 = vtanh.pop %v4609
      %v4834 = vtanh.pop %v4610
      %v4835 = vtanh.pop %v4611
      %v4836 = vtanh.pop %v4612
      %v4837 = vtanh.pop %v4613
      %v4838 = vtanh.pop %v4614
      %v4839 = vtanh.pop %v4615
      %v4840 = vtanh.pop %v4616
      %v4841 = vtanh.pop %v4617
      %v4842 = vtanh.pop %v4618
      %v4843 = vtanh.pop %v4619
      %v4844 = vtanh.pop %v4620
      %v4845 = vtanh.pop %v4621
      %v4846 = vtanh.pop %v4622
      %v4847 = vtanh.pop %v4623
      %v4848 = vtanh.pop %v4624
      %v4849 = vtanh.pop %v4625
      %v4850 = vtanh.pop %v4626
      %v4851 = vtanh.pop %v4627
      %v4852 = vtanh.pop %v4628
      %v4853 = vtanh.pop %v4629
      %v4854 = vtanh.pop %v4630
      %v4855 = vtanh.pop %v4631
      %v4856 = vtanh.pop %v4632
      %v4857 = vtanh.pop %v4633
      %v4858 = vtanh.pop %v4634
      %v4859 = vtanh.pop %v4635
      %v4860 = vtanh.pop %v4636
      %v4861 = vtanh.pop %v4637
      %v4862 = vtanh.pop %v4638
      %v4863 = vtanh.pop %v4639
      %v4864 = vtanh.pop %v4640
      %v4865 = vtanh.pop %v4641
      %v4866 = vtanh.pop %v4642
      %v4867 = vtanh.pop %v4643
      %v4868 = vtanh.pop %v4644
      %v4869 = vtanh.pop %v4645
      %v4870 = vtanh.pop %v4646
      %v4871 = vtanh.pop %v4647
      %v4872 = vtanh.pop %v4648
      %v4873 = vtanh.pop %v4649
      %v4874 = vtanh.pop %v4650
      %v4875 = vtanh.pop %v4651
      %v4876 = vtanh.pop %v4652
      %v4877 = vtanh.pop %v4653
      %v4878 = vtanh.pop %v4654
      %v4879 = vtanh.pop %v4655
      %v4880 = vtanh.pop %v4656
      %v4881 = vtanh.pop %v4657
      %v4882 = vtanh.pop %v4658
      %v4883 = vadd.f32 %v4659, 1.0
      %v4884 = vadd.f32 %v4660, 1.0
      %v4885 = vadd.f32 %v4661, 1.0
      %v4886 = vadd.f32 %v4662, 1.0
      %v4887 = vadd.f32 %v4663, 1.0
      %v4888 = vadd.f32 %v4664, 1.0
      %v4889 = vadd.f32 %v4665, 1.0
      %v4890 = vadd.f32 %v4666, 1.0
      %v4891 = vadd.f32 %v4667, 1.0
      %v4892 = vadd.f32 %v4668, 1.0
      %v4893 = vadd.f32 %v4669, 1.0
      %v4894 = vadd.f32 %v4670, 1.0
      %v4895 = vadd.f32 %v4671, 1.0
      %v4896 = vadd.f32 %v4672, 1.0
      %v4897 = vadd.f32 %v4673, 1.0
      %v4898 = vadd.f32 %v4674, 1.0
      %v4899 = vadd.f32 %v4675, 1.0
      %v4900 = vadd.f32 %v4676, 1.0
      %v4901 = vadd.f32 %v4677, 1.0
      %v4902 = vadd.f32 %v4678, 1.0
      %v4903 = vadd.f32 %v4679, 1.0
      %v4904 = vadd.f32 %v4680, 1.0
      %v4905 = vadd.f32 %v4681, 1.0
      %v4906 = vadd.f32 %v4682, 1.0
      %v4907 = vadd.f32 %v4683, 1.0
      %v4908 = vadd.f32 %v4684, 1.0
      %v4909 = vadd.f32 %v4685, 1.0
      %v4910 = vadd.f32 %v4686, 1.0
      %v4911 = vadd.f32 %v4687, 1.0
      %v4912 = vadd.f32 %v4688, 1.0
      %v4913 = vadd.f32 %v4689, 1.0
      %v4914 = vadd.f32 %v4690, 1.0
      %v4915 = vadd.f32 %v4691, 1.0
      %v4916 = vadd.f32 %v4692, 1.0
      %v4917 = vadd.f32 %v4693, 1.0
      %v4918 = vadd.f32 %v4694, 1.0
      %v4919 = vadd.f32 %v4695, 1.0
      %v4920 = vadd.f32 %v4696, 1.0
      %v4921 = vadd.f32 %v4697, 1.0
      %v4922 = vadd.f32 %v4698, 1.0
      %v4923 = vadd.f32 %v4699, 1.0
      %v4924 = vadd.f32 %v4700, 1.0
      %v4925 = vadd.f32 %v4701, 1.0
      %v4926 = vadd.f32 %v4702, 1.0
      %v4927 = vadd.f32 %v4703, 1.0
      %v4928 = vadd.f32 %v4704, 1.0
      %v4929 = vadd.f32 %v4705, 1.0
      %v4930 = vadd.f32 %v4706, 1.0
      %v4931 = vadd.f32 %v4707, 1.0
      %v4932 = vadd.f32 %v4708, 1.0
      %v4933 = vadd.f32 %v4709, 1.0
      %v4934 = vadd.f32 %v4710, 1.0
      %v4935 = vadd.f32 %v4711, 1.0
      %v4936 = vadd.f32 %v4712, 1.0
      %v4937 = vadd.f32 %v4713, 1.0
      %v4938 = vadd.f32 %v4714, 1.0
      %v4939 = vadd.f32 %v4715, 1.0
      %v4940 = vadd.f32 %v4716, 1.0
      %v4941 = vadd.f32 %v4717, 1.0
      %v4942 = vadd.f32 %v4718, 1.0
      %v4943 = vadd.f32 %v4719, 1.0
      %v4944 = vadd.f32 %v4720, 1.0
      %v4945 = vadd.f32 %v4721, 1.0
      %v4946 = vadd.f32 %v4722, 1.0
      %v4947 = vadd.f32 %v4723, 1.0
      %v4948 = vadd.f32 %v4724, 1.0
      %v4949 = vadd.f32 %v4725, 1.0
      %v4950 = vadd.f32 %v4726, 1.0
      %v4951 = vadd.f32 %v4727, 1.0
      %v4952 = vadd.f32 %v4728, 1.0
      %v4953 = vadd.f32 %v4729, 1.0
      %v4954 = vadd.f32 %v4730, 1.0
      %v4955 = vadd.f32 %v4731, 1.0
      %v4956 = vadd.f32 %v4732, 1.0
      %v4957 = vadd.f32 %v4733, 1.0
      %v4958 = vadd.f32 %v4734, 1.0
      %v4959 = vadd.f32 %v4735, 1.0
      %v4960 = vadd.f32 %v4736, 1.0
      %v4961 = vadd.f32 %v4737, 1.0
      %v4962 = vadd.f32 %v4738, 1.0
      %v4963 = vadd.f32 %v4739, 1.0
      %v4964 = vadd.f32 %v4740, 1.0
      %v4965 = vadd.f32 %v4741, 1.0
      %v4966 = vadd.f32 %v4742, 1.0
      %v4967 = vadd.f32 %v4743, 1.0
      %v4968 = vadd.f32 %v4744, 1.0
      %v4969 = vadd.f32 %v4745, 1.0
      %v4970 = vadd.f32 %v4746, 1.0
      %v4971 = vadd.f32 %v4747, 1.0
      %v4972 = vadd.f32 %v4748, 1.0
      %v4973 = vadd.f32 %v4749, 1.0
      %v4974 = vadd.f32 %v4750, 1.0
      %v4975 = vadd.f32 %v4751, 1.0
      %v4976 = vadd.f32 %v4752, 1.0
      %v4977 = vadd.f32 %v4753, 1.0
      %v4978 = vadd.f32 %v4754, 1.0
      %v4979 = vadd.f32 %v4755, 1.0
      %v4980 = vadd.f32 %v4756, 1.0
      %v4981 = vadd.f32 %v4757, 1.0
      %v4982 = vadd.f32 %v4758, 1.0
      %v4983 = vadd.f32 %v4759, 1.0
      %v4984 = vadd.f32 %v4760, 1.0
      %v4985 = vadd.f32 %v4761, 1.0
      %v4986 = vadd.f32 %v4762, 1.0
      %v4987 = vadd.f32 %v4763, 1.0
      %v4988 = vadd.f32 %v4764, 1.0
      %v4989 = vadd.f32 %v4765, 1.0
      %v4990 = vadd.f32 %v4766, 1.0
      %v4991 = vadd.f32 %v4767, 1.0
      %v4992 = vadd.f32 %v4768, 1.0
      %v4993 = vadd.f32 %v4769, 1.0
      %v4994 = vadd.f32 %v4770, 1.0
      %v4995 = vadd.f32 %v4771, 1.0
      %v4996 = vadd.f32 %v4772, 1.0
      %v4997 = vadd.f32 %v4773, 1.0
      %v4998 = vadd.f32 %v4774, 1.0
      %v4999 = vadd.f32 %v4775, 1.0
      %v5000 = vadd.f32 %v4776, 1.0
      %v5001 = vadd.f32 %v4777, 1.0
      %v5002 = vadd.f32 %v4778, 1.0
      %v5003 = vadd.f32 %v4779, 1.0
      %v5004 = vadd.f32 %v4780, 1.0
      %v5005 = vadd.f32 %v4781, 1.0
      %v5006 = vadd.f32 %v4782, 1.0
      %v5007 = vadd.f32 %v4783, 1.0
      %v5008 = vadd.f32 %v4784, 1.0
      %v5009 = vadd.f32 %v4785, 1.0
      %v5010 = vadd.f32 %v4786, 1.0
      %v5011 = vadd.f32 %v4787, 1.0
      %v5012 = vadd.f32 %v4788, 1.0
      %v5013 = vadd.f32 %v4789, 1.0
      %v5014 = vadd.f32 %v4790, 1.0
      %v5015 = vadd.f32 %v4791, 1.0
      %v5016 = vadd.f32 %v4792, 1.0
      %v5017 = vadd.f32 %v4793, 1.0
      %v5018 = vadd.f32 %v4794, 1.0
      %v5019 = vadd.f32 %v4795, 1.0
      %v5020 = vadd.f32 %v4796, 1.0
      %v5021 = vadd.f32 %v4797, 1.0
      %v5022 = vadd.f32 %v4798, 1.0
      %v5023 = vadd.f32 %v4799, 1.0
      %v5024 = vadd.f32 %v4800, 1.0
      %v5025 = vadd.f32 %v4801, 1.0
      %v5026 = vadd.f32 %v4802, 1.0
      %v5027 = vadd.f32 %v4803, 1.0
      %v5028 = vadd.f32 %v4804, 1.0
      %v5029 = vadd.f32 %v4805, 1.0
      %v5030 = vadd.f32 %v4806, 1.0
      %v5031 = vadd.f32 %v4807, 1.0
      %v5032 = vadd.f32 %v4808, 1.0
      %v5033 = vadd.f32 %v4809, 1.0
      %v5034 = vadd.f32 %v4810, 1.0
      %v5035 = vadd.f32 %v4811, 1.0
      %v5036 = vadd.f32 %v4812, 1.0
      %v5037 = vadd.f32 %v4813, 1.0
      %v5038 = vadd.f32 %v4814, 1.0
      %v5039 = vadd.f32 %v4815, 1.0
      %v5040 = vadd.f32 %v4816, 1.0
      %v5041 = vadd.f32 %v4817, 1.0
      %v5042 = vadd.f32 %v4818, 1.0
      %v5043 = vadd.f32 %v4819, 1.0
      %v5044 = vadd.f32 %v4820, 1.0
      %v5045 = vadd.f32 %v4821, 1.0
      %v5046 = vadd.f32 %v4822, 1.0
      %v5047 = vadd.f32 %v4823, 1.0
      %v5048 = vadd.f32 %v4824, 1.0
      %v5049 = vadd.f32 %v4825, 1.0
      %v5050 = vadd.f32 %v4826, 1.0
      %v5051 = vadd.f32 %v4827, 1.0
      %v5052 = vadd.f32 %v4828, 1.0
      %v5053 = vadd.f32 %v4829, 1.0
      %v5054 = vadd.f32 %v4830, 1.0
      %v5055 = vadd.f32 %v4831, 1.0
      %v5056 = vadd.f32 %v4832, 1.0
      %v5057 = vadd.f32 %v4833, 1.0
      %v5058 = vadd.f32 %v4834, 1.0
      %v5059 = vadd.f32 %v4835, 1.0
      %v5060 = vadd.f32 %v4836, 1.0
      %v5061 = vadd.f32 %v4837, 1.0
      %v5062 = vadd.f32 %v4838, 1.0
      %v5063 = vadd.f32 %v4839, 1.0
      %v5064 = vadd.f32 %v4840, 1.0
      %v5065 = vadd.f32 %v4841, 1.0
      %v5066 = vadd.f32 %v4842, 1.0
      %v5067 = vadd.f32 %v4843, 1.0
      %v5068 = vadd.f32 %v4844, 1.0
      %v5069 = vadd.f32 %v4845, 1.0
      %v5070 = vadd.f32 %v4846, 1.0
      %v5071 = vadd.f32 %v4847, 1.0
      %v5072 = vadd.f32 %v4848, 1.0
      %v5073 = vadd.f32 %v4849, 1.0
      %v5074 = vadd.f32 %v4850, 1.0
      %v5075 = vadd.f32 %v4851, 1.0
      %v5076 = vadd.f32 %v4852, 1.0
      %v5077 = vadd.f32 %v4853, 1.0
      %v5078 = vadd.f32 %v4854, 1.0
      %v5079 = vadd.f32 %v4855, 1.0
      %v5080 = vadd.f32 %v4856, 1.0
      %v5081 = vadd.f32 %v4857, 1.0
      %v5082 = vadd.f32 %v4858, 1.0
      %v5083 = vadd.f32 %v4859, 1.0
      %v5084 = vadd.f32 %v4860, 1.0
      %v5085 = vadd.f32 %v4861, 1.0
      %v5086 = vadd.f32 %v4862, 1.0
      %v5087 = vadd.f32 %v4863, 1.0
      %v5088 = vadd.f32 %v4864, 1.0
      %v5089 = vadd.f32 %v4865, 1.0
      %v5090 = vadd.f32 %v4866, 1.0
      %v5091 = vadd.f32 %v4867, 1.0
      %v5092 = vadd.f32 %v4868, 1.0
      %v5093 = vadd.f32 %v4869, 1.0
      %v5094 = vadd.f32 %v4870, 1.0
      %v5095 = vadd.f32 %v4871, 1.0
      %v5096 = vadd.f32 %v4872, 1.0
      %v5097 = vadd.f32 %v4873, 1.0
      %v5098 = vadd.f32 %v4874, 1.0
      %v5099 = vadd.f32 %v4875, 1.0
      %v5100 = vadd.f32 %v4876, 1.0
      %v5101 = vadd.f32 %v4877, 1.0
      %v5102 = vadd.f32 %v4878, 1.0
      %v5103 = vadd.f32 %v4879, 1.0
      %v5104 = vadd.f32 %v4880, 1.0
      %v5105 = vadd.f32 %v4881, 1.0
      %v5106 = vadd.f32 %v4882, 1.0
      %v5107 = vmul.f32 %v4883, 0.5
      %v5108 = vmul.f32 %v4884, 0.5
      %v5109 = vmul.f32 %v4885, 0.5
      %v5110 = vmul.f32 %v4886, 0.5
      %v5111 = vmul.f32 %v4887, 0.5
      %v5112 = vmul.f32 %v4888, 0.5
      %v5113 = vmul.f32 %v4889, 0.5
      %v5114 = vmul.f32 %v4890, 0.5
      %v5115 = vmul.f32 %v4891, 0.5
      %v5116 = vmul.f32 %v4892, 0.5
      %v5117 = vmul.f32 %v4893, 0.5
      %v5118 = vmul.f32 %v4894, 0.5
      %v5119 = vmul.f32 %v4895, 0.5
      %v5120 = vmul.f32 %v4896, 0.5
      %v5121 = vmul.f32 %v4897, 0.5
      %v5122 = vmul.f32 %v4898, 0.5
      %v5123 = vmul.f32 %v4899, 0.5
      %v5124 = vmul.f32 %v4900, 0.5
      %v5125 = vmul.f32 %v4901, 0.5
      %v5126 = vmul.f32 %v4902, 0.5
      %v5127 = vmul.f32 %v4903, 0.5
      %v5128 = vmul.f32 %v4904, 0.5
      %v5129 = vmul.f32 %v4905, 0.5
      %v5130 = vmul.f32 %v4906, 0.5
      %v5131 = vmul.f32 %v4907, 0.5
      %v5132 = vmul.f32 %v4908, 0.5
      %v5133 = vmul.f32 %v4909, 0.5
      %v5134 = vmul.f32 %v4910, 0.5
      %v5135 = vmul.f32 %v4911, 0.5
      %v5136 = vmul.f32 %v4912, 0.5
      %v5137 = vmul.f32 %v4913, 0.5
      %v5138 = vmul.f32 %v4914, 0.5
      %v5139 = vmul.f32 %v4915, 0.5
      %v5140 = vmul.f32 %v4916, 0.5
      %v5141 = vmul.f32 %v4917, 0.5
      %v5142 = vmul.f32 %v4918, 0.5
      %v5143 = vmul.f32 %v4919, 0.5
      %v5144 = vmul.f32 %v4920, 0.5
      %v5145 = vmul.f32 %v4921, 0.5
      %v5146 = vmul.f32 %v4922, 0.5
      %v5147 = vmul.f32 %v4923, 0.5
      %v5148 = vmul.f32 %v4924, 0.5
      %v5149 = vmul.f32 %v4925, 0.5
      %v5150 = vmul.f32 %v4926, 0.5
      %v5151 = vmul.f32 %v4927, 0.5
      %v5152 = vmul.f32 %v4928, 0.5
      %v5153 = vmul.f32 %v4929, 0.5
      %v5154 = vmul.f32 %v4930, 0.5
      %v5155 = vmul.f32 %v4931, 0.5
      %v5156 = vmul.f32 %v4932, 0.5
      %v5157 = vmul.f32 %v4933, 0.5
      %v5158 = vmul.f32 %v4934, 0.5
      %v5159 = vmul.f32 %v4935, 0.5
      %v5160 = vmul.f32 %v4936, 0.5
      %v5161 = vmul.f32 %v4937, 0.5
      %v5162 = vmul.f32 %v4938, 0.5
      %v5163 = vmul.f32 %v4939, 0.5
      %v5164 = vmul.f32 %v4940, 0.5
      %v5165 = vmul.f32 %v4941, 0.5
      %v5166 = vmul.f32 %v4942, 0.5
      %v5167 = vmul.f32 %v4943, 0.5
      %v5168 = vmul.f32 %v4944, 0.5
      %v5169 = vmul.f32 %v4945, 0.5
      %v5170 = vmul.f32 %v4946, 0.5
      %v5171 = vmul.f32 %v4947, 0.5
      %v5172 = vmul.f32 %v4948, 0.5
      %v5173 = vmul.f32 %v4949, 0.5
      %v5174 = vmul.f32 %v4950, 0.5
      %v5175 = vmul.f32 %v4951, 0.5
      %v5176 = vmul.f32 %v4952, 0.5
      %v5177 = vmul.f32 %v4953, 0.5
      %v5178 = vmul.f32 %v4954, 0.5
      %v5179 = vmul.f32 %v4955, 0.5
      %v5180 = vmul.f32 %v4956, 0.5
      %v5181 = vmul.f32 %v4957, 0.5
      %v5182 = vmul.f32 %v4958, 0.5
      %v5183 = vmul.f32 %v4959, 0.5
      %v5184 = vmul.f32 %v4960, 0.5
      %v5185 = vmul.f32 %v4961, 0.5
      %v5186 = vmul.f32 %v4962, 0.5
      %v5187 = vmul.f32 %v4963, 0.5
      %v5188 = vmul.f32 %v4964, 0.5
      %v5189 = vmul.f32 %v4965, 0.5
      %v5190 = vmul.f32 %v4966, 0.5
      %v5191 = vmul.f32 %v4967, 0.5
      %v5192 = vmul.f32 %v4968, 0.5
      %v5193 = vmul.f32 %v4969, 0.5
      %v5194 = vmul.f32 %v4970, 0.5
      %v5195 = vmul.f32 %v4971, 0.5
      %v5196 = vmul.f32 %v4972, 0.5
      %v5197 = vmul.f32 %v4973, 0.5
      %v5198 = vmul.f32 %v4974, 0.5
      %v5199 = vmul.f32 %v4975, 0.5
      %v5200 = vmul.f32 %v4976, 0.5
      %v5201 = vmul.f32 %v4977, 0.5
      %v5202 = vmul.f32 %v4978, 0.5
      %v5203 = vmul.f32 %v4979, 0.5
      %v5204 = vmul.f32 %v4980, 0.5
      %v5205 = vmul.f32 %v4981, 0.5
      %v5206 = vmul.f32 %v4982, 0.5
      %v5207 = vmul.f32 %v4983, 0.5
      %v5208 = vmul.f32 %v4984, 0.5
      %v5209 = vmul.f32 %v4985, 0.5
      %v5210 = vmul.f32 %v4986, 0.5
      %v5211 = vmul.f32 %v4987, 0.5
      %v5212 = vmul.f32 %v4988, 0.5
      %v5213 = vmul.f32 %v4989, 0.5
      %v5214 = vmul.f32 %v4990, 0.5
      %v5215 = vmul.f32 %v4991, 0.5
      %v5216 = vmul.f32 %v4992, 0.5
      %v5217 = vmul.f32 %v4993, 0.5
      %v5218 = vmul.f32 %v4994, 0.5
      %v5219 = vmul.f32 %v4995, 0.5
      %v5220 = vmul.f32 %v4996, 0.5
      %v5221 = vmul.f32 %v4997, 0.5
      %v5222 = vmul.f32 %v4998, 0.5
      %v5223 = vmul.f32 %v4999, 0.5
      %v5224 = vmul.f32 %v5000, 0.5
      %v5225 = vmul.f32 %v5001, 0.5
      %v5226 = vmul.f32 %v5002, 0.5
      %v5227 = vmul.f32 %v5003, 0.5
      %v5228 = vmul.f32 %v5004, 0.5
      %v5229 = vmul.f32 %v5005, 0.5
      %v5230 = vmul.f32 %v5006, 0.5
      %v5231 = vmul.f32 %v5007, 0.5
      %v5232 = vmul.f32 %v5008, 0.5
      %v5233 = vmul.f32 %v5009, 0.5
      %v5234 = vmul.f32 %v5010, 0.5
      %v5235 = vmul.f32 %v5011, 0.5
      %v5236 = vmul.f32 %v5012, 0.5
      %v5237 = vmul.f32 %v5013, 0.5
      %v5238 = vmul.f32 %v5014, 0.5
      %v5239 = vmul.f32 %v5015, 0.5
      %v5240 = vmul.f32 %v5016, 0.5
      %v5241 = vmul.f32 %v5017, 0.5
      %v5242 = vmul.f32 %v5018, 0.5
      %v5243 = vmul.f32 %v5019, 0.5
      %v5244 = vmul.f32 %v5020, 0.5
      %v5245 = vmul.f32 %v5021, 0.5
      %v5246 = vmul.f32 %v5022, 0.5
      %v5247 = vmul.f32 %v5023, 0.5
      %v5248 = vmul.f32 %v5024, 0.5
      %v5249 = vmul.f32 %v5025, 0.5
      %v5250 = vmul.f32 %v5026, 0.5
      %v5251 = vmul.f32 %v5027, 0.5
      %v5252 = vmul.f32 %v5028, 0.5
      %v5253 = vmul.f32 %v5029, 0.5
      %v5254 = vmul.f32 %v5030, 0.5
      %v5255 = vmul.f32 %v5031, 0.5
      %v5256 = vmul.f32 %v5032, 0.5
      %v5257 = vmul.f32 %v5033, 0.5
      %v5258 = vmul.f32 %v5034, 0.5
      %v5259 = vmul.f32 %v5035, 0.5
      %v5260 = vmul.f32 %v5036, 0.5
      %v5261 = vmul.f32 %v5037, 0.5
      %v5262 = vmul.f32 %v5038, 0.5
      %v5263 = vmul.f32 %v5039, 0.5
      %v5264 = vmul.f32 %v5040, 0.5
      %v5265 = vmul.f32 %v5041, 0.5
      %v5266 = vmul.f32 %v5042, 0.5
      %v5267 = vmul.f32 %v5043, 0.5
      %v5268 = vmul.f32 %v5044, 0.5
      %v5269 = vmul.f32 %v5045, 0.5
      %v5270 = vmul.f32 %v5046, 0.5
      %v5271 = vmul.f32 %v5047, 0.5
      %v5272 = vmul.f32 %v5048, 0.5
      %v5273 = vmul.f32 %v5049, 0.5
      %v5274 = vmul.f32 %v5050, 0.5
      %v5275 = vmul.f32 %v5051, 0.5
      %v5276 = vmul.f32 %v5052, 0.5
      %v5277 = vmul.f32 %v5053, 0.5
      %v5278 = vmul.f32 %v5054, 0.5
      %v5279 = vmul.f32 %v5055, 0.5
      %v5280 = vmul.f32 %v5056, 0.5
      %v5281 = vmul.f32 %v5057, 0.5
      %v5282 = vmul.f32 %v5058, 0.5
      %v5283 = vmul.f32 %v5059, 0.5
      %v5284 = vmul.f32 %v5060, 0.5
      %v5285 = vmul.f32 %v5061, 0.5
      %v5286 = vmul.f32 %v5062, 0.5
      %v5287 = vmul.f32 %v5063, 0.5
      %v5288 = vmul.f32 %v5064, 0.5
      %v5289 = vmul.f32 %v5065, 0.5
      %v5290 = vmul.f32 %v5066, 0.5
      %v5291 = vmul.f32 %v5067, 0.5
      %v5292 = vmul.f32 %v5068, 0.5
      %v5293 = vmul.f32 %v5069, 0.5
      %v5294 = vmul.f32 %v5070, 0.5
      %v5295 = vmul.f32 %v5071, 0.5
      %v5296 = vmul.f32 %v5072, 0.5
      %v5297 = vmul.f32 %v5073, 0.5
      %v5298 = vmul.f32 %v5074, 0.5
      %v5299 = vmul.f32 %v5075, 0.5
      %v5300 = vmul.f32 %v5076, 0.5
      %v5301 = vmul.f32 %v5077, 0.5
      %v5302 = vmul.f32 %v5078, 0.5
      %v5303 = vmul.f32 %v5079, 0.5
      %v5304 = vmul.f32 %v5080, 0.5
      %v5305 = vmul.f32 %v5081, 0.5
      %v5306 = vmul.f32 %v5082, 0.5
      %v5307 = vmul.f32 %v5083, 0.5
      %v5308 = vmul.f32 %v5084, 0.5
      %v5309 = vmul.f32 %v5085, 0.5
      %v5310 = vmul.f32 %v5086, 0.5
      %v5311 = vmul.f32 %v5087, 0.5
      %v5312 = vmul.f32 %v5088, 0.5
      %v5313 = vmul.f32 %v5089, 0.5
      %v5314 = vmul.f32 %v5090, 0.5
      %v5315 = vmul.f32 %v5091, 0.5
      %v5316 = vmul.f32 %v5092, 0.5
      %v5317 = vmul.f32 %v5093, 0.5
      %v5318 = vmul.f32 %v5094, 0.5
      %v5319 = vmul.f32 %v5095, 0.5
      %v5320 = vmul.f32 %v5096, 0.5
      %v5321 = vmul.f32 %v5097, 0.5
      %v5322 = vmul.f32 %v5098, 0.5
      %v5323 = vmul.f32 %v5099, 0.5
      %v5324 = vmul.f32 %v5100, 0.5
      %v5325 = vmul.f32 %v5101, 0.5
      %v5326 = vmul.f32 %v5102, 0.5
      %v5327 = vmul.f32 %v5103, 0.5
      %v5328 = vmul.f32 %v5104, 0.5
      %v5329 = vmul.f32 %v5105, 0.5
      %v5330 = vmul.f32 %v5106, 0.5
      %5331 = vst.msk [vmem:[%s589] sm:$0xff] %vm2679, %v2579
      %5332 = vst.msk [vmem:[%s589 + $0x8] sm:$0xff] %vm2679, %v2582
      %5333 = vst.msk [vmem:[%s589 + $0x10] sm:$0xff] %vm2679, %v2585
      %5334 = vst.msk [vmem:[%s589 + $0x18] sm:$0xff] %vm2679, %v2588
      %5335 = vst.msk [vmem:[%s589 + $0x20] sm:$0xff] %vm2679, %v2591
      %5336 = vst.msk [vmem:[%s589 + $0x28] sm:$0xff] %vm2679, %v2594
      %5337 = vst.msk [vmem:[%s589 + $0x30] sm:$0xff] %vm2679, %v2597
      %5338 = vst.msk [vmem:[%s589 + $0x38] sm:$0xff] %vm2679, %v2600
      %5339 = vst.msk [vmem:[%s589 + $0x40] sm:$0xff] %vm2679, %v2603
      %5340 = vst.msk [vmem:[%s589 + $0x48] sm:$0xff] %vm2679, %v2606
      %5341 = vst.msk [vmem:[%s589 + $0x50] sm:$0xff] %vm2679, %v2609
      %5342 = vst.msk [vmem:[%s589 + $0x58] sm:$0xff] %vm2679, %v2612
      %5343 = vst.msk [vmem:[%s589 + $0x60] sm:$0xff] %vm2679, %v2615
      %5344 = vst.msk [vmem:[%s589 + $0x68] sm:$0xff] %vm2679, %v2618
      %5345 = vst.msk [vmem:[%s589 + $0x70] sm:$0xff] %vm2679, %v2621
      %5346 = vst.msk [vmem:[%s589 + $0x78] sm:$0xff] %vm2679, %v2624
      %5347 = vst.msk [vmem:[%s589 + $0x80] sm:$0xff] %vm2679, %v2627
      %5348 = vst.msk [vmem:[%s589 + $0x88] sm:$0xff] %vm2679, %v2630
      %5349 = vst.msk [vmem:[%s589 + $0x90] sm:$0xff] %vm2679, %v2633
      %5350 = vst.msk [vmem:[%s589 + $0x98] sm:$0xff] %vm2679, %v2636
      %5351 = vst.msk [vmem:[%s589 + $0xa0] sm:$0xff] %vm2679, %v2639
      %5352 = vst.msk [vmem:[%s589 + $0xa8] sm:$0xff] %vm2679, %v2642
      %5353 = vst.msk [vmem:[%s589 + $0xb0] sm:$0xff] %vm2679, %v2645
      %5354 = vst.msk [vmem:[%s589 + $0xb8] sm:$0xff] %vm2679, %v2648
      %5355 = vst.msk [vmem:[%s589 + $0xc0] sm:$0xff] %vm2679, %v2651
      %5356 = vst.msk [vmem:[%s589 + $0xc8] sm:$0xff] %vm2679, %v2654
      %5357 = vst.msk [vmem:[%s589 + $0xd0] sm:$0xff] %vm2679, %v2657
      %5358 = vst.msk [vmem:[%s589 + $0xd8] sm:$0xff] %vm2679, %v2660
      %5359 = vst.msk [vmem:[%s589 + $0xe0] sm:$0xff] %vm2679, %v2663
      %5360 = vst.msk [vmem:[%s589 + $0xe8] sm:$0xff] %vm2679, %v2666
      %5361 = vst.msk [vmem:[%s589 + $0xf0] sm:$0xff] %vm2679, %v2669
      %5362 = vst.msk [vmem:[%s589 + $0xf8] sm:$0xff] %vm2679, %v2672
      %5363 = vst [vmem:[%s596] sm:$0xff] %v5107
      %5364 = vst [vmem:[%s596 + $0x8] sm:$0xff] %v5108
      %5365 = vst [vmem:[%s596 + $0x10] sm:$0xff] %v5109
      %5366 = vst [vmem:[%s596 + $0x18] sm:$0xff] %v5110
      %5367 = vst [vmem:[%s596 + $0x20] sm:$0xff] %v5111
      %5368 = vst [vmem:[%s596 + $0x28] sm:$0xff] %v5112
      %5369 = vst.msk [vmem:[%s596 + $0x30] sm:$0xff] %vm1331, %v5113
      %5370 = vst [vmem:[%s596 + $0x38] sm:$0xff] %v5114
      %5371 = vst [vmem:[%s596 + $0x40] sm:$0xff] %v5115
      %5372 = vst [vmem:[%s596 + $0x48] sm:$0xff] %v5116
      %5373 = vst [vmem:[%s596 + $0x50] sm:$0xff] %v5117
      %5374 = vst [vmem:[%s596 + $0x58] sm:$0xff] %v5118
      %5375 = vst [vmem:[%s596 + $0x60] sm:$0xff] %v5119
      %5376 = vst.msk [vmem:[%s596 + $0x68] sm:$0xff] %vm1331, %v5120
      %5377 = vst [vmem:[%s596 + $0x70] sm:$0xff] %v5121
      %5378 = vst [vmem:[%s596 + $0x78] sm:$0xff] %v5122
      %5379 = vst [vmem:[%s596 + $0x80] sm:$0xff] %v5123
      %5380 = vst [vmem:[%s596 + $0x88] sm:$0xff] %v5124
      %5381 = vst [vmem:[%s596 + $0x90] sm:$0xff] %v5125
      %5382 = vst [vmem:[%s596 + $0x98] sm:$0xff] %v5126
      %5383 = vst.msk [vmem:[%s596 + $0xa0] sm:$0xff] %vm1331, %v5127
      %5384 = vst [vmem:[%s596 + $0xa8] sm:$0xff] %v5128
      %5385 = vst [vmem:[%s596 + $0xb0] sm:$0xff] %v5129
      %5386 = vst [vmem:[%s596 + $0xb8] sm:$0xff] %v5130
      %5387 = vst [vmem:[%s596 + $0xc0] sm:$0xff] %v5131
      %5388 = vst [vmem:[%s596 + $0xc8] sm:$0xff] %v5132
      %5389 = vst [vmem:[%s596 + $0xd0] sm:$0xff] %v5133
      %5390 = vst.msk [vmem:[%s596 + $0xd8] sm:$0xff] %vm1331, %v5134
      %5391 = vst [vmem:[%s596 + $0xe0] sm:$0xff] %v5135
      %5392 = vst [vmem:[%s596 + $0xe8] sm:$0xff] %v5136
      %5393 = vst [vmem:[%s596 + $0xf0] sm:$0xff] %v5137
      %5394 = vst [vmem:[%s596 + $0xf8] sm:$0xff] %v5138
      %5395 = vst [vmem:[%s596 + $0x100] sm:$0xff] %v5139
      %5396 = vst [vmem:[%s596 + $0x108] sm:$0xff] %v5140
      %5397 = vst.msk [vmem:[%s596 + $0x110] sm:$0xff] %vm1331, %v5141
      %5398 = vst [vmem:[%s596 + $0x118] sm:$0xff] %v5142
      %5399 = vst [vmem:[%s596 + $0x120] sm:$0xff] %v5143
      %5400 = vst [vmem:[%s596 + $0x128] sm:$0xff] %v5144
      %5401 = vst [vmem:[%s596 + $0x130] sm:$0xff] %v5145
      %5402 = vst [vmem:[%s596 + $0x138] sm:$0xff] %v5146
      %5403 = vst [vmem:[%s596 + $0x140] sm:$0xff] %v5147
      %5404 = vst.msk [vmem:[%s596 + $0x148] sm:$0xff] %vm1331, %v5148
      %5405 = vst [vmem:[%s596 + $0x150] sm:$0xff] %v5149
      %5406 = vst [vmem:[%s596 + $0x158] sm:$0xff] %v5150
      %5407 = vst [vmem:[%s596 + $0x160] sm:$0xff] %v5151
      %5408 = vst [vmem:[%s596 + $0x168] sm:$0xff] %v5152
      %5409 = vst [vmem:[%s596 + $0x170] sm:$0xff] %v5153
      %5410 = vst [vmem:[%s596 + $0x178] sm:$0xff] %v5154
      %5411 = vst.msk [vmem:[%s596 + $0x180] sm:$0xff] %vm1331, %v5155
      %5412 = vst [vmem:[%s596 + $0x188] sm:$0xff] %v5156
      %5413 = vst [vmem:[%s596 + $0x190] sm:$0xff] %v5157
      %5414 = vst [vmem:[%s596 + $0x198] sm:$0xff] %v5158
      %5415 = vst [vmem:[%s596 + $0x1a0] sm:$0xff] %v5159
      %5416 = vst [vmem:[%s596 + $0x1a8] sm:$0xff] %v5160
      %5417 = vst [vmem:[%s596 + $0x1b0] sm:$0xff] %v5161
      %5418 = vst.msk [vmem:[%s596 + $0x1b8] sm:$0xff] %vm1331, %v5162
      %5419 = vst [vmem:[%s596 + $0x1c0] sm:$0xff] %v5163
      %5420 = vst [vmem:[%s596 + $0x1c8] sm:$0xff] %v5164
      %5421 = vst [vmem:[%s596 + $0x1d0] sm:$0xff] %v5165
      %5422 = vst [vmem:[%s596 + $0x1d8] sm:$0xff] %v5166
      %5423 = vst [vmem:[%s596 + $0x1e0] sm:$0xff] %v5167
      %5424 = vst [vmem:[%s596 + $0x1e8] sm:$0xff] %v5168
      %5425 = vst.msk [vmem:[%s596 + $0x1f0] sm:$0xff] %vm1331, %v5169
      %5426 = vst [vmem:[%s596 + $0x1f8] sm:$0xff] %v5170
      %5427 = vst [vmem:[%s596 + $0x200] sm:$0xff] %v5171
      %5428 = vst [vmem:[%s596 + $0x208] sm:$0xff] %v5172
      %5429 = vst [vmem:[%s596 + $0x210] sm:$0xff] %v5173
      %5430 = vst [vmem:[%s596 + $0x218] sm:$0xff] %v5174
      %5431 = vst [vmem:[%s596 + $0x220] sm:$0xff] %v5175
      %5432 = vst.msk [vmem:[%s596 + $0x228] sm:$0xff] %vm1331, %v5176
      %5433 = vst [vmem:[%s596 + $0x230] sm:$0xff] %v5177
      %5434 = vst [vmem:[%s596 + $0x238] sm:$0xff] %v5178
      %5435 = vst [vmem:[%s596 + $0x240] sm:$0xff] %v5179
      %5436 = vst [vmem:[%s596 + $0x248] sm:$0xff] %v5180
      %5437 = vst [vmem:[%s596 + $0x250] sm:$0xff] %v5181
      %5438 = vst [vmem:[%s596 + $0x258] sm:$0xff] %v5182
      %5439 = vst.msk [vmem:[%s596 + $0x260] sm:$0xff] %vm1331, %v5183
      %5440 = vst [vmem:[%s596 + $0x268] sm:$0xff] %v5184
      %5441 = vst [vmem:[%s596 + $0x270] sm:$0xff] %v5185
      %5442 = vst [vmem:[%s596 + $0x278] sm:$0xff] %v5186
      %5443 = vst [vmem:[%s596 + $0x280] sm:$0xff] %v5187
      %5444 = vst [vmem:[%s596 + $0x288] sm:$0xff] %v5188
      %5445 = vst [vmem:[%s596 + $0x290] sm:$0xff] %v5189
      %5446 = vst.msk [vmem:[%s596 + $0x298] sm:$0xff] %vm1331, %v5190
      %5447 = vst [vmem:[%s596 + $0x2a0] sm:$0xff] %v5191
      %5448 = vst [vmem:[%s596 + $0x2a8] sm:$0xff] %v5192
      %5449 = vst [vmem:[%s596 + $0x2b0] sm:$0xff] %v5193
      %5450 = vst [vmem:[%s596 + $0x2b8] sm:$0xff] %v5194
      %5451 = vst [vmem:[%s596 + $0x2c0] sm:$0xff] %v5195
      %5452 = vst [vmem:[%s596 + $0x2c8] sm:$0xff] %v5196
      %5453 = vst.msk [vmem:[%s596 + $0x2d0] sm:$0xff] %vm1331, %v5197
      %5454 = vst [vmem:[%s596 + $0x2d8] sm:$0xff] %v5198
      %5455 = vst [vmem:[%s596 + $0x2e0] sm:$0xff] %v5199
      %5456 = vst [vmem:[%s596 + $0x2e8] sm:$0xff] %v5200
      %5457 = vst [vmem:[%s596 + $0x2f0] sm:$0xff] %v5201
      %5458 = vst [vmem:[%s596 + $0x2f8] sm:$0xff] %v5202
      %5459 = vst [vmem:[%s596 + $0x300] sm:$0xff] %v5203
      %5460 = vst.msk [vmem:[%s596 + $0x308] sm:$0xff] %vm1331, %v5204
      %5461 = vst [vmem:[%s596 + $0x310] sm:$0xff] %v5205
      %5462 = vst [vmem:[%s596 + $0x318] sm:$0xff] %v5206
      %5463 = vst [vmem:[%s596 + $0x320] sm:$0xff] %v5207
      %5464 = vst [vmem:[%s596 + $0x328] sm:$0xff] %v5208
      %5465 = vst [vmem:[%s596 + $0x330] sm:$0xff] %v5209
      %5466 = vst [vmem:[%s596 + $0x338] sm:$0xff] %v5210
      %5467 = vst.msk [vmem:[%s596 + $0x340] sm:$0xff] %vm1331, %v5211
      %5468 = vst [vmem:[%s596 + $0x348] sm:$0xff] %v5212
      %5469 = vst [vmem:[%s596 + $0x350] sm:$0xff] %v5213
      %5470 = vst [vmem:[%s596 + $0x358] sm:$0xff] %v5214
      %5471 = vst [vmem:[%s596 + $0x360] sm:$0xff] %v5215
      %5472 = vst [vmem:[%s596 + $0x368] sm:$0xff] %v5216
      %5473 = vst [vmem:[%s596 + $0x370] sm:$0xff] %v5217
      %5474 = vst.msk [vmem:[%s596 + $0x378] sm:$0xff] %vm1331, %v5218
      %5475 = vst [vmem:[%s596 + $0x380] sm:$0xff] %v5219
      %5476 = vst [vmem:[%s596 + $0x388] sm:$0xff] %v5220
      %5477 = vst [vmem:[%s596 + $0x390] sm:$0xff] %v5221
      %5478 = vst [vmem:[%s596 + $0x398] sm:$0xff] %v5222
      %5479 = vst [vmem:[%s596 + $0x3a0] sm:$0xff] %v5223
      %5480 = vst [vmem:[%s596 + $0x3a8] sm:$0xff] %v5224
      %5481 = vst.msk [vmem:[%s596 + $0x3b0] sm:$0xff] %vm1331, %v5225
      %5482 = vst [vmem:[%s596 + $0x3b8] sm:$0xff] %v5226
      %5483 = vst [vmem:[%s596 + $0x3c0] sm:$0xff] %v5227
      %5484 = vst [vmem:[%s596 + $0x3c8] sm:$0xff] %v5228
      %5485 = vst [vmem:[%s596 + $0x3d0] sm:$0xff] %v5229
      %5486 = vst [vmem:[%s596 + $0x3d8] sm:$0xff] %v5230
      %5487 = vst [vmem:[%s596 + $0x3e0] sm:$0xff] %v5231
      %5488 = vst.msk [vmem:[%s596 + $0x3e8] sm:$0xff] %vm1331, %v5232
      %5489 = vst [vmem:[%s596 + $0x3f0] sm:$0xff] %v5233
      %5490 = vst [vmem:[%s596 + $0x3f8] sm:$0xff] %v5234
      %5491 = vst [vmem:[%s596 + $0x400] sm:$0xff] %v5235
      %5492 = vst [vmem:[%s596 + $0x408] sm:$0xff] %v5236
      %5493 = vst [vmem:[%s596 + $0x410] sm:$0xff] %v5237
      %5494 = vst [vmem:[%s596 + $0x418] sm:$0xff] %v5238
      %5495 = vst.msk [vmem:[%s596 + $0x420] sm:$0xff] %vm1331, %v5239
      %5496 = vst [vmem:[%s596 + $0x428] sm:$0xff] %v5240
      %5497 = vst [vmem:[%s596 + $0x430] sm:$0xff] %v5241
      %5498 = vst [vmem:[%s596 + $0x438] sm:$0xff] %v5242
      %5499 = vst [vmem:[%s596 + $0x440] sm:$0xff] %v5243
      %5500 = vst [vmem:[%s596 + $0x448] sm:$0xff] %v5244
      %5501 = vst [vmem:[%s596 + $0x450] sm:$0xff] %v5245
      %5502 = vst.msk [vmem:[%s596 + $0x458] sm:$0xff] %vm1331, %v5246
      %5503 = vst [vmem:[%s596 + $0x460] sm:$0xff] %v5247
      %5504 = vst [vmem:[%s596 + $0x468] sm:$0xff] %v5248
      %5505 = vst [vmem:[%s596 + $0x470] sm:$0xff] %v5249
      %5506 = vst [vmem:[%s596 + $0x478] sm:$0xff] %v5250
      %5507 = vst [vmem:[%s596 + $0x480] sm:$0xff] %v5251
      %5508 = vst [vmem:[%s596 + $0x488] sm:$0xff] %v5252
      %5509 = vst.msk [vmem:[%s596 + $0x490] sm:$0xff] %vm1331, %v5253
      %5510 = vst [vmem:[%s596 + $0x498] sm:$0xff] %v5254
      %5511 = vst [vmem:[%s596 + $0x4a0] sm:$0xff] %v5255
      %5512 = vst [vmem:[%s596 + $0x4a8] sm:$0xff] %v5256
      %5513 = vst [vmem:[%s596 + $0x4b0] sm:$0xff] %v5257
      %5514 = vst [vmem:[%s596 + $0x4b8] sm:$0xff] %v5258
      %5515 = vst [vmem:[%s596 + $0x4c0] sm:$0xff] %v5259
      %5516 = vst.msk [vmem:[%s596 + $0x4c8] sm:$0xff] %vm1331, %v5260
      %5517 = vst [vmem:[%s596 + $0x4d0] sm:$0xff] %v5261
      %5518 = vst [vmem:[%s596 + $0x4d8] sm:$0xff] %v5262
      %5519 = vst [vmem:[%s596 + $0x4e0] sm:$0xff] %v5263
      %5520 = vst [vmem:[%s596 + $0x4e8] sm:$0xff] %v5264
      %5521 = vst [vmem:[%s596 + $0x4f0] sm:$0xff] %v5265
      %5522 = vst [vmem:[%s596 + $0x4f8] sm:$0xff] %v5266
      %5523 = vst.msk [vmem:[%s596 + $0x500] sm:$0xff] %vm1331, %v5267
      %5524 = vst [vmem:[%s596 + $0x508] sm:$0xff] %v5268
      %5525 = vst [vmem:[%s596 + $0x510] sm:$0xff] %v5269
      %5526 = vst [vmem:[%s596 + $0x518] sm:$0xff] %v5270
      %5527 = vst [vmem:[%s596 + $0x520] sm:$0xff] %v5271
      %5528 = vst [vmem:[%s596 + $0x528] sm:$0xff] %v5272
      %5529 = vst [vmem:[%s596 + $0x530] sm:$0xff] %v5273
      %5530 = vst.msk [vmem:[%s596 + $0x538] sm:$0xff] %vm1331, %v5274
      %5531 = vst [vmem:[%s596 + $0x540] sm:$0xff] %v5275
      %5532 = vst [vmem:[%s596 + $0x548] sm:$0xff] %v5276
      %5533 = vst [vmem:[%s596 + $0x550] sm:$0xff] %v5277
      %5534 = vst [vmem:[%s596 + $0x558] sm:$0xff] %v5278
      %5535 = vst [vmem:[%s596 + $0x560] sm:$0xff] %v5279
      %5536 = vst [vmem:[%s596 + $0x568] sm:$0xff] %v5280
      %5537 = vst.msk [vmem:[%s596 + $0x570] sm:$0xff] %vm1331, %v5281
      %5538 = vst [vmem:[%s596 + $0x578] sm:$0xff] %v5282
      %5539 = vst [vmem:[%s596 + $0x580] sm:$0xff] %v5283
      %5540 = vst [vmem:[%s596 + $0x588] sm:$0xff] %v5284
      %5541 = vst [vmem:[%s596 + $0x590] sm:$0xff] %v5285
      %5542 = vst [vmem:[%s596 + $0x598] sm:$0xff] %v5286
      %5543 = vst [vmem:[%s596 + $0x5a0] sm:$0xff] %v5287
      %5544 = vst.msk [vmem:[%s596 + $0x5a8] sm:$0xff] %vm1331, %v5288
      %5545 = vst [vmem:[%s596 + $0x5b0] sm:$0xff] %v5289
      %5546 = vst [vmem:[%s596 + $0x5b8] sm:$0xff] %v5290
      %5547 = vst [vmem:[%s596 + $0x5c0] sm:$0xff] %v5291
      %5548 = vst [vmem:[%s596 + $0x5c8] sm:$0xff] %v5292
      %5549 = vst [vmem:[%s596 + $0x5d0] sm:$0xff] %v5293
      %5550 = vst [vmem:[%s596 + $0x5d8] sm:$0xff] %v5294
      %5551 = vst.msk [vmem:[%s596 + $0x5e0] sm:$0xff] %vm1331, %v5295
      %5552 = vst [vmem:[%s596 + $0x5e8] sm:$0xff] %v5296
      %5553 = vst [vmem:[%s596 + $0x5f0] sm:$0xff] %v5297
      %5554 = vst [vmem:[%s596 + $0x5f8] sm:$0xff] %v5298
      %5555 = vst [vmem:[%s596 + $0x600] sm:$0xff] %v5299
      %5556 = vst [vmem:[%s596 + $0x608] sm:$0xff] %v5300
      %5557 = vst [vmem:[%s596 + $0x610] sm:$0xff] %v5301
      %5558 = vst.msk [vmem:[%s596 + $0x618] sm:$0xff] %vm1331, %v5302
      %5559 = vst [vmem:[%s596 + $0x620] sm:$0xff] %v5303
      %5560 = vst [vmem:[%s596 + $0x628] sm:$0xff] %v5304
      %5561 = vst [vmem:[%s596 + $0x630] sm:$0xff] %v5305
      %5562 = vst [vmem:[%s596 + $0x638] sm:$0xff] %v5306
      %5563 = vst [vmem:[%s596 + $0x640] sm:$0xff] %v5307
      %5564 = vst [vmem:[%s596 + $0x648] sm:$0xff] %v5308
      %5565 = vst.msk [vmem:[%s596 + $0x650] sm:$0xff] %vm1331, %v5309
      %5566 = vst [vmem:[%s596 + $0x658] sm:$0xff] %v5310
      %5567 = vst [vmem:[%s596 + $0x660] sm:$0xff] %v5311
      %5568 = vst [vmem:[%s596 + $0x668] sm:$0xff] %v5312
      %5569 = vst [vmem:[%s596 + $0x670] sm:$0xff] %v5313
      %5570 = vst [vmem:[%s596 + $0x678] sm:$0xff] %v5314
      %5571 = vst [vmem:[%s596 + $0x680] sm:$0xff] %v5315
      %5572 = vst.msk [vmem:[%s596 + $0x688] sm:$0xff] %vm1331, %v5316
      %5573 = vst [vmem:[%s596 + $0x690] sm:$0xff] %v5317
      %5574 = vst [vmem:[%s596 + $0x698] sm:$0xff] %v5318
      %5575 = vst [vmem:[%s596 + $0x6a0] sm:$0xff] %v5319
      %5576 = vst [vmem:[%s596 + $0x6a8] sm:$0xff] %v5320
      %5577 = vst [vmem:[%s596 + $0x6b0] sm:$0xff] %v5321
      %5578 = vst [vmem:[%s596 + $0x6b8] sm:$0xff] %v5322
      %5579 = vst.msk [vmem:[%s596 + $0x6c0] sm:$0xff] %vm1331, %v5323
      %5580 = vst [vmem:[%s596 + $0x6c8] sm:$0xff] %v5324
      %5581 = vst [vmem:[%s596 + $0x6d0] sm:$0xff] %v5325
      %5582 = vst [vmem:[%s596 + $0x6d8] sm:$0xff] %v5326
      %5583 = vst [vmem:[%s596 + $0x6e0] sm:$0xff] %v5327
      %5584 = vst [vmem:[%s596 + $0x6e8] sm:$0xff] %v5328
      %5585 = vst [vmem:[%s596 + $0x6f0] sm:$0xff] %v5329
      %5586 = vst.msk [vmem:[%s596 + $0x6f8] sm:$0xff] %vm1331, %v5330
      %s5587 = smul.u32 32, %s30
      %p5588 = scmp.lt.s32.totalorder %s5587, 63
      %s5589 = scalar_select %p5588, %s5587, 63
      %s5590 = smul.addr %s5589, 8
      %s5591 = scalar_lea.vmem %s17, %s5590
      %s5592 = smul.u32 32, %s30
      %p5593 = scmp.lt.s32.totalorder %s5592, 63
      %s5594 = scalar_select %p5593, %s5592, 63
      %s5595 = smul.addr %s5594, 7
      %s5596 = smul.addr %s5595, 8
      %s5597 = scalar_lea.vmem %s18, %s5596
      // Predicated region
      $region89: #{autoencode_forward.1} parent=87 // pred_check
        %p5598 = pneg %p410
      $region90: #{autoencode_forward.1} parent=87 // pred_check_branch
        %5600 = sbr.rel (%p5598) target = $region92
      $region91: #{autoencode_forward.1} parent=87 // pred_region
        %s5601 = smul.u32 32, %s30
      $region92: #{autoencode_forward.1} parent=87 // pred_fallthru
        _
      // Predicated region
      $region93: #{autoencode_forward.1} parent=87 // pred_check
        %p5602 = pneg %p436
      $region94: #{autoencode_forward.1} parent=87 // pred_check_branch
        %5604 = sbr.rel (%p5602) target = $region96
      $region95: #{autoencode_forward.1} parent=87 // pred_region
        %s5605 = smul.u32 32, %s30
      $region96: #{autoencode_forward.1} parent=87 // pred_fallthru
        _
    $region88: #{autoencode_forward.1} parent=5 // pred_fallthru
      _
    %p5606 = scmp.le.s32.totalorder 2, %s25
    // Predicated region
    $region97: #{autoencode_forward.1} parent=5 // pred_check
      %p5607 = pneg %p5606
    $region98: #{autoencode_forward.1} parent=5 // pred_check_branch
      %5609 = sbr.rel (%p5607) target = $region100
    $region99: #{autoencode_forward.1} parent=5 // pred_region
      %s5610 = ssub.s32 %s25, 2
      // Predicated region
      $region101: #{autoencode_forward.1} parent=99 // pred_check
        %p5611 = pneg %p416
      $region102: #{autoencode_forward.1} parent=99 // pred_check_branch
        %5613 = sbr.rel (%p5611) target = $region104
      $region103: #{autoencode_forward.1} parent=99 // pred_region
        %s5614 = smul.u32 32, %s31
        %p5615 = scmp.lt.s32.totalorder %s5614, 63
        %s5616 = scalar_select %p5615, %s5614, 63
        %s5617 = smul.addr %s5616, 8
        %s5618 = scalar_lea.vmem %s17, %s5617
      $region104: #{autoencode_forward.1} parent=99 // pred_fallthru
        _
      // Predicated region
      $region105: #{autoencode_forward.1} parent=99 // pred_check
        %p5619 = pneg %p442
      $region106: #{autoencode_forward.1} parent=99 // pred_check_branch
        %5621 = sbr.rel (%p5619) target = $region108
      $region107: #{autoencode_forward.1} parent=99 // pred_region
        %s5622 = smul.u32 32, %s31
        %p5623 = scmp.lt.s32.totalorder %s5622, 63
        %s5624 = scalar_select %p5623, %s5622, 63
        %s5625 = smul.addr %s5624, 7
        %s5626 = smul.addr %s5625, 8
        %s5627 = scalar_lea.vmem %s18, %s5626
      $region108: #{autoencode_forward.1} parent=99 // pred_fallthru
        _
    $region100: #{autoencode_forward.1} parent=5 // pred_fallthru
      _
  $region6: #{autoencode_forward.1} parent=0 // loop_footer
    %s29 = sadd.s32 1, %s25
  $region7: #{autoencode_forward.1} parent=0 // loop_footer_branch
    %24 = sbr.rel target = $region3
  $region8: #{autoencode_forward.1} parent=0 // loop_exit
    _

</llo_original>
